<compile_context>
chip_gen: v7x
topology: tpu7x:2x2x1
jax: 0.10.0
libtpu: 0.0.40
codegen_flags: <defaults>
</compile_context>

<pallas_src>
import math
from functools import partial

import jax
import jax.numpy as jnp
from jax.experimental import pallas as pl
from jax.experimental.pallas import tpu as pltpu

BN_EPS = 1e-5


def _round_up(x, m):
    return (x + m - 1) // m * m


def _pick_strip_rows(H, Wp, max_flat_rows):
    """Strip height S (image rows) such that:
         * S * Wp % 128 == 0  (lane-dense output blocks, aligned slab slices)
         * S is even          (halo block index (strip+1)*S//2 is an integer)
         * S * Wp <= max_flat_rows (VMEM budget), but at least one unit
         * S never exceeds one row-padded image
    """
    s0 = 128 // math.gcd(Wp, 128)
    if s0 % 2:
        s0 *= 2
    k = max(1, max_flat_rows // (s0 * Wp))
    S = s0 * k
    return min(S, _round_up(H, s0))


def det_head_kernel(xm_ref, xh_ref, w1_ref, scale_ref, shift_ref, w2t_ref,
                    b2_ref, out_ref, xs_ref, *, Wp, Ms, Chid, Cin):
    """Fused conv3x3(pad=1) + folded BN(eval) + ReLU + conv1x1 for one row strip.

    xm_ref   : (1, Ms, Cin) bf16        main strip  = S padded image rows, flattened
    xh_ref   : (1, 2*Wp, Cin) bf16      2-row halo below the strip (overlapping view)
    w1_ref   : (3, Cin, 3*Chid) bf16    conv1 weights, dy-major; dx taps concatenated
                                        on the output-channel axis (N = 384)
    scale_ref: (1, Chid) f32            folded BN scale = gamma/sqrt(var+eps)
    shift_ref: (1, Chid) f32            folded BN shift = (b1-mean)*scale+beta
    w2t_ref  : (Cp, Chid) bf16          conv2 1x1 weights, transposed, zero-padded
    b2_ref   : (Cp, 1) f32              conv2 bias, zero-padded
    out_ref  : (1, Cp, Ms) f32          NCHW-native, lane-dense output block
    xs_ref   : (Ms + 2*Wp + 16, Cin) bf16 scratch: assembled strip (+ zero tail)
    """
    MsE = Ms + 16

    # Assemble the contiguous strip (+2-row halo) in VMEM; the 16 zero tail
    # rows cover the dx<=2 overhang of the last (cropped) output positions.
    xs_ref[0:Ms, :] = xm_ref[0, :, :]
    xs_ref[Ms:Ms + 2 * Wp, :] = xh_ref[0, :, :]
    xs_ref[Ms + 2 * Wp:Ms + 2 * Wp + 16, :] = jnp.zeros((16, Cin), jnp.bfloat16)

    # conv3x3 as 3 MXU matmuls, one per dy, over aligned dy row-slabs.
    # N = 3*Chid = 384 fills the 256-wide MXU on v6e/v7x; f32 accumulation.
    z = jnp.dot(xs_ref[0:MsE, :], w1_ref[0],
                preferred_element_type=jnp.float32)
    z = z + jnp.dot(xs_ref[Wp:Wp + MsE, :], w1_ref[1],
                    preferred_element_type=jnp.float32)
    z = z + jnp.dot(xs_ref[2 * Wp:2 * Wp + MsE, :], w1_ref[2],
                    preferred_element_type=jnp.float32)

    # Output-side dx shift on the 128-wide result chunks, accumulated as a
    # value (no scratch round trips) and fused straight into BN + ReLU.
    acc = (z[0:Ms, 0:Chid]
           + z[1:1 + Ms, Chid:2 * Chid]
           + z[2:2 + Ms, 2 * Chid:3 * Chid])
    hidden = jnp.maximum(acc * scale_ref[...] + shift_ref[...], 0.0)

    # conv1x1 computed transposed: (Cp, Chid) x (Ms, Chid)^T -> (Cp, Ms).
    # Lane-dense (Ms on lanes, multiple of 128) and channel-major (NCHW).
    out_t = jax.lax.dot_general(
        w2t_ref[...], hidden.astype(jnp.bfloat16),
        dimension_numbers=(((1,), (1,)), ((), ())),
        preferred_element_type=jnp.float32)
    out_ref[...] = (out_t + b2_ref[...]).reshape(out_ref.shape)


def det_head_pallas(x_nchw, params, *, max_strip_rows=2048):
    """x_nchw: (B, Cin, H, W) float32.  Returns (B, num_classes, H, W) float32."""
    w1c = params["w1_cat"]           # (3, Cin, 3*Chid) bf16
    scale = params["bn_scale"]       # (1, Chid) f32
    shift = params["bn_shift"]       # (1, Chid) f32
    w2t = params["w2t_pad"]          # (Cp, Chid) bf16
    b2 = params["b2_pad"]            # (Cp, 1) f32
    n_cls = int(params["num_classes"])

    B, Cin, H, W = x_nchw.shape
    Chid = w1c.shape[2] // 3
    Cp = w2t.shape[0]

    Wp = _round_up(W + 2, 16)                # padded width, bf16 tile aligned
    S = _pick_strip_rows(H, Wp, max_strip_rows)
    Hp = _round_up(H, S)
    n_strips = Hp // S
    Ms = S * Wp                              # flattened output rows per strip
    n_rows = (Hp + 2) * Wp                   # flattened padded input rows / image
    S_half = S // 2                          # S is even by construction

    # Layout pass (single XLA transpose+pad+cast): NCHW -> NHWC, zero-pad
    # (1 top row, Hp-H+1 bottom rows, 1 left col, Wp-W-1 right cols), flatten
    # the spatial dims, cast to bf16.
    # TODO(synk): consume NCHW directly (in-kernel transpose / strided DMA) to
    # drop this extra HBM round trip over the 512-channel activation.
    x_nhwc = jnp.transpose(x_nchw.astype(jnp.bfloat16), (0, 2, 3, 1))
    x_flat = jnp.pad(
        x_nhwc, ((0, 0), (1, Hp - H + 1), (1, Wp - W - 1), (0, 0))
    ).reshape(B, n_rows, Cin)

    kernel = partial(det_head_kernel, Wp=Wp, Ms=Ms, Chid=Chid, Cin=Cin)

    # Scoped-VMEM budget from the strip math: double-buffered input/halo/output
    # blocks + resident weights + assembled-strip scratch + f32 intermediates.
    est = (2 * Ms * Cin * 2 + 2 * 2 * Wp * Cin * 2 + 2 * Cp * Ms * 4
           + 3 * Cin * 3 * Chid * 2 + Cp * Chid * 2 + (Cp + 2 * Chid) * 4
           + (Ms + 2 * Wp + 16) * Cin * 2
           + (Ms + 16) * 3 * Chid * 4 + 2 * Ms * Chid * 4)
    vmem_limit = int(min(64 * 2**20, max(32 * 2**20, 2 * est)))

    out_flat = pl.pallas_call(
        kernel,
        out_shape=jax.ShapeDtypeStruct((B, Cp, Hp * Wp), jnp.float32),
        grid_spec=pltpu.PrefetchScalarGridSpec(
            num_scalar_prefetch=0,
            grid=(B, n_strips),
            in_specs=[
                # main strip: S padded rows, flattened
                pl.BlockSpec((1, Ms, Cin), lambda b, s: (b, s, 0)),
                # 2-row halo below the strip (overlapping view of the same array)
                pl.BlockSpec((1, 2 * Wp, Cin),
                             lambda b, s: (b, (s + 1) * S_half, 0)),
                pl.BlockSpec((3, Cin, 3 * Chid), lambda b, s: (0, 0, 0)),
                pl.BlockSpec((1, Chid), lambda b, s: (0, 0)),
                pl.BlockSpec((1, Chid), lambda b, s: (0, 0)),
                pl.BlockSpec((Cp, Chid), lambda b, s: (0, 0)),
                pl.BlockSpec((Cp, 1), lambda b, s: (0, 0)),
            ],
            out_specs=pl.BlockSpec((1, Cp, Ms), lambda b, s: (b, 0, s)),
            scratch_shapes=[pltpu.VMEM((Ms + 2 * Wp + 16, Cin), jnp.bfloat16)],
        ),
        compiler_params=pltpu.CompilerParams(
            dimension_semantics=("parallel", "parallel"),
            vmem_limit_bytes=vmem_limit),
    )(x_flat, x_flat, w1c, scale, shift, w2t, b2)

    # Output is already channel-major: reshape + crop only, no transpose.
    # (Columns x >= W / rows y >= H hold wrap-around / pad garbage by design;
    # the crop below is what makes them irrelevant -- keep it intact.)
    return out_flat.reshape(B, Cp, Hp, Wp)[:, :n_cls, :H, :W]


def det_head_reference(x_nchw, params):
    """Pure-JAX f32 reference (lax.conv) matching the PyTorch forward."""
    w1 = params["w1_oihw"]
    b1 = params["b1"]
    gamma, beta = params["gamma"], params["beta"]
    mean, var = params["running_mean"], params["running_var"]
    w2 = params["w2_oihw"]
    b2 = params["b2"]

    y = jax.lax.conv_general_dilated(
        x_nchw, w1, window_strides=(1, 1), padding=((1, 1), (1, 1)),
        dimension_numbers=("NCHW", "OIHW", "NCHW"))
    y = y + b1[None, :, None, None]
    y = (y - mean[None, :, None, None]) / jnp.sqrt(var[None, :, None, None] + BN_EPS)
    y = y * gamma[None, :, None, None] + beta[None, :, None, None]
    y = jnp.maximum(y, 0.0)
    z = jax.lax.conv_general_dilated(
        y, w2, window_strides=(1, 1), padding=((0, 0), (0, 0)),
        dimension_numbers=("NCHW", "OIHW", "NCHW"))
    return z + b2[None, :, None, None]


def init_det_head_params(key, in_channels, hidden_dim, num_classes):
    """Deterministic init mimicking det_Head.__init__ (conv: N(0, sqrt(2/n)),
    BN: gamma=1, beta=0, running stats = (0, 1), eval mode)."""
    k1, k2, k3, k4 = jax.random.split(key, 4)

    n1 = 3 * 3 * hidden_dim
    w1_oihw = jax.random.normal(k1, (hidden_dim, in_channels, 3, 3),
                                jnp.float32) * math.sqrt(2.0 / n1)
    b1 = 0.01 * jax.random.normal(k2, (hidden_dim,), jnp.float32)

    n2 = 1 * 1 * num_classes
    w2_oihw = jax.random.normal(k3, (num_classes, hidden_dim, 1, 1),
                                jnp.float32) * math.sqrt(2.0 / n2)
    b2 = 0.01 * jax.random.normal(k4, (num_classes,), jnp.float32)

    gamma = jnp.ones((hidden_dim,), jnp.float32)
    beta = jnp.zeros((hidden_dim,), jnp.float32)
    running_mean = jnp.zeros((hidden_dim,), jnp.float32)
    running_var = jnp.ones((hidden_dim,), jnp.float32)

    # Kernel-side (folded / layout-converted) parameters.
    bn_scale = gamma / jnp.sqrt(running_var + BN_EPS)            # (Chid,)
    bn_shift = (b1 - running_mean) * bn_scale + beta             # (Chid,)

    # conv1 weights, dy-major, with the 3 dx taps concatenated on the output-
    # channel axis: w1_cat[dy][:, dx*Chid:(dx+1)*Chid] == w1[:, :, dy, dx].T
    w1_khkwic = jnp.transpose(w1_oihw, (2, 3, 1, 0))             # (3, 3, Cin, Chid)
    w1_cat = jnp.transpose(w1_khkwic, (0, 2, 1, 3)).reshape(
        3, in_channels, 3 * hidden_dim).astype(jnp.bfloat16)     # (3, Cin, 3*Chid)

    cp = _round_up(num_classes, 16)                              # padded out-channels
    w2t = w2_oihw[:, :, 0, 0]                                    # (Cout, Chid)
    w2t_pad = jnp.zeros((cp, hidden_dim), jnp.float32).at[:num_classes].set(
        w2t).astype(jnp.bfloat16)
    b2_pad = jnp.zeros((cp, 1), jnp.float32).at[:num_classes, 0].set(b2)

    return dict(
        w1_oihw=w1_oihw, b1=b1, gamma=gamma, beta=beta,
        running_mean=running_mean, running_var=running_var,
        w2_oihw=w2_oihw, b2=b2,
        w1_cat=w1_cat,
        bn_scale=bn_scale.reshape(1, -1), bn_shift=bn_shift.reshape(1, -1),
        w2t_pad=w2t_pad, b2_pad=b2_pad, num_classes=int(num_classes),
    )


if __name__ == "__main__":
    # det_Head in student_test: in_channels=512, hidden_dim=128, num_classes=6.
    # Small spatial / batch for the test.
    B, CIN, H, W = 2, 512, 16, 16
    CHID, NCLS = 128, 6

    key = jax.random.PRNGKey(0)
    kx, kp = jax.random.split(key)
    f = jax.random.normal(kx, (B, CIN, H, W), jnp.float32)
    params = init_det_head_params(kp, CIN, CHID, NCLS)

    # max_strip_rows=256 -> S=8 at this shape: exercises 2 row strips per image
    # (halo fetch + strip-tiled output); the default (2048) is meant for
    # realistic det-head resolutions.
    out = jax.block_until_ready(det_head_pallas(f, params, max_strip_rows=256))
    ref = jax.block_until_ready(det_head_reference(f, params))

    assert out.shape == (B, NCLS, H, W), out.shape
    max_err = float(jnp.max(jnp.abs(out - ref)))
    ref_scale = float(jnp.max(jnp.abs(ref)))
    # bf16 matmul operands (f32 accumulation) over K = 9*512 -> relative tol.
    if max_err > 3e-2 * ref_scale:
        raise AssertionError(
            f"Pallas/reference mismatch: max abs err {max_err} (ref max {ref_scale})")
    print("KERNEL_OK")
</pallas_src>

<mosaic_0001>
module attributes {stable_mosaic.version = 11 : i64} {
  func.func @det_head_kernel(%arg0: i32, %arg1: i32, %arg2: memref<1x256x512xbf16, #tpu.memory_space<vmem>>, %arg3: memref<1x64x512xbf16, #tpu.memory_space<vmem>>, %arg4: memref<3x512x384xbf16, #tpu.memory_space<vmem>>, %arg5: memref<1x128xf32, #tpu.memory_space<vmem>>, %arg6: memref<1x128xf32, #tpu.memory_space<vmem>>, %arg7: memref<16x128xbf16, #tpu.memory_space<vmem>>, %arg8: memref<16x1xf32, #tpu.memory_space<vmem>>, %arg9: memref<1x16x256xf32, #tpu.memory_space<vmem>>, %arg10: memref<336x512xbf16, #tpu.memory_space<vmem>>) attributes {dimension_semantics = [#tpu.dimension_semantics<parallel>, #tpu.dimension_semantics<parallel>], iteration_bounds = array<i64: 2, 2>, scalar_prefetch = 0 : i64, scratch_operands = 1 : i64, tpu.core_type = #tpu.core_type<tc>, window_params = [{transform_indices = @transform_0, window_bounds = array<i64: 1, 256, 512>}, {transform_indices = @transform_1, window_bounds = array<i64: 1, 64, 512>}, {pipeline_mode = #tpu.pipeline_mode<synchronous>, transform_indices = @transform_2, window_bounds = array<i64: 3, 512, 384>}, {pipeline_mode = #tpu.pipeline_mode<synchronous>, transform_indices = @transform_3, window_bounds = array<i64: 1, 128>}, {pipeline_mode = #tpu.pipeline_mode<synchronous>, transform_indices = @transform_4, window_bounds = array<i64: 1, 128>}, {pipeline_mode = #tpu.pipeline_mode<synchronous>, transform_indices = @transform_5, window_bounds = array<i64: 16, 128>}, {pipeline_mode = #tpu.pipeline_mode<synchronous>, transform_indices = @transform_6, window_bounds = array<i64: 16, 1>}, {transform_indices = @transform_7, window_bounds = array<i64: 1, 16, 256>}]} {
    %c0 = arith.constant 0 : index
    %c0_0 = arith.constant 0 : index
    %c0_1 = arith.constant 0 : index
    %0 = vector.load %arg2[%c0, %c0_0, %c0_1] : memref<1x256x512xbf16, #tpu.memory_space<vmem>>, vector<1x256x512xbf16>
    %1 = vector.shape_cast %0 : vector<1x256x512xbf16> to vector<256x512xbf16>
    %c0_2 = arith.constant 0 : index
    %c0_3 = arith.constant 0 : index
    %2 = vector.load %arg10[%c0_2, %c0_3] : memref<336x512xbf16, #tpu.memory_space<vmem>>, vector<256x512xbf16>
    tpu.vector_store %arg10[%c0_2, %c0_3], %1 {strides = array<i32>} : memref<336x512xbf16, #tpu.memory_space<vmem>>, vector<256x512xbf16>,
    %c0_4 = arith.constant 0 : index
    %c0_5 = arith.constant 0 : index
    %c0_6 = arith.constant 0 : index
    %3 = vector.load %arg3[%c0_4, %c0_5, %c0_6] : memref<1x64x512xbf16, #tpu.memory_space<vmem>>, vector<1x64x512xbf16>
    %4 = vector.shape_cast %3 : vector<1x64x512xbf16> to vector<64x512xbf16>
    %c256 = arith.constant 256 : index
    %c0_7 = arith.constant 0 : index
    %5 = vector.load %arg10[%c256, %c0_7] : memref<336x512xbf16, #tpu.memory_space<vmem>>, vector<64x512xbf16>
    tpu.vector_store %arg10[%c256, %c0_7], %4 {strides = array<i32>} : memref<336x512xbf16, #tpu.memory_space<vmem>>, vector<64x512xbf16>,
    %cst = arith.constant 0.000000e+00 : bf16
    %6 = vector.broadcast %cst : bf16 to vector<16x512xbf16>
    %c320 = arith.constant 320 : index
    %c0_8 = arith.constant 0 : index
    %7 = vector.load %arg10[%c320, %c0_8] : memref<336x512xbf16, #tpu.memory_space<vmem>>, vector<16x512xbf16>
    tpu.vector_store %arg10[%c320, %c0_8], %6 {strides = array<i32>} : memref<336x512xbf16, #tpu.memory_space<vmem>>, vector<16x512xbf16>,
    %c0_9 = arith.constant 0 : index
    %c0_10 = arith.constant 0 : index
    %8 = vector.load %arg10[%c0_9, %c0_10] : memref<336x512xbf16, #tpu.memory_space<vmem>>, vector<272x512xbf16>
    %c0_11 = arith.constant 0 : index
    %c0_12 = arith.constant 0 : index
    %c0_13 = arith.constant 0 : index
    %9 = vector.load %arg4[%c0_11, %c0_12, %c0_13] : memref<3x512x384xbf16, #tpu.memory_space<vmem>>, vector<1x512x384xbf16>
    %10 = vector.shape_cast %9 : vector<1x512x384xbf16> to vector<512x384xbf16>
    %cst_14 = arith.constant dense<0.000000e+00> : vector<272x384xf32>
    %11 = tpu.matmul %8, %10, %cst_14 {dimension_numbers = #tpu.dot_dimension_numbers<[1], [0], [0], [1], [0, 0, 1, 1], [], []>} : vector<272x512xbf16>, vector<512x384xbf16>, vector<272x384xf32> -> vector<272x384xf32>
    %c32 = arith.constant 32 : index
    %c0_15 = arith.constant 0 : index
    %12 = vector.load %arg10[%c32, %c0_15] : memref<336x512xbf16, #tpu.memory_space<vmem>>, vector<272x512xbf16>
    %c1 = arith.constant 1 : index
    %c0_16 = arith.constant 0 : index
    %c0_17 = arith.constant 0 : index
    %13 = vector.load %arg4[%c1, %c0_16, %c0_17] : memref<3x512x384xbf16, #tpu.memory_space<vmem>>, vector<1x512x384xbf16>
    %14 = vector.shape_cast %13 : vector<1x512x384xbf16> to vector<512x384xbf16>
    %cst_18 = arith.constant dense<0.000000e+00> : vector<272x384xf32>
    %15 = tpu.matmul %12, %14, %cst_18 {dimension_numbers = #tpu.dot_dimension_numbers<[1], [0], [0], [1], [0, 0, 1, 1], [], []>} : vector<272x512xbf16>, vector<512x384xbf16>, vector<272x384xf32> -> vector<272x384xf32>
    %16 = arith.addf %11, %15 : vector<272x384xf32>
    %c64 = arith.constant 64 : index
    %c0_19 = arith.constant 0 : index
    %17 = vector.load %arg10[%c64, %c0_19] : memref<336x512xbf16, #tpu.memory_space<vmem>>, vector<272x512xbf16>
    %c2 = arith.constant 2 : index
    %c0_20 = arith.constant 0 : index
    %c0_21 = arith.constant 0 : index
    %18 = vector.load %arg4[%c2, %c0_20, %c0_21] : memref<3x512x384xbf16, #tpu.memory_space<vmem>>, vector<1x512x384xbf16>
    %19 = vector.shape_cast %18 : vector<1x512x384xbf16> to vector<512x384xbf16>
    %cst_22 = arith.constant dense<0.000000e+00> : vector<272x384xf32>
    %20 = tpu.matmul %17, %19, %cst_22 {dimension_numbers = #tpu.dot_dimension_numbers<[1], [0], [0], [1], [0, 0, 1, 1], [], []>} : vector<272x512xbf16>, vector<512x384xbf16>, vector<272x384xf32> -> vector<272x384xf32>
    %21 = arith.addf %16, %20 : vector<272x384xf32>
    %22 = vector.extract_strided_slice %21 {offsets = [0, 0], sizes = [256, 128], strides = [1, 1]} : vector<272x384xf32> to vector<256x128xf32>
    %23 = vector.extract_strided_slice %21 {offsets = [1, 128], sizes = [256, 128], strides = [1, 1]} : vector<272x384xf32> to vector<256x128xf32>
    %24 = arith.addf %22, %23 : vector<256x128xf32>
    %25 = vector.extract_strided_slice %21 {offsets = [2, 256], sizes = [256, 128], strides = [1, 1]} : vector<272x384xf32> to vector<256x128xf32>
    %26 = arith.addf %24, %25 : vector<256x128xf32>
    %c0_23 = arith.constant 0 : index
    %c0_24 = arith.constant 0 : index
    %27 = vector.load %arg5[%c0_23, %c0_24] : memref<1x128xf32, #tpu.memory_space<vmem>>, vector<1x128xf32>
    %28 = vector.broadcast %27 : vector<1x128xf32> to vector<256x128xf32>
    %29 = arith.mulf %26, %28 : vector<256x128xf32>
    %c0_25 = arith.constant 0 : index
    %c0_26 = arith.constant 0 : index
    %30 = vector.load %arg6[%c0_25, %c0_26] : memref<1x128xf32, #tpu.memory_space<vmem>>, vector<1x128xf32>
    %31 = vector.broadcast %30 : vector<1x128xf32> to vector<256x128xf32>
    %32 = arith.addf %29, %31 : vector<256x128xf32>
    %cst_27 = arith.constant 0.000000e+00 : f32
    %33 = vector.broadcast %cst_27 : f32 to vector<256x128xf32>
    %34 = arith.maximumf %32, %33 : vector<256x128xf32>
    %c0_28 = arith.constant 0 : index
    %c0_29 = arith.constant 0 : index
    %35 = vector.load %arg7[%c0_28, %c0_29] : memref<16x128xbf16, #tpu.memory_space<vmem>>, vector<16x128xbf16>
    %36 = arith.truncf %34 : vector<256x128xf32> to vector<256x128xbf16>
    %cst_30 = arith.constant dense<0.000000e+00> : vector<16x256xf32>
    %37 = tpu.matmul %35, %36, %cst_30 {dimension_numbers = #tpu.dot_dimension_numbers<[1], [1], [0], [0], [0, 0, 1, 0], [], []>} : vector<16x128xbf16>, vector<256x128xbf16>, vector<16x256xf32> -> vector<16x256xf32>
    %c0_31 = arith.constant 0 : index
    %c0_32 = arith.constant 0 : index
    %38 = vector.load %arg8[%c0_31, %c0_32] : memref<16x1xf32, #tpu.memory_space<vmem>>, vector<16x1xf32>
    %39 = vector.broadcast %38 : vector<16x1xf32> to vector<16x256xf32>
    %40 = arith.addf %37, %39 : vector<16x256xf32>
    %41 = vector.shape_cast %40 : vector<16x256xf32> to vector<1x16x256xf32>
    %c0_33 = arith.constant 0 : index
    %c0_34 = arith.constant 0 : index
    %c0_35 = arith.constant 0 : index
    %42 = vector.load %arg9[%c0_33, %c0_34, %c0_35] : memref<1x16x256xf32, #tpu.memory_space<vmem>>, vector<1x16x256xf32>
    tpu.vector_store %arg9[%c0_33, %c0_34, %c0_35], %41 {strides = array<i32>} : memref<1x16x256xf32, #tpu.memory_space<vmem>>, vector<1x16x256xf32>,
    return
  }
  func.func @transform_0(%arg0: i32, %arg1: i32) -> (i32, i32, i32) {
    %c0_i32 = arith.constant 0 : i32
    %c0_i32_0 = arith.constant 0 : i32
    return %arg0, %arg1, %c0_i32 : i32, i32, i32
  }
  func.func @transform_1(%arg0: i32, %arg1: i32) -> (i32, i32, i32) {
    %c1_i32 = arith.constant 1 : i32
    %0 = arith.addi %arg1, %c1_i32 : i32
    %c4_i32 = arith.constant 4 : i32
    %1 = arith.muli %0, %c4_i32 : i32
    %c0_i32 = arith.constant 0 : i32
    %c0_i32_0 = arith.constant 0 : i32
    return %arg0, %1, %c0_i32 : i32, i32, i32
  }
  func.func @transform_2(%arg0: i32, %arg1: i32) -> (i32, i32, i32) {
    %c0_i32 = arith.constant 0 : i32
    %c0_i32_0 = arith.constant 0 : i32
    %c0_i32_1 = arith.constant 0 : i32
    %c0_i32_2 = arith.constant 0 : i32
    return %c0_i32, %c0_i32_0, %c0_i32_1 : i32, i32, i32
  }
  func.func @transform_3(%arg0: i32, %arg1: i32) -> (i32, i32) {
    %c0_i32 = arith.constant 0 : i32
    %c0_i32_0 = arith.constant 0 : i32
    %c0_i32_1 = arith.constant 0 : i32
    return %c0_i32, %c0_i32_0 : i32, i32
  }
  func.func @transform_4(%arg0: i32, %arg1: i32) -> (i32, i32) {
    %c0_i32 = arith.constant 0 : i32
    %c0_i32_0 = arith.constant 0 : i32
    %c0_i32_1 = arith.constant 0 : i32
    return %c0_i32, %c0_i32_0 : i32, i32
  }
  func.func @transform_5(%arg0: i32, %arg1: i32) -> (i32, i32) {
    %c0_i32 = arith.constant 0 : i32
    %c0_i32_0 = arith.constant 0 : i32
    %c0_i32_1 = arith.constant 0 : i32
    return %c0_i32, %c0_i32_0 : i32, i32
  }
  func.func @transform_6(%arg0: i32, %arg1: i32) -> (i32, i32) {
    %c0_i32 = arith.constant 0 : i32
    %c0_i32_0 = arith.constant 0 : i32
    %c0_i32_1 = arith.constant 0 : i32
    return %c0_i32, %c0_i32_0 : i32, i32
  }
  func.func @transform_7(%arg0: i32, %arg1: i32) -> (i32, i32, i32) {
    %c0_i32 = arith.constant 0 : i32
    %c0_i32_0 = arith.constant 0 : i32
    return %arg0, %c0_i32, %arg1 : i32, i32, i32
  }
}

</mosaic_0001>

<llo_original>
// kernel: tpu_custom_call.1
$region0: #{tpu_custom_call.1}
  #allocation0 [shape = 'u32[]', space=smem, size = 0x4, offset = 0x4, fixed_abs, tag = 'smem constant byte address 0x4 - core index']
  #allocation1 [shape = 'u32[144,128]{1,0:T(1,128)}', space=vmem, size = 0x12000, scoped, tag = 'internal scratch']
  #allocation2 [shape = 'bf16[336,512]{1,0:T(16,128)(2,1)}', space=vmem, size = 0x54000, scoped, tag = 'scratch operand']
  %s0 = inlined_call_operand.hbm [shape: bf16[2,576,512], index: 0, kind: input, shape index: {}]
  %s1 = inlined_call_operand.hbm [shape: bf16[2,576,512], index: 1, kind: input, shape index: {}]
  %s2 = inlined_call_operand.hbm [shape: bf16[3,512,384], index: 2, kind: input, shape index: {}]
  %s3 = inlined_call_operand.hbm [shape: f32[1,128], index: 3, kind: input, shape index: {}]
  %s4 = inlined_call_operand.hbm [shape: f32[1,128], index: 4, kind: input, shape index: {}]
  %s5 = inlined_call_operand.hbm [shape: bf16[16,128], index: 5, kind: input, shape index: {}]
  %s6 = inlined_call_operand.vmem [shape: f32[16,1], index: 6, kind: input, shape index: {}]
  %s7 = inlined_call_operand.hbm [shape: f32[2,16,512], index: 7, kind: output, shape index: {}]
  %s8 = sld [smem:[#allocation0]]
  $region85: #{tpu_custom_call.1} parent=0
    _
  %s10 = ssub.s32 1, %s8
  %s11 = scalar_select 0, %s10, %s8
  $region1: #{tpu_custom_call.1} parent=0
    #allocation3 [shape = 'u8[524288]{0}', space=vmem, size = 0x80000, scoped, tag = 'input window, operand 0']
    #allocation4 [shape = 's32[2]{0}', space=sflag, size = 0x8, scoped, tag = 'scoped memory for tpu_custom_call.1']
    #allocation5 [shape = 's32[2]{0}', space=sflag, size = 0x8, scoped, tag = 'scoped memory for tpu_custom_call.1']
    #allocation6 [shape = 'u8[131072]{0}', space=vmem, size = 0x20000, scoped, tag = 'input window, operand 1']
    #allocation7 [shape = 's32[2]{0}', space=sflag, size = 0x8, scoped, tag = 'scoped memory for tpu_custom_call.1']
    #allocation8 [shape = 'u8[1179648]{0}', space=vmem, size = 0x120000, scoped, tag = 'input window, operand 2, single buffered']
    #allocation9 [shape = 'u8[512]{0}', space=vmem, size = 0x400, scoped, tag = 'input window, operand 3, single buffered']
    #allocation10 [shape = 's32[1]{0}', space=sflag, size = 0x4, scoped, tag = 'scoped memory for tpu_custom_call.1']
    #allocation11 [shape = 'u8[512]{0}', space=vmem, size = 0x400, scoped, tag = 'input window, operand 4, single buffered']
    #allocation12 [shape = 'u8[4096]{0}', space=vmem, size = 0x1000, scoped, tag = 'input window, operand 5, single buffered']
    #allocation13 [shape = 's32[1]{0}', space=sflag, size = 0x4, scoped, tag = 'scoped memory for tpu_custom_call.1']
    #allocation14 [shape = 'u8[32768]{0}', space=vmem, size = 0x8000, scoped, tag = 'output window, operand 0']
    %12 = vsyncpa [#allocation4], 0
    %s13 = scalar_lea.sflag [#allocation4], 1
    %14 = vsyncpa %s13, 0
    %15 = vsyncpa [#allocation7], 0
    %s16 = scalar_lea.sflag [#allocation7], 1
    %17 = vsyncpa %s16, 0
    %18 = vsyncpa [#allocation10], 0
    %19 = vsyncpa [#allocation13], 0
    %20 = vsyncpa [#allocation5], 0
    %s21 = scalar_lea.sflag [#allocation5], 1
    %22 = vsyncpa %s21, 0
    loop: start=0, step=1, limit=6
    $region2: #{tpu_custom_call.1} parent=1 // loop_pre_header
      _
    $region3: #{tpu_custom_call.1} parent=1 // loop_header
      %s24 = sphi 0, %s28
      %p25 = scmp.ge.s32.totalorder %s24, 6
      %s31 = sphi 0, %s43
      %s32 = sphi 0, %s39
      %s33 = sphi 0, %s31
      %s34 = sphi 0, %s32
      %s35 = sphi 0, %s33
      %s36 = sphi 0, %s34
      %s48 = sphi 0, %s50
      %s51 = sphi 0, %s48
      %s52 = sphi 0, %s51
      %s68 = sphi 0, %s52
      %s80 = sphi 0, %s82
      %s83 = sphi 0, %s80
      %s84 = sphi 0, %s83
      %s100 = sphi 0, %s84
      %s104 = sphi 0, %s104
      %s106 = sphi 0, %s104
      %s107 = sphi 0, %s106
      %s121 = sphi 0, %s107
      %s125 = sphi 0, %s125
      %s127 = sphi 0, %s125
      %s128 = sphi 0, %s127
      %s142 = sphi 0, %s128
      %s146 = sphi 0, %s146
      %s148 = sphi 0, %s146
      %s149 = sphi 0, %s148
      %s163 = sphi 0, %s149
      %s167 = sphi 0, %s167
      %s169 = sphi 0, %s167
      %s170 = sphi 0, %s169
      %s184 = sphi 0, %s170
      %s188 = sphi 0, %s188
      %s190 = sphi 0, %s188
      %s191 = sphi 0, %s190
      %s205 = sphi 0, %s191
      %s213 = sphi 0, %s215
      %s216 = sphi 0, %s213
      %s217 = sphi 0, %s216
      %s233 = sphi 0, %s217
    $region4: #{tpu_custom_call.1} parent=1 // loop_header_branch
      %27 = sbr.rel (%p25) target = $region8
    $region5: #{tpu_custom_call.1} parent=1 // loop_body
      %s29 = ssub.s32 %s24, 1
      %s30 = ssub.s32 %s24, 2
      %s37 = sadd.s32 1, %s32
      %p38 = scmp.ge.s32.totalorder %s37, 2
      %s39 = scalar_select %p38, 0, %s37
      %s40 = sadd.s32 1, %s31
      %s41 = scalar_select %p38, %s40, %s31
      %p42 = scmp.ge.s32.totalorder %s41, 2
      %s43 = scalar_select %p42, 0, %s41
      %s44 = ssub.s32 %s31, %s43
      %s45 = ssub.s32 %s32, %s39
      %s46 = sor.u32 %s44, %s45
      %p47 = scmp.eq.s32.totalorder %s46, 0
      %s49 = sadd.s32 %s48, 1
      %s50 = scalar_select %p47, %s48, %s49
      %p53 = pneg %p47
      %p54 = scmp.eq.s32.totalorder %s24, 3
      %p55 = por %p53, %p54
      %p56 = scmp.ne.s32.totalorder %s48, %s51
      %p57 = scmp.eq.s32.totalorder %s24, 0
      %p58 = por %p56, %p57
      %p59 = scmp.ne.s32.totalorder %s48, %s51
      %p60 = scmp.eq.s32.totalorder %s29, 3
      %p61 = por %p59, %p60
      %p62 = scmp.ne.s32.totalorder %s51, %s52
      %p63 = scmp.eq.s32.totalorder %s29, 0
      %p64 = por %p62, %p63
      %p65 = scmp.ne.s32.totalorder %s51, %s52
      %p66 = scmp.eq.s32.totalorder %s30, 3
      %p67 = por %p65, %p66
      %p69 = scmp.ne.s32.totalorder %s52, %s68
      %p70 = scmp.eq.s32.totalorder %s30, 0
      %p71 = por %p69, %p70
      %s72 = sadd.s32 %s32, 1
      %s73 = smul.u32 %s72, 4
      %s74 = sadd.s32 %s39, 1
      %s75 = smul.u32 %s74, 4
      %s76 = ssub.s32 %s31, %s43
      %s77 = ssub.s32 %s73, %s75
      %s78 = sor.u32 %s76, %s77
      %p79 = scmp.eq.s32.totalorder %s78, 0
      %s81 = sadd.s32 %s80, 1
      %s82 = scalar_select %p79, %s80, %s81
      %p85 = pneg %p79
      %p86 = scmp.eq.s32.totalorder %s24, 3
      %p87 = por %p85, %p86
      %p88 = scmp.ne.s32.totalorder %s80, %s83
      %p89 = scmp.eq.s32.totalorder %s24, 0
      %p90 = por %p88, %p89
      %p91 = scmp.ne.s32.totalorder %s80, %s83
      %p92 = scmp.eq.s32.totalorder %s29, 3
      %p93 = por %p91, %p92
      %p94 = scmp.ne.s32.totalorder %s83, %s84
      %p95 = scmp.eq.s32.totalorder %s29, 0
      %p96 = por %p94, %p95
      %p97 = scmp.ne.s32.totalorder %s83, %s84
      %p98 = scmp.eq.s32.totalorder %s30, 3
      %p99 = por %p97, %p98
      %p101 = scmp.ne.s32.totalorder %s84, %s100
      %p102 = scmp.eq.s32.totalorder %s30, 0
      %p103 = por %p101, %p102
      %s105 = sadd.s32 %s104, 1
      %p108 = scmp.eq.s32.totalorder %s24, 3
      %p109 = scmp.ne.s32.totalorder %s104, %s106
      %p110 = scmp.eq.s32.totalorder %s24, 0
      %p111 = por %p109, %p110
      %p112 = scmp.ne.s32.totalorder %s104, %s106
      %p113 = scmp.eq.s32.totalorder %s29, 3
      %p114 = por %p112, %p113
      %p115 = scmp.ne.s32.totalorder %s106, %s107
      %p116 = scmp.eq.s32.totalorder %s29, 0
      %p117 = por %p115, %p116
      %p118 = scmp.ne.s32.totalorder %s106, %s107
      %p119 = scmp.eq.s32.totalorder %s30, 3
      %p120 = por %p118, %p119
      %p122 = scmp.ne.s32.totalorder %s107, %s121
      %p123 = scmp.eq.s32.totalorder %s30, 0
      %p124 = por %p122, %p123
      %s126 = sadd.s32 %s125, 1
      %p129 = scmp.eq.s32.totalorder %s24, 3
      %p130 = scmp.ne.s32.totalorder %s125, %s127
      %p131 = scmp.eq.s32.totalorder %s24, 0
      %p132 = por %p130, %p131
      %p133 = scmp.ne.s32.totalorder %s125, %s127
      %p134 = scmp.eq.s32.totalorder %s29, 3
      %p135 = por %p133, %p134
      %p136 = scmp.ne.s32.totalorder %s127, %s128
      %p137 = scmp.eq.s32.totalorder %s29, 0
      %p138 = por %p136, %p137
      %p139 = scmp.ne.s32.totalorder %s127, %s128
      %p140 = scmp.eq.s32.totalorder %s30, 3
      %p141 = por %p139, %p140
      %p143 = scmp.ne.s32.totalorder %s128, %s142
      %p144 = scmp.eq.s32.totalorder %s30, 0
      %p145 = por %p143, %p144
      %s147 = sadd.s32 %s146, 1
      %p150 = scmp.eq.s32.totalorder %s24, 3
      %p151 = scmp.ne.s32.totalorder %s146, %s148
      %p152 = scmp.eq.s32.totalorder %s24, 0
      %p153 = por %p151, %p152
      %p154 = scmp.ne.s32.totalorder %s146, %s148
      %p155 = scmp.eq.s32.totalorder %s29, 3
      %p156 = por %p154, %p155
      %p157 = scmp.ne.s32.totalorder %s148, %s149
      %p158 = scmp.eq.s32.totalorder %s29, 0
      %p159 = por %p157, %p158
      %p160 = scmp.ne.s32.totalorder %s148, %s149
      %p161 = scmp.eq.s32.totalorder %s30, 3
      %p162 = por %p160, %p161
      %p164 = scmp.ne.s32.totalorder %s149, %s163
      %p165 = scmp.eq.s32.totalorder %s30, 0
      %p166 = por %p164, %p165
      %s168 = sadd.s32 %s167, 1
      %p171 = scmp.eq.s32.totalorder %s24, 3
      %p172 = scmp.ne.s32.totalorder %s167, %s169
      %p173 = scmp.eq.s32.totalorder %s24, 0
      %p174 = por %p172, %p173
      %p175 = scmp.ne.s32.totalorder %s167, %s169
      %p176 = scmp.eq.s32.totalorder %s29, 3
      %p177 = por %p175, %p176
      %p178 = scmp.ne.s32.totalorder %s169, %s170
      %p179 = scmp.eq.s32.totalorder %s29, 0
      %p180 = por %p178, %p179
      %p181 = scmp.ne.s32.totalorder %s169, %s170
      %p182 = scmp.eq.s32.totalorder %s30, 3
      %p183 = por %p181, %p182
      %p185 = scmp.ne.s32.totalorder %s170, %s184
      %p186 = scmp.eq.s32.totalorder %s30, 0
      %p187 = por %p185, %p186
      %s189 = sadd.s32 %s188, 1
      %p192 = scmp.eq.s32.totalorder %s24, 3
      %p193 = scmp.ne.s32.totalorder %s188, %s190
      %p194 = scmp.eq.s32.totalorder %s24, 0
      %p195 = por %p193, %p194
      %p196 = scmp.ne.s32.totalorder %s188, %s190
      %p197 = scmp.eq.s32.totalorder %s29, 3
      %p198 = por %p196, %p197
      %p199 = scmp.ne.s32.totalorder %s190, %s191
      %p200 = scmp.eq.s32.totalorder %s29, 0
      %p201 = por %p199, %p200
      %p202 = scmp.ne.s32.totalorder %s190, %s191
      %p203 = scmp.eq.s32.totalorder %s30, 3
      %p204 = por %p202, %p203
      %p206 = scmp.ne.s32.totalorder %s191, %s205
      %p207 = scmp.eq.s32.totalorder %s30, 0
      %p208 = por %p206, %p207
      %s209 = ssub.s32 %s31, %s43
      %s210 = ssub.s32 %s32, %s39
      %s211 = sor.u32 %s209, %s210
      %p212 = scmp.eq.s32.totalorder %s211, 0
      %s214 = sadd.s32 %s213, 1
      %s215 = scalar_select %p212, %s213, %s214
      %p218 = pneg %p212
      %p219 = scmp.eq.s32.totalorder %s24, 3
      %p220 = por %p218, %p219
      %p221 = scmp.ne.s32.totalorder %s213, %s216
      %p222 = scmp.eq.s32.totalorder %s24, 0
      %p223 = por %p221, %p222
      %p224 = scmp.ne.s32.totalorder %s213, %s216
      %p225 = scmp.eq.s32.totalorder %s29, 3
      %p226 = por %p224, %p225
      %p227 = scmp.ne.s32.totalorder %s216, %s217
      %p228 = scmp.eq.s32.totalorder %s29, 0
      %p229 = por %p227, %p228
      %p230 = scmp.ne.s32.totalorder %s216, %s217
      %p231 = scmp.eq.s32.totalorder %s30, 3
      %p232 = por %p230, %p231
      %p234 = scmp.ne.s32.totalorder %s217, %s233
      %p235 = scmp.eq.s32.totalorder %s30, 0
      %p236 = por %p234, %p235
      %p237 = scmp.le.s32.totalorder 1, %s24
      %p238 = scmp.lt.s32.totalorder %s24, 5
      %p239 = pnand %p237, %p238
      %p240 = pneg %p239
      // Predicated region
      $region9: #{tpu_custom_call.1} parent=5 // pred_check
        _
      $region10: #{tpu_custom_call.1} parent=5 // pred_check_branch
        %242 = sbr.rel (%p239) target = $region12
      $region11: #{tpu_custom_call.1} parent=5 // pred_region
        %s243 = ssub.s32 %s24, 1
        // Predicated region
        $region13: #{tpu_custom_call.1} parent=11 // pred_check
          %p244 = pneg %p117
        $region14: #{tpu_custom_call.1} parent=11 // pred_check_branch
          %246 = sbr.rel (%p244) target = $region16
        $region15: #{tpu_custom_call.1} parent=11 // pred_region
          %s248 = ssub.s32 36864, 36864
          %249 = vsyncadd [#allocation7], %s248
          %s250 = sshll.u32 [#allocation8], 4
          %s251 = int_to_ptr.vmem [resolvable:$true] %s250
          %256 = dma.hbm_to_vmem [thread:$0]  %s2, 36864, %s251, [#allocation7], 192, 192, 12
        $region16: #{tpu_custom_call.1} parent=11 // pred_fallthru
          _
        // Predicated region
        $region17: #{tpu_custom_call.1} parent=11 // pred_check
          %p257 = pneg %p138
        $region18: #{tpu_custom_call.1} parent=11 // pred_check_branch
          %259 = sbr.rel (%p257) target = $region20
        $region19: #{tpu_custom_call.1} parent=11 // pred_region
          %s261 = ssub.s32 16, 16
          %262 = vsyncadd [#allocation10], %s261
          %s264 = sshll.u32 [#allocation9], 4
          %s265 = int_to_ptr.vmem [resolvable:$true] %s264
          %267 = dma.hbm_to_vmem [thread:$0]  %s3, 16, %s265, [#allocation10]
        $region20: #{tpu_custom_call.1} parent=11 // pred_fallthru
          _
        // Predicated region
        $region21: #{tpu_custom_call.1} parent=11 // pred_check
          %p268 = pneg %p159
        $region22: #{tpu_custom_call.1} parent=11 // pred_check_branch
          %270 = sbr.rel (%p268) target = $region24
        $region23: #{tpu_custom_call.1} parent=11 // pred_region
          %s272 = ssub.s32 16, 16
          %273 = vsyncadd [#allocation10], %s272
          %s275 = sshll.u32 [#allocation11], 4
          %s276 = int_to_ptr.vmem [resolvable:$true] %s275
          %278 = dma.hbm_to_vmem [thread:$0]  %s4, 16, %s276, [#allocation10]
        $region24: #{tpu_custom_call.1} parent=11 // pred_fallthru
          _
        // Predicated region
        $region25: #{tpu_custom_call.1} parent=11 // pred_check
          %p279 = pneg %p180
        $region26: #{tpu_custom_call.1} parent=11 // pred_check_branch
          %281 = sbr.rel (%p279) target = $region28
        $region27: #{tpu_custom_call.1} parent=11 // pred_region
          %s283 = ssub.s32 128, 128
          %284 = vsyncadd [#allocation13], %s283
          %s285 = sshll.u32 [#allocation12], 4
          %s286 = int_to_ptr.vmem [resolvable:$true] %s285
          %291 = dma.hbm_to_vmem [thread:$0]  %s5, 128, %s286, [#allocation13], 64, 64, 4
        $region28: #{tpu_custom_call.1} parent=11 // pred_fallthru
          _
        // Predicated region
        $region29: #{tpu_custom_call.1} parent=11 // pred_check
          %p292 = pneg %p201
        $region30: #{tpu_custom_call.1} parent=11 // pred_check_branch
          %294 = sbr.rel (%p292) target = $region32
        $region31: #{tpu_custom_call.1} parent=11 // pred_region
          _
        $region32: #{tpu_custom_call.1} parent=11 // pred_fallthru
          _
      $region12: #{tpu_custom_call.1} parent=5 // pred_fallthru
        _
      %p295 = scmp.lt.s32.totalorder %s24, 4
      // Predicated region
      $region33: #{tpu_custom_call.1} parent=5 // pred_check
        %p296 = pneg %p295
      $region34: #{tpu_custom_call.1} parent=5 // pred_check_branch
        %298 = sbr.rel (%p296) target = $region36
      $region35: #{tpu_custom_call.1} parent=5 // pred_region
        // Predicated region
        $region37: #{tpu_custom_call.1} parent=35 // pred_check
          %p299 = pneg %p58
        $region38: #{tpu_custom_call.1} parent=35 // pred_check_branch
          %301 = sbr.rel (%p299) target = $region40
        $region39: #{tpu_custom_call.1} parent=35 // pred_region
          %s302 = sand.u32 %s48, 1
          %s303 = scalar_lea.sflag [#allocation4], %s302
          %s304 = sand.u32 %s48, 1
          %s305 = smul.addr %s304, 512
          %s306 = scalar_lea.vmem [#allocation3], %s305
          %s307 = smul.u32 32, %s32
          %s308 = ssub.s32 72, %s307
          %p309 = scmp.lt.s32.totalorder %s308, 32
          %s310 = scalar_select %p309, %s308, 32
          %s311 = smul.u32 64, %s310
          %s312 = smul.u32 %s311, 4
          %s314 = ssub.s32 8192, %s312
          %315 = vsyncadd %s303, %s314
          %p316 = scmp.ne.s32.totalorder 0, %s312
          %s317 = smul.addr %s307, 4
          %s318 = smul.addr %s31, 288
          %s319 = sadd.s32 %s317, %s318
          %s320 = smul.addr %s319, 64
          %s321 = scalar_lea.hbm %s0, %s320
          %s322 = smul.u32 16, %s310
          %s323 = sshll.u32 %s306, 4
          %s324 = int_to_ptr.vmem [resolvable:$true] %s323
          %s325 = sshll.u32 %s322, 4
          %329 = dma.hbm_to_vmem [thread:$0]  (%p316), %s321, %s325, %s324, %s303, 256, 256, 16
        $region40: #{tpu_custom_call.1} parent=35 // pred_fallthru
          _
        // Predicated region
        $region41: #{tpu_custom_call.1} parent=35 // pred_check
          %p330 = pneg %p90
        $region42: #{tpu_custom_call.1} parent=35 // pred_check_branch
          %332 = sbr.rel (%p330) target = $region44
        $region43: #{tpu_custom_call.1} parent=35 // pred_region
          %s333 = sand.u32 %s24, 1
          %s334 = scalar_lea.sflag [#allocation7], %s333
          %s335 = sand.u32 %s80, 1
          %s336 = smul.addr %s335, 128
          %s337 = scalar_lea.vmem [#allocation6], %s336
          %s338 = sadd.s32 %s32, 1
          %s339 = smul.u32 %s338, 4
          %s340 = smul.u32 8, %s339
          %s342 = ssub.s32 2048, 2048
          %343 = vsyncadd %s334, %s342
          %s344 = smul.addr %s340, 4
          %s345 = smul.addr %s31, 288
          %s346 = sadd.s32 %s344, %s345
          %s347 = smul.addr %s346, 64
          %s348 = scalar_lea.hbm %s1, %s347
          %s349 = sshll.u32 %s337, 4
          %s350 = int_to_ptr.vmem [resolvable:$true] %s349
          %355 = dma.hbm_to_vmem [thread:$0]  %s348, 2048, %s350, %s334, 256, 256, 16
        $region44: #{tpu_custom_call.1} parent=35 // pred_fallthru
          _
      $region36: #{tpu_custom_call.1} parent=5 // pred_fallthru
        _
      %p356 = scmp.le.s32.totalorder 1, %s24
      %p357 = scmp.lt.s32.totalorder %s24, 5
      %p358 = pnand %p356, %p357
      %p359 = pneg %p358
      // Predicated region
      $region45: #{tpu_custom_call.1} parent=5 // pred_check
        _
      $region46: #{tpu_custom_call.1} parent=5 // pred_check_branch
        %361 = sbr.rel (%p358) target = $region48
      $region47: #{tpu_custom_call.1} parent=5 // pred_region
        %s362 = ssub.s32 %s24, 1
        %s363 = sand.u32 %s51, 1
        %s364 = scalar_lea.sflag [#allocation4], %s363
        %s365 = sand.u32 %s51, 1
        %s366 = smul.addr %s365, 512
        %s367 = scalar_lea.vmem [#allocation3], %s366
        // Predicated region
        $region49: #{tpu_custom_call.1} parent=47 // pred_check
          %p368 = pneg %p64
        $region50: #{tpu_custom_call.1} parent=47 // pred_check_branch
          %370 = sbr.rel (%p368) target = $region52
        $region51: #{tpu_custom_call.1} parent=47 // pred_region
          %371 = dma.done %s364, 8192
        $region52: #{tpu_custom_call.1} parent=47 // pred_fallthru
          _
        %s372 = sand.u32 %s29, 1
        %s373 = scalar_lea.sflag [#allocation7], %s372
        %s374 = sand.u32 %s83, 1
        %s375 = smul.addr %s374, 128
        %s376 = scalar_lea.vmem [#allocation6], %s375
        // Predicated region
        $region53: #{tpu_custom_call.1} parent=47 // pred_check
          %p377 = pneg %p96
        $region54: #{tpu_custom_call.1} parent=47 // pred_check_branch
          %379 = sbr.rel (%p377) target = $region56
        $region55: #{tpu_custom_call.1} parent=47 // pred_region
          %380 = dma.done %s373, 2048
        $region56: #{tpu_custom_call.1} parent=47 // pred_fallthru
          _
        // Predicated region
        $region57: #{tpu_custom_call.1} parent=47 // pred_check
          %p381 = pneg %p117
        $region58: #{tpu_custom_call.1} parent=47 // pred_check_branch
          %383 = sbr.rel (%p381) target = $region60
        $region59: #{tpu_custom_call.1} parent=47 // pred_region
          %384 = dma.done [#allocation7], 36864
        $region60: #{tpu_custom_call.1} parent=47 // pred_fallthru
          _
        // Predicated region
        $region61: #{tpu_custom_call.1} parent=47 // pred_check
          %p385 = pneg %p138
        $region62: #{tpu_custom_call.1} parent=47 // pred_check_branch
          %387 = sbr.rel (%p385) target = $region64
        $region63: #{tpu_custom_call.1} parent=47 // pred_region
          %388 = dma.done [#allocation10], 16
        $region64: #{tpu_custom_call.1} parent=47 // pred_fallthru
          _
        // Predicated region
        $region65: #{tpu_custom_call.1} parent=47 // pred_check
          %p389 = pneg %p159
        $region66: #{tpu_custom_call.1} parent=47 // pred_check_branch
          %391 = sbr.rel (%p389) target = $region68
        $region67: #{tpu_custom_call.1} parent=47 // pred_region
          %392 = dma.done [#allocation10], 16
        $region68: #{tpu_custom_call.1} parent=47 // pred_fallthru
          _
        // Predicated region
        $region69: #{tpu_custom_call.1} parent=47 // pred_check
          %p393 = pneg %p180
        $region70: #{tpu_custom_call.1} parent=47 // pred_check_branch
          %395 = sbr.rel (%p393) target = $region72
        $region71: #{tpu_custom_call.1} parent=47 // pred_region
          %396 = dma.done [#allocation13], 128
        $region72: #{tpu_custom_call.1} parent=47 // pred_fallthru
          _
        %s397 = sand.u32 %s51, 1
        %s398 = scalar_lea.sflag [#allocation4], %s397
        %s399 = sand.u32 %s51, 1
        %s400 = smul.addr %s399, 512
        %s401 = scalar_lea.vmem [#allocation3], %s400
        %p402 = pneg %p64
        %p403 = pneg %p61
        %s404 = sand.u32 %s29, 1
        %s405 = scalar_lea.sflag [#allocation7], %s404
        %s406 = sand.u32 %s83, 1
        %s407 = smul.addr %s406, 128
        %s408 = scalar_lea.vmem [#allocation6], %s407
        %p409 = pneg %p96
        %p410 = pneg %p93
        %p411 = pneg %p117
        %p412 = pneg %p114
        %p413 = pneg %p138
        %p414 = pneg %p135
        %p415 = pneg %p159
        %p416 = pneg %p156
        %p417 = pneg %p180
        %p418 = pneg %p177
        %p419 = pneg %p201
        %p420 = pneg %p198
        %p421 = pneg %p229
        %p422 = pneg %p226
        %s423 = sand.u32 %s216, 1
        %s424 = scalar_lea.sflag [#allocation5], %s423
        %s425 = sand.u32 %s216, 1
        %s426 = smul.addr %s425, 32
        %s427 = scalar_lea.vmem [#allocation14], %s426
        %s428 = smul.u32 32, %s34
        %s429 = ssub.s32 72, %s428
        %p430 = scmp.lt.s32.totalorder %s429, 32
        %s431 = scalar_select %p430, %s429, 32
        %s432 = smul.u32 64, %s431
        %s433 = smul.u32 %s432, 4
        %s434 = sadd.s32 %s34, 1
        %s435 = smul.u32 %s434, 4
        %s436 = smul.u32 8, %s435
        %s437 = smul.u32 2, %s34
        %v439 = vld [vmem:[%s367] sm:$0xff]
        %v440 = vld [vmem:[%s367 + $0x8] sm:$0xff]
        %v441 = vld [vmem:[%s367 + $0x10] sm:$0xff]
        %v442 = vld [vmem:[%s367 + $0x18] sm:$0xff]
        %v443 = vld [vmem:[%s367 + $0x20] sm:$0xff]
        %v444 = vld [vmem:[%s367 + $0x28] sm:$0xff]
        %v445 = vld [vmem:[%s367 + $0x30] sm:$0xff]
        %v446 = vld [vmem:[%s367 + $0x38] sm:$0xff]
        %v447 = vld [vmem:[%s367 + $0x40] sm:$0xff]
        %v448 = vld [vmem:[%s367 + $0x48] sm:$0xff]
        %v449 = vld [vmem:[%s367 + $0x50] sm:$0xff]
        %v450 = vld [vmem:[%s367 + $0x58] sm:$0xff]
        %v451 = vld [vmem:[%s367 + $0x60] sm:$0xff]
        %v452 = vld [vmem:[%s367 + $0x68] sm:$0xff]
        %v453 = vld [vmem:[%s367 + $0x70] sm:$0xff]
        %v454 = vld [vmem:[%s367 + $0x78] sm:$0xff]
        %v455 = vld [vmem:[%s367 + $0x80] sm:$0xff]
        %v456 = vld [vmem:[%s367 + $0x88] sm:$0xff]
        %v457 = vld [vmem:[%s367 + $0x90] sm:$0xff]
        %v458 = vld [vmem:[%s367 + $0x98] sm:$0xff]
        %v459 = vld [vmem:[%s367 + $0xa0] sm:$0xff]
        %v460 = vld [vmem:[%s367 + $0xa8] sm:$0xff]
        %v461 = vld [vmem:[%s367 + $0xb0] sm:$0xff]
        %v462 = vld [vmem:[%s367 + $0xb8] sm:$0xff]
        %v463 = vld [vmem:[%s367 + $0xc0] sm:$0xff]
        %v464 = vld [vmem:[%s367 + $0xc8] sm:$0xff]
        %v465 = vld [vmem:[%s367 + $0xd0] sm:$0xff]
        %v466 = vld [vmem:[%s367 + $0xd8] sm:$0xff]
        %v467 = vld [vmem:[%s367 + $0xe0] sm:$0xff]
        %v468 = vld [vmem:[%s367 + $0xe8] sm:$0xff]
        %v469 = vld [vmem:[%s367 + $0xf0] sm:$0xff]
        %v470 = vld [vmem:[%s367 + $0xf8] sm:$0xff]
        %v471 = vld [vmem:[%s367 + $0x100] sm:$0xff]
        %v472 = vld [vmem:[%s367 + $0x108] sm:$0xff]
        %v473 = vld [vmem:[%s367 + $0x110] sm:$0xff]
        %v474 = vld [vmem:[%s367 + $0x118] sm:$0xff]
        %v475 = vld [vmem:[%s367 + $0x120] sm:$0xff]
        %v476 = vld [vmem:[%s367 + $0x128] sm:$0xff]
        %v477 = vld [vmem:[%s367 + $0x130] sm:$0xff]
        %v478 = vld [vmem:[%s367 + $0x138] sm:$0xff]
        %v479 = vld [vmem:[%s367 + $0x140] sm:$0xff]
        %v480 = vld [vmem:[%s367 + $0x148] sm:$0xff]
        %v481 = vld [vmem:[%s367 + $0x150] sm:$0xff]
        %v482 = vld [vmem:[%s367 + $0x158] sm:$0xff]
        %v483 = vld [vmem:[%s367 + $0x160] sm:$0xff]
        %v484 = vld [vmem:[%s367 + $0x168] sm:$0xff]
        %v485 = vld [vmem:[%s367 + $0x170] sm:$0xff]
        %v486 = vld [vmem:[%s367 + $0x178] sm:$0xff]
        %v487 = vld [vmem:[%s367 + $0x180] sm:$0xff]
        %v488 = vld [vmem:[%s367 + $0x188] sm:$0xff]
        %v489 = vld [vmem:[%s367 + $0x190] sm:$0xff]
        %v490 = vld [vmem:[%s367 + $0x198] sm:$0xff]
        %v491 = vld [vmem:[%s367 + $0x1a0] sm:$0xff]
        %v492 = vld [vmem:[%s367 + $0x1a8] sm:$0xff]
        %v493 = vld [vmem:[%s367 + $0x1b0] sm:$0xff]
        %v494 = vld [vmem:[%s367 + $0x1b8] sm:$0xff]
        %v495 = vld [vmem:[%s367 + $0x1c0] sm:$0xff]
        %v496 = vld [vmem:[%s367 + $0x1c8] sm:$0xff]
        %v497 = vld [vmem:[%s367 + $0x1d0] sm:$0xff]
        %v498 = vld [vmem:[%s367 + $0x1d8] sm:$0xff]
        %v499 = vld [vmem:[%s367 + $0x1e0] sm:$0xff]
        %v500 = vld [vmem:[%s367 + $0x1e8] sm:$0xff]
        %v501 = vld [vmem:[%s367 + $0x1f0] sm:$0xff]
        %v502 = vld [vmem:[%s367 + $0x1f8] sm:$0xff]
        %v567 = vunpack.c.l.b16 %v439
        %v568 = vunpack.c.h.b16 %v439
        %v569 = vunpack.c.l.b16 %v440
        %v570 = vunpack.c.h.b16 %v440
        %v571 = vunpack.c.l.b16 %v441
        %v572 = vunpack.c.h.b16 %v441
        %v573 = vunpack.c.l.b16 %v442
        %v574 = vunpack.c.h.b16 %v442
        %v575 = vunpack.c.l.b16 %v443
        %v576 = vunpack.c.h.b16 %v443
        %v577 = vunpack.c.l.b16 %v444
        %v578 = vunpack.c.h.b16 %v444
        %v579 = vunpack.c.l.b16 %v445
        %v580 = vunpack.c.h.b16 %v445
        %v581 = vunpack.c.l.b16 %v446
        %v582 = vunpack.c.h.b16 %v446
        %v583 = vunpack.c.l.b16 %v447
        %v584 = vunpack.c.h.b16 %v447
        %v585 = vunpack.c.l.b16 %v448
        %v586 = vunpack.c.h.b16 %v448
        %v587 = vunpack.c.l.b16 %v449
        %v588 = vunpack.c.h.b16 %v449
        %v589 = vunpack.c.l.b16 %v450
        %v590 = vunpack.c.h.b16 %v450
        %v591 = vunpack.c.l.b16 %v451
        %v592 = vunpack.c.h.b16 %v451
        %v593 = vunpack.c.l.b16 %v452
        %v594 = vunpack.c.h.b16 %v452
        %v595 = vunpack.c.l.b16 %v453
        %v596 = vunpack.c.h.b16 %v453
        %v597 = vunpack.c.l.b16 %v454
        %v598 = vunpack.c.h.b16 %v454
        %v599 = vunpack.c.l.b16 %v455
        %v600 = vunpack.c.h.b16 %v455
        %v601 = vunpack.c.l.b16 %v456
        %v602 = vunpack.c.h.b16 %v456
        %v603 = vunpack.c.l.b16 %v457
        %v604 = vunpack.c.h.b16 %v457
        %v605 = vunpack.c.l.b16 %v458
        %v606 = vunpack.c.h.b16 %v458
        %v607 = vunpack.c.l.b16 %v459
        %v608 = vunpack.c.h.b16 %v459
        %v609 = vunpack.c.l.b16 %v460
        %v610 = vunpack.c.h.b16 %v460
        %v611 = vunpack.c.l.b16 %v461
        %v612 = vunpack.c.h.b16 %v461
        %v613 = vunpack.c.l.b16 %v462
        %v614 = vunpack.c.h.b16 %v462
        %v615 = vunpack.c.l.b16 %v463
        %v616 = vunpack.c.h.b16 %v463
        %v617 = vunpack.c.l.b16 %v464
        %v618 = vunpack.c.h.b16 %v464
        %v619 = vunpack.c.l.b16 %v465
        %v620 = vunpack.c.h.b16 %v465
        %v621 = vunpack.c.l.b16 %v466
        %v622 = vunpack.c.h.b16 %v466
        %v623 = vunpack.c.l.b16 %v467
        %v624 = vunpack.c.h.b16 %v467
        %v625 = vunpack.c.l.b16 %v468
        %v626 = vunpack.c.h.b16 %v468
        %v627 = vunpack.c.l.b16 %v469
        %v628 = vunpack.c.h.b16 %v469
        %v629 = vunpack.c.l.b16 %v470
        %v630 = vunpack.c.h.b16 %v470
        %v631 = vunpack.c.l.b16 %v471
        %v632 = vunpack.c.h.b16 %v471
        %v633 = vunpack.c.l.b16 %v472
        %v634 = vunpack.c.h.b16 %v472
        %v635 = vunpack.c.l.b16 %v473
        %v636 = vunpack.c.h.b16 %v473
        %v637 = vunpack.c.l.b16 %v474
        %v638 = vunpack.c.h.b16 %v474
        %v639 = vunpack.c.l.b16 %v475
        %v640 = vunpack.c.h.b16 %v475
        %v641 = vunpack.c.l.b16 %v476
        %v642 = vunpack.c.h.b16 %v476
        %v643 = vunpack.c.l.b16 %v477
        %v644 = vunpack.c.h.b16 %v477
        %v645 = vunpack.c.l.b16 %v478
        %v646 = vunpack.c.h.b16 %v478
        %v647 = vunpack.c.l.b16 %v479
        %v648 = vunpack.c.h.b16 %v479
        %v649 = vunpack.c.l.b16 %v480
        %v650 = vunpack.c.h.b16 %v480
        %v651 = vunpack.c.l.b16 %v481
        %v652 = vunpack.c.h.b16 %v481
        %v653 = vunpack.c.l.b16 %v482
        %v654 = vunpack.c.h.b16 %v482
        %v655 = vunpack.c.l.b16 %v483
        %v656 = vunpack.c.h.b16 %v483
        %v657 = vunpack.c.l.b16 %v484
        %v658 = vunpack.c.h.b16 %v484
        %v659 = vunpack.c.l.b16 %v485
        %v660 = vunpack.c.h.b16 %v485
        %v661 = vunpack.c.l.b16 %v486
        %v662 = vunpack.c.h.b16 %v486
        %v663 = vunpack.c.l.b16 %v487
        %v664 = vunpack.c.h.b16 %v487
        %v665 = vunpack.c.l.b16 %v488
        %v666 = vunpack.c.h.b16 %v488
        %v667 = vunpack.c.l.b16 %v489
        %v668 = vunpack.c.h.b16 %v489
        %v669 = vunpack.c.l.b16 %v490
        %v670 = vunpack.c.h.b16 %v490
        %v671 = vunpack.c.l.b16 %v491
        %v672 = vunpack.c.h.b16 %v491
        %v673 = vunpack.c.l.b16 %v492
        %v674 = vunpack.c.h.b16 %v492
        %v675 = vunpack.c.l.b16 %v493
        %v676 = vunpack.c.h.b16 %v493
        %v677 = vunpack.c.l.b16 %v494
        %v678 = vunpack.c.h.b16 %v494
        %v679 = vunpack.c.l.b16 %v495
        %v680 = vunpack.c.h.b16 %v495
        %v681 = vunpack.c.l.b16 %v496
        %v682 = vunpack.c.h.b16 %v496
        %v683 = vunpack.c.l.b16 %v497
        %v684 = vunpack.c.h.b16 %v497
        %v685 = vunpack.c.l.b16 %v498
        %v686 = vunpack.c.h.b16 %v498
        %v687 = vunpack.c.l.b16 %v499
        %v688 = vunpack.c.h.b16 %v499
        %v689 = vunpack.c.l.b16 %v500
        %v690 = vunpack.c.h.b16 %v500
        %v691 = vunpack.c.l.b16 %v501
        %v692 = vunpack.c.h.b16 %v501
        %v693 = vunpack.c.l.b16 %v502
        %v694 = vunpack.c.h.b16 %v502
        %v695 = vpack.c.b16 %v571, %v567
        %v696 = vpack.c.b16 %v572, %v568
        %v697 = vpack.c.b16 %v573, %v569
        %v698 = vpack.c.b16 %v574, %v570
        %v699 = vpack.c.b16 %v579, %v575
        %v700 = vpack.c.b16 %v580, %v576
        %v701 = vpack.c.b16 %v581, %v577
        %v702 = vpack.c.b16 %v582, %v578
        %v703 = vpack.c.b16 %v587, %v583
        %v704 = vpack.c.b16 %v588, %v584
        %v705 = vpack.c.b16 %v589, %v585
        %v706 = vpack.c.b16 %v590, %v586
        %v707 = vpack.c.b16 %v595, %v591
        %v708 = vpack.c.b16 %v596, %v592
        %v709 = vpack.c.b16 %v597, %v593
        %v710 = vpack.c.b16 %v598, %v594
        %v711 = vpack.c.b16 %v603, %v599
        %v712 = vpack.c.b16 %v604, %v600
        %v713 = vpack.c.b16 %v605, %v601
        %v714 = vpack.c.b16 %v606, %v602
        %v715 = vpack.c.b16 %v611, %v607
        %v716 = vpack.c.b16 %v612, %v608
        %v717 = vpack.c.b16 %v613, %v609
        %v718 = vpack.c.b16 %v614, %v610
        %v719 = vpack.c.b16 %v619, %v615
        %v720 = vpack.c.b16 %v620, %v616
        %v721 = vpack.c.b16 %v621, %v617
        %v722 = vpack.c.b16 %v622, %v618
        %v723 = vpack.c.b16 %v627, %v623
        %v724 = vpack.c.b16 %v628, %v624
        %v725 = vpack.c.b16 %v629, %v625
        %v726 = vpack.c.b16 %v630, %v626
        %v727 = vpack.c.b16 %v635, %v631
        %v728 = vpack.c.b16 %v636, %v632
        %v729 = vpack.c.b16 %v637, %v633
        %v730 = vpack.c.b16 %v638, %v634
        %v731 = vpack.c.b16 %v643, %v639
        %v732 = vpack.c.b16 %v644, %v640
        %v733 = vpack.c.b16 %v645, %v641
        %v734 = vpack.c.b16 %v646, %v642
        %v735 = vpack.c.b16 %v651, %v647
        %v736 = vpack.c.b16 %v652, %v648
        %v737 = vpack.c.b16 %v653, %v649
        %v738 = vpack.c.b16 %v654, %v650
        %v739 = vpack.c.b16 %v659, %v655
        %v740 = vpack.c.b16 %v660, %v656
        %v741 = vpack.c.b16 %v661, %v657
        %v742 = vpack.c.b16 %v662, %v658
        %v743 = vpack.c.b16 %v667, %v663
        %v744 = vpack.c.b16 %v668, %v664
        %v745 = vpack.c.b16 %v669, %v665
        %v746 = vpack.c.b16 %v670, %v666
        %v747 = vpack.c.b16 %v675, %v671
        %v748 = vpack.c.b16 %v676, %v672
        %v749 = vpack.c.b16 %v677, %v673
        %v750 = vpack.c.b16 %v678, %v674
        %v751 = vpack.c.b16 %v683, %v679
        %v752 = vpack.c.b16 %v684, %v680
        %v753 = vpack.c.b16 %v685, %v681
        %v754 = vpack.c.b16 %v686, %v682
        %v755 = vpack.c.b16 %v691, %v687
        %v756 = vpack.c.b16 %v692, %v688
        %v757 = vpack.c.b16 %v693, %v689
        %v758 = vpack.c.b16 %v694, %v690
        %823 = vst [vmem:[#allocation2] sm:$0xff] %v695
        %824 = vst [vmem:[#allocation2 + $0x8] sm:$0xff] %v696
        %825 = vst [vmem:[#allocation2 + $0x10] sm:$0xff] %v697
        %826 = vst [vmem:[#allocation2 + $0x18] sm:$0xff] %v698
        %827 = vst [vmem:[#allocation2 + $0x20] sm:$0xff] %v699
        %828 = vst [vmem:[#allocation2 + $0x28] sm:$0xff] %v700
        %829 = vst [vmem:[#allocation2 + $0x30] sm:$0xff] %v701
        %830 = vst [vmem:[#allocation2 + $0x38] sm:$0xff] %v702
        %831 = vst [vmem:[#allocation2 + $0x40] sm:$0xff] %v703
        %832 = vst [vmem:[#allocation2 + $0x48] sm:$0xff] %v704
        %833 = vst [vmem:[#allocation2 + $0x50] sm:$0xff] %v705
        %834 = vst [vmem:[#allocation2 + $0x58] sm:$0xff] %v706
        %835 = vst [vmem:[#allocation2 + $0x60] sm:$0xff] %v707
        %836 = vst [vmem:[#allocation2 + $0x68] sm:$0xff] %v708
        %837 = vst [vmem:[#allocation2 + $0x70] sm:$0xff] %v709
        %838 = vst [vmem:[#allocation2 + $0x78] sm:$0xff] %v710
        %839 = vst [vmem:[#allocation2 + $0x80] sm:$0xff] %v711
        %840 = vst [vmem:[#allocation2 + $0x88] sm:$0xff] %v712
        %841 = vst [vmem:[#allocation2 + $0x90] sm:$0xff] %v713
        %842 = vst [vmem:[#allocation2 + $0x98] sm:$0xff] %v714
        %843 = vst [vmem:[#allocation2 + $0xa0] sm:$0xff] %v715
        %844 = vst [vmem:[#allocation2 + $0xa8] sm:$0xff] %v716
        %845 = vst [vmem:[#allocation2 + $0xb0] sm:$0xff] %v717
        %846 = vst [vmem:[#allocation2 + $0xb8] sm:$0xff] %v718
        %847 = vst [vmem:[#allocation2 + $0xc0] sm:$0xff] %v719
        %848 = vst [vmem:[#allocation2 + $0xc8] sm:$0xff] %v720
        %849 = vst [vmem:[#allocation2 + $0xd0] sm:$0xff] %v721
        %850 = vst [vmem:[#allocation2 + $0xd8] sm:$0xff] %v722
        %851 = vst [vmem:[#allocation2 + $0xe0] sm:$0xff] %v723
        %852 = vst [vmem:[#allocation2 + $0xe8] sm:$0xff] %v724
        %853 = vst [vmem:[#allocation2 + $0xf0] sm:$0xff] %v725
        %854 = vst [vmem:[#allocation2 + $0xf8] sm:$0xff] %v726
        %855 = vst [vmem:[#allocation2 + $0x100] sm:$0xff] %v727
        %856 = vst [vmem:[#allocation2 + $0x108] sm:$0xff] %v728
        %857 = vst [vmem:[#allocation2 + $0x110] sm:$0xff] %v729
        %858 = vst [vmem:[#allocation2 + $0x118] sm:$0xff] %v730
        %859 = vst [vmem:[#allocation2 + $0x120] sm:$0xff] %v731
        %860 = vst [vmem:[#allocation2 + $0x128] sm:$0xff] %v732
        %861 = vst [vmem:[#allocation2 + $0x130] sm:$0xff] %v733
        %862 = vst [vmem:[#allocation2 + $0x138] sm:$0xff] %v734
        %863 = vst [vmem:[#allocation2 + $0x140] sm:$0xff] %v735
        %864 = vst [vmem:[#allocation2 + $0x148] sm:$0xff] %v736
        %865 = vst [vmem:[#allocation2 + $0x150] sm:$0xff] %v737
        %866 = vst [vmem:[#allocation2 + $0x158] sm:$0xff] %v738
        %867 = vst [vmem:[#allocation2 + $0x160] sm:$0xff] %v739
        %868 = vst [vmem:[#allocation2 + $0x168] sm:$0xff] %v740
        %869 = vst [vmem:[#allocation2 + $0x170] sm:$0xff] %v741
        %870 = vst [vmem:[#allocation2 + $0x178] sm:$0xff] %v742
        %871 = vst [vmem:[#allocation2 + $0x180] sm:$0xff] %v743
        %872 = vst [vmem:[#allocation2 + $0x188] sm:$0xff] %v744
        %873 = vst [vmem:[#allocation2 + $0x190] sm:$0xff] %v745
        %874 = vst [vmem:[#allocation2 + $0x198] sm:$0xff] %v746
        %875 = vst [vmem:[#allocation2 + $0x1a0] sm:$0xff] %v747
        %876 = vst [vmem:[#allocation2 + $0x1a8] sm:$0xff] %v748
        %877 = vst [vmem:[#allocation2 + $0x1b0] sm:$0xff] %v749
        %878 = vst [vmem:[#allocation2 + $0x1b8] sm:$0xff] %v750
        %879 = vst [vmem:[#allocation2 + $0x1c0] sm:$0xff] %v751
        %880 = vst [vmem:[#allocation2 + $0x1c8] sm:$0xff] %v752
        %881 = vst [vmem:[#allocation2 + $0x1d0] sm:$0xff] %v753
        %882 = vst [vmem:[#allocation2 + $0x1d8] sm:$0xff] %v754
        %883 = vst [vmem:[#allocation2 + $0x1e0] sm:$0xff] %v755
        %884 = vst [vmem:[#allocation2 + $0x1e8] sm:$0xff] %v756
        %885 = vst [vmem:[#allocation2 + $0x1f0] sm:$0xff] %v757
        %886 = vst [vmem:[#allocation2 + $0x1f8] sm:$0xff] %v758
        %v887 = vld [vmem:[%s376] sm:$0xff]
        %v888 = vld [vmem:[%s376 + $0x8] sm:$0xff]
        %v889 = vld [vmem:[%s376 + $0x10] sm:$0xff]
        %v890 = vld [vmem:[%s376 + $0x18] sm:$0xff]
        %v891 = vld [vmem:[%s376 + $0x20] sm:$0xff]
        %v892 = vld [vmem:[%s376 + $0x28] sm:$0xff]
        %v893 = vld [vmem:[%s376 + $0x30] sm:$0xff]
        %v894 = vld [vmem:[%s376 + $0x38] sm:$0xff]
        %v895 = vld [vmem:[%s376 + $0x40] sm:$0xff]
        %v896 = vld [vmem:[%s376 + $0x48] sm:$0xff]
        %v897 = vld [vmem:[%s376 + $0x50] sm:$0xff]
        %v898 = vld [vmem:[%s376 + $0x58] sm:$0xff]
        %v899 = vld [vmem:[%s376 + $0x60] sm:$0xff]
        %v900 = vld [vmem:[%s376 + $0x68] sm:$0xff]
        %v901 = vld [vmem:[%s376 + $0x70] sm:$0xff]
        %v902 = vld [vmem:[%s376 + $0x78] sm:$0xff]
        %v919 = vunpack.c.l.b16 %v887
        %v920 = vunpack.c.h.b16 %v887
        %v921 = vunpack.c.l.b16 %v888
        %v922 = vunpack.c.h.b16 %v888
        %v923 = vunpack.c.l.b16 %v889
        %v924 = vunpack.c.h.b16 %v889
        %v925 = vunpack.c.l.b16 %v890
        %v926 = vunpack.c.h.b16 %v890
        %v927 = vunpack.c.l.b16 %v891
        %v928 = vunpack.c.h.b16 %v891
        %v929 = vunpack.c.l.b16 %v892
        %v930 = vunpack.c.h.b16 %v892
        %v931 = vunpack.c.l.b16 %v893
        %v932 = vunpack.c.h.b16 %v893
        %v933 = vunpack.c.l.b16 %v894
        %v934 = vunpack.c.h.b16 %v894
        %v935 = vunpack.c.l.b16 %v895
        %v936 = vunpack.c.h.b16 %v895
        %v937 = vunpack.c.l.b16 %v896
        %v938 = vunpack.c.h.b16 %v896
        %v939 = vunpack.c.l.b16 %v897
        %v940 = vunpack.c.h.b16 %v897
        %v941 = vunpack.c.l.b16 %v898
        %v942 = vunpack.c.h.b16 %v898
        %v943 = vunpack.c.l.b16 %v899
        %v944 = vunpack.c.h.b16 %v899
        %v945 = vunpack.c.l.b16 %v900
        %v946 = vunpack.c.h.b16 %v900
        %v947 = vunpack.c.l.b16 %v901
        %v948 = vunpack.c.h.b16 %v901
        %v949 = vunpack.c.l.b16 %v902
        %v950 = vunpack.c.h.b16 %v902
        %v951 = vpack.c.b16 %v923, %v919
        %v952 = vpack.c.b16 %v924, %v920
        %v953 = vpack.c.b16 %v925, %v921
        %v954 = vpack.c.b16 %v926, %v922
        %v955 = vpack.c.b16 %v931, %v927
        %v956 = vpack.c.b16 %v932, %v928
        %v957 = vpack.c.b16 %v933, %v929
        %v958 = vpack.c.b16 %v934, %v930
        %v959 = vpack.c.b16 %v939, %v935
        %v960 = vpack.c.b16 %v940, %v936
        %v961 = vpack.c.b16 %v941, %v937
        %v962 = vpack.c.b16 %v942, %v938
        %v963 = vpack.c.b16 %v947, %v943
        %v964 = vpack.c.b16 %v948, %v944
        %v965 = vpack.c.b16 %v949, %v945
        %v966 = vpack.c.b16 %v950, %v946
        %983 = vst [vmem:[#allocation2 + $0x200] sm:$0xff] %v951
        %984 = vst [vmem:[#allocation2 + $0x208] sm:$0xff] %v952
        %985 = vst [vmem:[#allocation2 + $0x210] sm:$0xff] %v953
        %986 = vst [vmem:[#allocation2 + $0x218] sm:$0xff] %v954
        %987 = vst [vmem:[#allocation2 + $0x220] sm:$0xff] %v955
        %988 = vst [vmem:[#allocation2 + $0x228] sm:$0xff] %v956
        %989 = vst [vmem:[#allocation2 + $0x230] sm:$0xff] %v957
        %990 = vst [vmem:[#allocation2 + $0x238] sm:$0xff] %v958
        %991 = vst [vmem:[#allocation2 + $0x240] sm:$0xff] %v959
        %992 = vst [vmem:[#allocation2 + $0x248] sm:$0xff] %v960
        %993 = vst [vmem:[#allocation2 + $0x250] sm:$0xff] %v961
        %994 = vst [vmem:[#allocation2 + $0x258] sm:$0xff] %v962
        %995 = vst [vmem:[#allocation2 + $0x260] sm:$0xff] %v963
        %996 = vst [vmem:[#allocation2 + $0x268] sm:$0xff] %v964
        %997 = vst [vmem:[#allocation2 + $0x270] sm:$0xff] %v965
        %998 = vst [vmem:[#allocation2 + $0x278] sm:$0xff] %v966
        %999 = vst [vmem:[#allocation2 + $0x280] sm:$0xff] 0
        %1000 = vst [vmem:[#allocation2 + $0x288] sm:$0xff] 0
        %1001 = vst [vmem:[#allocation2 + $0x290] sm:$0xff] 0
        %1002 = vst [vmem:[#allocation2 + $0x298] sm:$0xff] 0
        %v1003 = vld [vmem:[#allocation2] sm:$0xff]
        %v1004 = vld [vmem:[#allocation2 + $0x8] sm:$0xff]
        %v1005 = vld [vmem:[#allocation2 + $0x10] sm:$0xff]
        %v1006 = vld [vmem:[#allocation2 + $0x18] sm:$0xff]
        %v1007 = vld [vmem:[#allocation2 + $0x20] sm:$0xff]
        %v1008 = vld [vmem:[#allocation2 + $0x28] sm:$0xff]
        %v1009 = vld [vmem:[#allocation2 + $0x30] sm:$0xff]
        %v1010 = vld [vmem:[#allocation2 + $0x38] sm:$0xff]
        %v1011 = vld [vmem:[#allocation2 + $0x40] sm:$0xff]
        %v1012 = vld [vmem:[#allocation2 + $0x48] sm:$0xff]
        %v1013 = vld [vmem:[#allocation2 + $0x50] sm:$0xff]
        %v1014 = vld [vmem:[#allocation2 + $0x58] sm:$0xff]
        %v1015 = vld [vmem:[#allocation2 + $0x60] sm:$0xff]
        %v1016 = vld [vmem:[#allocation2 + $0x68] sm:$0xff]
        %v1017 = vld [vmem:[#allocation2 + $0x70] sm:$0xff]
        %v1018 = vld [vmem:[#allocation2 + $0x78] sm:$0xff]
        %v1019 = vld [vmem:[#allocation2 + $0x80] sm:$0xff]
        %v1020 = vld [vmem:[#allocation2 + $0x88] sm:$0xff]
        %v1021 = vld [vmem:[#allocation2 + $0x90] sm:$0xff]
        %v1022 = vld [vmem:[#allocation2 + $0x98] sm:$0xff]
        %v1023 = vld [vmem:[#allocation2 + $0xa0] sm:$0xff]
        %v1024 = vld [vmem:[#allocation2 + $0xa8] sm:$0xff]
        %v1025 = vld [vmem:[#allocation2 + $0xb0] sm:$0xff]
        %v1026 = vld [vmem:[#allocation2 + $0xb8] sm:$0xff]
        %v1027 = vld [vmem:[#allocation2 + $0xc0] sm:$0xff]
        %v1028 = vld [vmem:[#allocation2 + $0xc8] sm:$0xff]
        %v1029 = vld [vmem:[#allocation2 + $0xd0] sm:$0xff]
        %v1030 = vld [vmem:[#allocation2 + $0xd8] sm:$0xff]
        %v1031 = vld [vmem:[#allocation2 + $0xe0] sm:$0xff]
        %v1032 = vld [vmem:[#allocation2 + $0xe8] sm:$0xff]
        %v1033 = vld [vmem:[#allocation2 + $0xf0] sm:$0xff]
        %v1034 = vld [vmem:[#allocation2 + $0xf8] sm:$0xff]
        %v1035 = vld [vmem:[#allocation2 + $0x100] sm:$0xff]
        %v1036 = vld [vmem:[#allocation2 + $0x108] sm:$0xff]
        %v1037 = vld [vmem:[#allocation2 + $0x110] sm:$0xff]
        %v1038 = vld [vmem:[#allocation2 + $0x118] sm:$0xff]
        %v1039 = vld [vmem:[#allocation2 + $0x120] sm:$0xff]
        %v1040 = vld [vmem:[#allocation2 + $0x128] sm:$0xff]
        %v1041 = vld [vmem:[#allocation2 + $0x130] sm:$0xff]
        %v1042 = vld [vmem:[#allocation2 + $0x138] sm:$0xff]
        %v1043 = vld [vmem:[#allocation2 + $0x140] sm:$0xff]
        %v1044 = vld [vmem:[#allocation2 + $0x148] sm:$0xff]
        %v1045 = vld [vmem:[#allocation2 + $0x150] sm:$0xff]
        %v1046 = vld [vmem:[#allocation2 + $0x158] sm:$0xff]
        %v1047 = vld [vmem:[#allocation2 + $0x160] sm:$0xff]
        %v1048 = vld [vmem:[#allocation2 + $0x168] sm:$0xff]
        %v1049 = vld [vmem:[#allocation2 + $0x170] sm:$0xff]
        %v1050 = vld [vmem:[#allocation2 + $0x178] sm:$0xff]
        %v1051 = vld [vmem:[#allocation2 + $0x180] sm:$0xff]
        %v1052 = vld [vmem:[#allocation2 + $0x188] sm:$0xff]
        %v1053 = vld [vmem:[#allocation2 + $0x190] sm:$0xff]
        %v1054 = vld [vmem:[#allocation2 + $0x198] sm:$0xff]
        %v1055 = vld [vmem:[#allocation2 + $0x1a0] sm:$0xff]
        %v1056 = vld [vmem:[#allocation2 + $0x1a8] sm:$0xff]
        %v1057 = vld [vmem:[#allocation2 + $0x1b0] sm:$0xff]
        %v1058 = vld [vmem:[#allocation2 + $0x1b8] sm:$0xff]
        %v1059 = vld [vmem:[#allocation2 + $0x1c0] sm:$0xff]
        %v1060 = vld [vmem:[#allocation2 + $0x1c8] sm:$0xff]
        %v1061 = vld [vmem:[#allocation2 + $0x1d0] sm:$0xff]
        %v1062 = vld [vmem:[#allocation2 + $0x1d8] sm:$0xff]
        %v1063 = vld [vmem:[#allocation2 + $0x1e0] sm:$0xff]
        %v1064 = vld [vmem:[#allocation2 + $0x1e8] sm:$0xff]
        %v1065 = vld [vmem:[#allocation2 + $0x1f0] sm:$0xff]
        %v1066 = vld [vmem:[#allocation2 + $0x1f8] sm:$0xff]
        %v1067 = vld [vmem:[#allocation2 + $0x200] sm:$0xff]
        %v1068 = vld [vmem:[#allocation2 + $0x208] sm:$0xff]
        %v1069 = vld [vmem:[#allocation2 + $0x210] sm:$0xff]
        %v1070 = vld [vmem:[#allocation2 + $0x218] sm:$0xff]
        %v1071 = vld [vmem:[#allocation8] sm:$0xff]
        %v1072 = vld [vmem:[#allocation8 + $0x8] sm:$0xf]
        %v1073 = vld [vmem:[#allocation8 + $0xc] sm:$0xff]
        %v1074 = vld [vmem:[#allocation8 + $0x14] sm:$0xf]
        %v1075 = vld [vmem:[#allocation8 + $0x18] sm:$0xff]
        %v1076 = vld [vmem:[#allocation8 + $0x20] sm:$0xf]
        %v1077 = vld [vmem:[#allocation8 + $0x24] sm:$0xff]
        %v1078 = vld [vmem:[#allocation8 + $0x2c] sm:$0xf]
        %v1079 = vld [vmem:[#allocation8 + $0x30] sm:$0xff]
        %v1080 = vld [vmem:[#allocation8 + $0x38] sm:$0xf]
        %v1081 = vld [vmem:[#allocation8 + $0x3c] sm:$0xff]
        %v1082 = vld [vmem:[#allocation8 + $0x44] sm:$0xf]
        %v1083 = vld [vmem:[#allocation8 + $0x48] sm:$0xff]
        %v1084 = vld [vmem:[#allocation8 + $0x50] sm:$0xf]
        %v1085 = vld [vmem:[#allocation8 + $0x54] sm:$0xff]
        %v1086 = vld [vmem:[#allocation8 + $0x5c] sm:$0xf]
        %v1087 = vld [vmem:[#allocation8 + $0x60] sm:$0xff]
        %v1088 = vld [vmem:[#allocation8 + $0x68] sm:$0xf]
        %v1089 = vld [vmem:[#allocation8 + $0x6c] sm:$0xff]
        %v1090 = vld [vmem:[#allocation8 + $0x74] sm:$0xf]
        %v1091 = vld [vmem:[#allocation8 + $0x78] sm:$0xff]
        %v1092 = vld [vmem:[#allocation8 + $0x80] sm:$0xf]
        %v1093 = vld [vmem:[#allocation8 + $0x84] sm:$0xff]
        %v1094 = vld [vmem:[#allocation8 + $0x8c] sm:$0xf]
        %v1095 = vld [vmem:[#allocation8 + $0x90] sm:$0xff]
        %v1096 = vld [vmem:[#allocation8 + $0x98] sm:$0xf]
        %v1097 = vld [vmem:[#allocation8 + $0x9c] sm:$0xff]
        %v1098 = vld [vmem:[#allocation8 + $0xa4] sm:$0xf]
        %v1099 = vld [vmem:[#allocation8 + $0xa8] sm:$0xff]
        %v1100 = vld [vmem:[#allocation8 + $0xb0] sm:$0xf]
        %v1101 = vld [vmem:[#allocation8 + $0xb4] sm:$0xff]
        %v1102 = vld [vmem:[#allocation8 + $0xbc] sm:$0xf]
        %v1103 = vld [vmem:[#allocation8 + $0xc0] sm:$0xff]
        %v1104 = vld [vmem:[#allocation8 + $0xc8] sm:$0xf]
        %v1105 = vld [vmem:[#allocation8 + $0xcc] sm:$0xff]
        %v1106 = vld [vmem:[#allocation8 + $0xd4] sm:$0xf]
        %v1107 = vld [vmem:[#allocation8 + $0xd8] sm:$0xff]
        %v1108 = vld [vmem:[#allocation8 + $0xe0] sm:$0xf]
        %v1109 = vld [vmem:[#allocation8 + $0xe4] sm:$0xff]
        %v1110 = vld [vmem:[#allocation8 + $0xec] sm:$0xf]
        %v1111 = vld [vmem:[#allocation8 + $0xf0] sm:$0xff]
        %v1112 = vld [vmem:[#allocation8 + $0xf8] sm:$0xf]
        %v1113 = vld [vmem:[#allocation8 + $0xfc] sm:$0xff]
        %v1114 = vld [vmem:[#allocation8 + $0x104] sm:$0xf]
        %v1115 = vld [vmem:[#allocation8 + $0x108] sm:$0xff]
        %v1116 = vld [vmem:[#allocation8 + $0x110] sm:$0xf]
        %v1117 = vld [vmem:[#allocation8 + $0x114] sm:$0xff]
        %v1118 = vld [vmem:[#allocation8 + $0x11c] sm:$0xf]
        %v1119 = vld [vmem:[#allocation8 + $0x120] sm:$0xff]
        %v1120 = vld [vmem:[#allocation8 + $0x128] sm:$0xf]
        %v1121 = vld [vmem:[#allocation8 + $0x12c] sm:$0xff]
        %v1122 = vld [vmem:[#allocation8 + $0x134] sm:$0xf]
        %v1123 = vld [vmem:[#allocation8 + $0x138] sm:$0xff]
        %v1124 = vld [vmem:[#allocation8 + $0x140] sm:$0xf]
        %v1125 = vld [vmem:[#allocation8 + $0x144] sm:$0xff]
        %v1126 = vld [vmem:[#allocation8 + $0x14c] sm:$0xf]
        %v1127 = vld [vmem:[#allocation8 + $0x150] sm:$0xff]
        %v1128 = vld [vmem:[#allocation8 + $0x158] sm:$0xf]
        %v1129 = vld [vmem:[#allocation8 + $0x15c] sm:$0xff]
        %v1130 = vld [vmem:[#allocation8 + $0x164] sm:$0xf]
        %v1131 = vld [vmem:[#allocation8 + $0x168] sm:$0xff]
        %v1132 = vld [vmem:[#allocation8 + $0x170] sm:$0xf]
        %v1133 = vld [vmem:[#allocation8 + $0x174] sm:$0xff]
        %v1134 = vld [vmem:[#allocation8 + $0x17c] sm:$0xf]
        %v1135 = vld [vmem:[#allocation8 + $0x180] sm:$0xff]
        %v1136 = vld [vmem:[#allocation8 + $0x188] sm:$0xf]
        %v1137 = vld [vmem:[#allocation8 + $0x18c] sm:$0xff]
        %v1138 = vld [vmem:[#allocation8 + $0x194] sm:$0xf]
        %v1139 = vld [vmem:[#allocation8 + $0x198] sm:$0xff]
        %v1140 = vld [vmem:[#allocation8 + $0x1a0] sm:$0xf]
        %v1141 = vld [vmem:[#allocation8 + $0x1a4] sm:$0xff]
        %v1142 = vld [vmem:[#allocation8 + $0x1ac] sm:$0xf]
        %v1143 = vld [vmem:[#allocation8 + $0x1b0] sm:$0xff]
        %v1144 = vld [vmem:[#allocation8 + $0x1b8] sm:$0xf]
        %v1145 = vld [vmem:[#allocation8 + $0x1bc] sm:$0xff]
        %v1146 = vld [vmem:[#allocation8 + $0x1c4] sm:$0xf]
        %v1147 = vld [vmem:[#allocation8 + $0x1c8] sm:$0xff]
        %v1148 = vld [vmem:[#allocation8 + $0x1d0] sm:$0xf]
        %v1149 = vld [vmem:[#allocation8 + $0x1d4] sm:$0xff]
        %v1150 = vld [vmem:[#allocation8 + $0x1dc] sm:$0xf]
        %v1151 = vld [vmem:[#allocation8 + $0x1e0] sm:$0xff]
        %v1152 = vld [vmem:[#allocation8 + $0x1e8] sm:$0xf]
        %v1153 = vld [vmem:[#allocation8 + $0x1ec] sm:$0xff]
        %v1154 = vld [vmem:[#allocation8 + $0x1f4] sm:$0xf]
        %v1155 = vld [vmem:[#allocation8 + $0x1f8] sm:$0xff]
        %v1156 = vld [vmem:[#allocation8 + $0x200] sm:$0xf]
        %v1157 = vld [vmem:[#allocation8 + $0x204] sm:$0xff]
        %v1158 = vld [vmem:[#allocation8 + $0x20c] sm:$0xf]
        %v1159 = vld [vmem:[#allocation8 + $0x210] sm:$0xff]
        %v1160 = vld [vmem:[#allocation8 + $0x218] sm:$0xf]
        %v1161 = vld [vmem:[#allocation8 + $0x21c] sm:$0xff]
        %v1162 = vld [vmem:[#allocation8 + $0x224] sm:$0xf]
        %v1163 = vld [vmem:[#allocation8 + $0x228] sm:$0xff]
        %v1164 = vld [vmem:[#allocation8 + $0x230] sm:$0xf]
        %v1165 = vld [vmem:[#allocation8 + $0x234] sm:$0xff]
        %v1166 = vld [vmem:[#allocation8 + $0x23c] sm:$0xf]
        %v1167 = vld [vmem:[#allocation8 + $0x240] sm:$0xff]
        %v1168 = vld [vmem:[#allocation8 + $0x248] sm:$0xf]
        %v1169 = vld [vmem:[#allocation8 + $0x24c] sm:$0xff]
        %v1170 = vld [vmem:[#allocation8 + $0x254] sm:$0xf]
        %v1171 = vld [vmem:[#allocation8 + $0x258] sm:$0xff]
        %v1172 = vld [vmem:[#allocation8 + $0x260] sm:$0xf]
        %v1173 = vld [vmem:[#allocation8 + $0x264] sm:$0xff]
        %v1174 = vld [vmem:[#allocation8 + $0x26c] sm:$0xf]
        %v1175 = vld [vmem:[#allocation8 + $0x270] sm:$0xff]
        %v1176 = vld [vmem:[#allocation8 + $0x278] sm:$0xf]
        %v1177 = vld [vmem:[#allocation8 + $0x27c] sm:$0xff]
        %v1178 = vld [vmem:[#allocation8 + $0x284] sm:$0xf]
        %v1179 = vld [vmem:[#allocation8 + $0x288] sm:$0xff]
        %v1180 = vld [vmem:[#allocation8 + $0x290] sm:$0xf]
        %v1181 = vld [vmem:[#allocation8 + $0x294] sm:$0xff]
        %v1182 = vld [vmem:[#allocation8 + $0x29c] sm:$0xf]
        %v1183 = vld [vmem:[#allocation8 + $0x2a0] sm:$0xff]
        %v1184 = vld [vmem:[#allocation8 + $0x2a8] sm:$0xf]
        %v1185 = vld [vmem:[#allocation8 + $0x2ac] sm:$0xff]
        %v1186 = vld [vmem:[#allocation8 + $0x2b4] sm:$0xf]
        %v1187 = vld [vmem:[#allocation8 + $0x2b8] sm:$0xff]
        %v1188 = vld [vmem:[#allocation8 + $0x2c0] sm:$0xf]
        %v1189 = vld [vmem:[#allocation8 + $0x2c4] sm:$0xff]
        %v1190 = vld [vmem:[#allocation8 + $0x2cc] sm:$0xf]
        %v1191 = vld [vmem:[#allocation8 + $0x2d0] sm:$0xff]
        %v1192 = vld [vmem:[#allocation8 + $0x2d8] sm:$0xf]
        %v1193 = vld [vmem:[#allocation8 + $0x2dc] sm:$0xff]
        %v1194 = vld [vmem:[#allocation8 + $0x2e4] sm:$0xf]
        %v1195 = vld [vmem:[#allocation8 + $0x2e8] sm:$0xff]
        %v1196 = vld [vmem:[#allocation8 + $0x2f0] sm:$0xf]
        %v1197 = vld [vmem:[#allocation8 + $0x2f4] sm:$0xff]
        %v1198 = vld [vmem:[#allocation8 + $0x2fc] sm:$0xf]
        %v1199 = vld [vmem:[#allocation2 + $0x220] sm:$0xff]
        %v1200 = vld [vmem:[#allocation2 + $0x228] sm:$0xff]
        %v1201 = vld [vmem:[#allocation2 + $0x230] sm:$0xff]
        %v1202 = vld [vmem:[#allocation2 + $0x238] sm:$0xff]
        %v1203 = vld [vmem:[#allocation2 + $0x240] sm:$0xff]
        %v1204 = vld [vmem:[#allocation2 + $0x248] sm:$0xff]
        %v1205 = vld [vmem:[#allocation2 + $0x250] sm:$0xff]
        %v1206 = vld [vmem:[#allocation2 + $0x258] sm:$0xff]
        %s1207 = scalar_lea.vmem [#allocation8], 768
        %v1208 = vld [vmem:[%s1207] sm:$0xff]
        %v1209 = vld [vmem:[%s1207 + $0x8] sm:$0xf]
        %v1210 = vld [vmem:[%s1207 + $0xc] sm:$0xff]
        %v1211 = vld [vmem:[%s1207 + $0x14] sm:$0xf]
        %v1212 = vld [vmem:[%s1207 + $0x18] sm:$0xff]
        %v1213 = vld [vmem:[%s1207 + $0x20] sm:$0xf]
        %v1214 = vld [vmem:[%s1207 + $0x24] sm:$0xff]
        %v1215 = vld [vmem:[%s1207 + $0x2c] sm:$0xf]
        %v1216 = vld [vmem:[%s1207 + $0x30] sm:$0xff]
        %v1217 = vld [vmem:[%s1207 + $0x38] sm:$0xf]
        %v1218 = vld [vmem:[%s1207 + $0x3c] sm:$0xff]
        %v1219 = vld [vmem:[%s1207 + $0x44] sm:$0xf]
        %v1220 = vld [vmem:[%s1207 + $0x48] sm:$0xff]
        %v1221 = vld [vmem:[%s1207 + $0x50] sm:$0xf]
        %v1222 = vld [vmem:[%s1207 + $0x54] sm:$0xff]
        %v1223 = vld [vmem:[%s1207 + $0x5c] sm:$0xf]
        %v1224 = vld [vmem:[%s1207 + $0x60] sm:$0xff]
        %v1225 = vld [vmem:[%s1207 + $0x68] sm:$0xf]
        %v1226 = vld [vmem:[%s1207 + $0x6c] sm:$0xff]
        %v1227 = vld [vmem:[%s1207 + $0x74] sm:$0xf]
        %v1228 = vld [vmem:[%s1207 + $0x78] sm:$0xff]
        %v1229 = vld [vmem:[%s1207 + $0x80] sm:$0xf]
        %v1230 = vld [vmem:[%s1207 + $0x84] sm:$0xff]
        %v1231 = vld [vmem:[%s1207 + $0x8c] sm:$0xf]
        %v1232 = vld [vmem:[%s1207 + $0x90] sm:$0xff]
        %v1233 = vld [vmem:[%s1207 + $0x98] sm:$0xf]
        %v1234 = vld [vmem:[%s1207 + $0x9c] sm:$0xff]
        %v1235 = vld [vmem:[%s1207 + $0xa4] sm:$0xf]
        %v1236 = vld [vmem:[%s1207 + $0xa8] sm:$0xff]
        %v1237 = vld [vmem:[%s1207 + $0xb0] sm:$0xf]
        %v1238 = vld [vmem:[%s1207 + $0xb4] sm:$0xff]
        %v1239 = vld [vmem:[%s1207 + $0xbc] sm:$0xf]
        %v1240 = vld [vmem:[%s1207 + $0xc0] sm:$0xff]
        %v1241 = vld [vmem:[%s1207 + $0xc8] sm:$0xf]
        %v1242 = vld [vmem:[%s1207 + $0xcc] sm:$0xff]
        %v1243 = vld [vmem:[%s1207 + $0xd4] sm:$0xf]
        %v1244 = vld [vmem:[%s1207 + $0xd8] sm:$0xff]
        %v1245 = vld [vmem:[%s1207 + $0xe0] sm:$0xf]
        %v1246 = vld [vmem:[%s1207 + $0xe4] sm:$0xff]
        %v1247 = vld [vmem:[%s1207 + $0xec] sm:$0xf]
        %v1248 = vld [vmem:[%s1207 + $0xf0] sm:$0xff]
        %v1249 = vld [vmem:[%s1207 + $0xf8] sm:$0xf]
        %v1250 = vld [vmem:[%s1207 + $0xfc] sm:$0xff]
        %v1251 = vld [vmem:[%s1207 + $0x104] sm:$0xf]
        %v1252 = vld [vmem:[%s1207 + $0x108] sm:$0xff]
        %v1253 = vld [vmem:[%s1207 + $0x110] sm:$0xf]
        %v1254 = vld [vmem:[%s1207 + $0x114] sm:$0xff]
        %v1255 = vld [vmem:[%s1207 + $0x11c] sm:$0xf]
        %v1256 = vld [vmem:[%s1207 + $0x120] sm:$0xff]
        %v1257 = vld [vmem:[%s1207 + $0x128] sm:$0xf]
        %v1258 = vld [vmem:[%s1207 + $0x12c] sm:$0xff]
        %v1259 = vld [vmem:[%s1207 + $0x134] sm:$0xf]
        %v1260 = vld [vmem:[%s1207 + $0x138] sm:$0xff]
        %v1261 = vld [vmem:[%s1207 + $0x140] sm:$0xf]
        %v1262 = vld [vmem:[%s1207 + $0x144] sm:$0xff]
        %v1263 = vld [vmem:[%s1207 + $0x14c] sm:$0xf]
        %v1264 = vld [vmem:[%s1207 + $0x150] sm:$0xff]
        %v1265 = vld [vmem:[%s1207 + $0x158] sm:$0xf]
        %v1266 = vld [vmem:[%s1207 + $0x15c] sm:$0xff]
        %v1267 = vld [vmem:[%s1207 + $0x164] sm:$0xf]
        %v1268 = vld [vmem:[%s1207 + $0x168] sm:$0xff]
        %v1269 = vld [vmem:[%s1207 + $0x170] sm:$0xf]
        %v1270 = vld [vmem:[%s1207 + $0x174] sm:$0xff]
        %v1271 = vld [vmem:[%s1207 + $0x17c] sm:$0xf]
        %v1272 = vld [vmem:[%s1207 + $0x180] sm:$0xff]
        %v1273 = vld [vmem:[%s1207 + $0x188] sm:$0xf]
        %v1274 = vld [vmem:[%s1207 + $0x18c] sm:$0xff]
        %v1275 = vld [vmem:[%s1207 + $0x194] sm:$0xf]
        %v1276 = vld [vmem:[%s1207 + $0x198] sm:$0xff]
        %v1277 = vld [vmem:[%s1207 + $0x1a0] sm:$0xf]
        %v1278 = vld [vmem:[%s1207 + $0x1a4] sm:$0xff]
        %v1279 = vld [vmem:[%s1207 + $0x1ac] sm:$0xf]
        %v1280 = vld [vmem:[%s1207 + $0x1b0] sm:$0xff]
        %v1281 = vld [vmem:[%s1207 + $0x1b8] sm:$0xf]
        %v1282 = vld [vmem:[%s1207 + $0x1bc] sm:$0xff]
        %v1283 = vld [vmem:[%s1207 + $0x1c4] sm:$0xf]
        %v1284 = vld [vmem:[%s1207 + $0x1c8] sm:$0xff]
        %v1285 = vld [vmem:[%s1207 + $0x1d0] sm:$0xf]
        %v1286 = vld [vmem:[%s1207 + $0x1d4] sm:$0xff]
        %v1287 = vld [vmem:[%s1207 + $0x1dc] sm:$0xf]
        %v1288 = vld [vmem:[%s1207 + $0x1e0] sm:$0xff]
        %v1289 = vld [vmem:[%s1207 + $0x1e8] sm:$0xf]
        %v1290 = vld [vmem:[%s1207 + $0x1ec] sm:$0xff]
        %v1291 = vld [vmem:[%s1207 + $0x1f4] sm:$0xf]
        %v1292 = vld [vmem:[%s1207 + $0x1f8] sm:$0xff]
        %v1293 = vld [vmem:[%s1207 + $0x200] sm:$0xf]
        %v1294 = vld [vmem:[%s1207 + $0x204] sm:$0xff]
        %v1295 = vld [vmem:[%s1207 + $0x20c] sm:$0xf]
        %v1296 = vld [vmem:[%s1207 + $0x210] sm:$0xff]
        %v1297 = vld [vmem:[%s1207 + $0x218] sm:$0xf]
        %v1298 = vld [vmem:[%s1207 + $0x21c] sm:$0xff]
        %v1299 = vld [vmem:[%s1207 + $0x224] sm:$0xf]
        %v1300 = vld [vmem:[%s1207 + $0x228] sm:$0xff]
        %v1301 = vld [vmem:[%s1207 + $0x230] sm:$0xf]
        %v1302 = vld [vmem:[%s1207 + $0x234] sm:$0xff]
        %v1303 = vld [vmem:[%s1207 + $0x23c] sm:$0xf]
        %v1304 = vld [vmem:[%s1207 + $0x240] sm:$0xff]
        %v1305 = vld [vmem:[%s1207 + $0x248] sm:$0xf]
        %v1306 = vld [vmem:[%s1207 + $0x24c] sm:$0xff]
        %v1307 = vld [vmem:[%s1207 + $0x254] sm:$0xf]
        %v1308 = vld [vmem:[%s1207 + $0x258] sm:$0xff]
        %v1309 = vld [vmem:[%s1207 + $0x260] sm:$0xf]
        %v1310 = vld [vmem:[%s1207 + $0x264] sm:$0xff]
        %v1311 = vld [vmem:[%s1207 + $0x26c] sm:$0xf]
        %v1312 = vld [vmem:[%s1207 + $0x270] sm:$0xff]
        %v1313 = vld [vmem:[%s1207 + $0x278] sm:$0xf]
        %v1314 = vld [vmem:[%s1207 + $0x27c] sm:$0xff]
        %v1315 = vld [vmem:[%s1207 + $0x284] sm:$0xf]
        %v1316 = vld [vmem:[%s1207 + $0x288] sm:$0xff]
        %v1317 = vld [vmem:[%s1207 + $0x290] sm:$0xf]
        %v1318 = vld [vmem:[%s1207 + $0x294] sm:$0xff]
        %v1319 = vld [vmem:[%s1207 + $0x29c] sm:$0xf]
        %v1320 = vld [vmem:[%s1207 + $0x2a0] sm:$0xff]
        %v1321 = vld [vmem:[%s1207 + $0x2a8] sm:$0xf]
        %v1322 = vld [vmem:[%s1207 + $0x2ac] sm:$0xff]
        %v1323 = vld [vmem:[%s1207 + $0x2b4] sm:$0xf]
        %v1324 = vld [vmem:[%s1207 + $0x2b8] sm:$0xff]
        %v1325 = vld [vmem:[%s1207 + $0x2c0] sm:$0xf]
        %v1326 = vld [vmem:[%s1207 + $0x2c4] sm:$0xff]
        %v1327 = vld [vmem:[%s1207 + $0x2cc] sm:$0xf]
        %v1328 = vld [vmem:[%s1207 + $0x2d0] sm:$0xff]
        %v1329 = vld [vmem:[%s1207 + $0x2d8] sm:$0xf]
        %v1330 = vld [vmem:[%s1207 + $0x2dc] sm:$0xff]
        %v1331 = vld [vmem:[%s1207 + $0x2e4] sm:$0xf]
        %v1332 = vld [vmem:[%s1207 + $0x2e8] sm:$0xff]
        %v1333 = vld [vmem:[%s1207 + $0x2f0] sm:$0xf]
        %v1334 = vld [vmem:[%s1207 + $0x2f4] sm:$0xff]
        %v1335 = vld [vmem:[%s1207 + $0x2fc] sm:$0xf]
        %v1464 = vunpack.c.l.b16 %v1208
        %v1465 = vunpack.c.h.b16 %v1208
        %v1466 = vunpack.c.l.b16 %v1209
        %v1467 = vunpack.c.l.b16 %v1210
        %v1468 = vunpack.c.h.b16 %v1210
        %v1469 = vunpack.c.l.b16 %v1211
        %v1470 = vunpack.c.l.b16 %v1212
        %v1471 = vunpack.c.h.b16 %v1212
        %v1472 = vunpack.c.l.b16 %v1213
        %v1473 = vunpack.c.l.b16 %v1214
        %v1474 = vunpack.c.h.b16 %v1214
        %v1475 = vunpack.c.l.b16 %v1215
        %v1476 = vunpack.c.l.b16 %v1216
        %v1477 = vunpack.c.h.b16 %v1216
        %v1478 = vunpack.c.l.b16 %v1217
        %v1479 = vunpack.c.l.b16 %v1218
        %v1480 = vunpack.c.h.b16 %v1218
        %v1481 = vunpack.c.l.b16 %v1219
        %v1482 = vunpack.c.l.b16 %v1220
        %v1483 = vunpack.c.h.b16 %v1220
        %v1484 = vunpack.c.l.b16 %v1221
        %v1485 = vunpack.c.l.b16 %v1222
        %v1486 = vunpack.c.h.b16 %v1222
        %v1487 = vunpack.c.l.b16 %v1223
        %v1488 = vunpack.c.l.b16 %v1224
        %v1489 = vunpack.c.h.b16 %v1224
        %v1490 = vunpack.c.l.b16 %v1225
        %v1491 = vunpack.c.l.b16 %v1226
        %v1492 = vunpack.c.h.b16 %v1226
        %v1493 = vunpack.c.l.b16 %v1227
        %v1494 = vunpack.c.l.b16 %v1228
        %v1495 = vunpack.c.h.b16 %v1228
        %v1496 = vunpack.c.l.b16 %v1229
        %v1497 = vunpack.c.l.b16 %v1230
        %v1498 = vunpack.c.h.b16 %v1230
        %v1499 = vunpack.c.l.b16 %v1231
        %v1500 = vunpack.c.l.b16 %v1232
        %v1501 = vunpack.c.h.b16 %v1232
        %v1502 = vunpack.c.l.b16 %v1233
        %v1503 = vunpack.c.l.b16 %v1234
        %v1504 = vunpack.c.h.b16 %v1234
        %v1505 = vunpack.c.l.b16 %v1235
        %v1506 = vunpack.c.l.b16 %v1236
        %v1507 = vunpack.c.h.b16 %v1236
        %v1508 = vunpack.c.l.b16 %v1237
        %v1509 = vunpack.c.l.b16 %v1238
        %v1510 = vunpack.c.h.b16 %v1238
        %v1511 = vunpack.c.l.b16 %v1239
        %v1512 = vunpack.c.l.b16 %v1240
        %v1513 = vunpack.c.h.b16 %v1240
        %v1514 = vunpack.c.l.b16 %v1241
        %v1515 = vunpack.c.l.b16 %v1242
        %v1516 = vunpack.c.h.b16 %v1242
        %v1517 = vunpack.c.l.b16 %v1243
        %v1518 = vunpack.c.l.b16 %v1244
        %v1519 = vunpack.c.h.b16 %v1244
        %v1520 = vunpack.c.l.b16 %v1245
        %v1521 = vunpack.c.l.b16 %v1246
        %v1522 = vunpack.c.h.b16 %v1246
        %v1523 = vunpack.c.l.b16 %v1247
        %v1524 = vunpack.c.l.b16 %v1248
        %v1525 = vunpack.c.h.b16 %v1248
        %v1526 = vunpack.c.l.b16 %v1249
        %v1527 = vunpack.c.l.b16 %v1250
        %v1528 = vunpack.c.h.b16 %v1250
        %v1529 = vunpack.c.l.b16 %v1251
        %v1530 = vunpack.c.l.b16 %v1252
        %v1531 = vunpack.c.h.b16 %v1252
        %v1532 = vunpack.c.l.b16 %v1253
        %v1533 = vunpack.c.l.b16 %v1254
        %v1534 = vunpack.c.h.b16 %v1254
        %v1535 = vunpack.c.l.b16 %v1255
        %v1536 = vunpack.c.l.b16 %v1256
        %v1537 = vunpack.c.h.b16 %v1256
        %v1538 = vunpack.c.l.b16 %v1257
        %v1539 = vunpack.c.l.b16 %v1258
        %v1540 = vunpack.c.h.b16 %v1258
        %v1541 = vunpack.c.l.b16 %v1259
        %v1542 = vunpack.c.l.b16 %v1260
        %v1543 = vunpack.c.h.b16 %v1260
        %v1544 = vunpack.c.l.b16 %v1261
        %v1545 = vunpack.c.l.b16 %v1262
        %v1546 = vunpack.c.h.b16 %v1262
        %v1547 = vunpack.c.l.b16 %v1263
        %v1548 = vunpack.c.l.b16 %v1264
        %v1549 = vunpack.c.h.b16 %v1264
        %v1550 = vunpack.c.l.b16 %v1265
        %v1551 = vunpack.c.l.b16 %v1266
        %v1552 = vunpack.c.h.b16 %v1266
        %v1553 = vunpack.c.l.b16 %v1267
        %v1554 = vunpack.c.l.b16 %v1268
        %v1555 = vunpack.c.h.b16 %v1268
        %v1556 = vunpack.c.l.b16 %v1269
        %v1557 = vunpack.c.l.b16 %v1270
        %v1558 = vunpack.c.h.b16 %v1270
        %v1559 = vunpack.c.l.b16 %v1271
        %v1560 = vunpack.c.l.b16 %v1272
        %v1561 = vunpack.c.h.b16 %v1272
        %v1562 = vunpack.c.l.b16 %v1273
        %v1563 = vunpack.c.l.b16 %v1274
        %v1564 = vunpack.c.h.b16 %v1274
        %v1565 = vunpack.c.l.b16 %v1275
        %v1566 = vunpack.c.l.b16 %v1276
        %v1567 = vunpack.c.h.b16 %v1276
        %v1568 = vunpack.c.l.b16 %v1277
        %v1569 = vunpack.c.l.b16 %v1278
        %v1570 = vunpack.c.h.b16 %v1278
        %v1571 = vunpack.c.l.b16 %v1279
        %v1572 = vunpack.c.l.b16 %v1280
        %v1573 = vunpack.c.h.b16 %v1280
        %v1574 = vunpack.c.l.b16 %v1281
        %v1575 = vunpack.c.l.b16 %v1282
        %v1576 = vunpack.c.h.b16 %v1282
        %v1577 = vunpack.c.l.b16 %v1283
        %v1578 = vunpack.c.l.b16 %v1284
        %v1579 = vunpack.c.h.b16 %v1284
        %v1580 = vunpack.c.l.b16 %v1285
        %v1581 = vunpack.c.l.b16 %v1286
        %v1582 = vunpack.c.h.b16 %v1286
        %v1583 = vunpack.c.l.b16 %v1287
        %v1584 = vunpack.c.l.b16 %v1288
        %v1585 = vunpack.c.h.b16 %v1288
        %v1586 = vunpack.c.l.b16 %v1289
        %v1587 = vunpack.c.l.b16 %v1290
        %v1588 = vunpack.c.h.b16 %v1290
        %v1589 = vunpack.c.l.b16 %v1291
        %v1590 = vunpack.c.l.b16 %v1292
        %v1591 = vunpack.c.h.b16 %v1292
        %v1592 = vunpack.c.l.b16 %v1293
        %v1593 = vunpack.c.l.b16 %v1294
        %v1594 = vunpack.c.h.b16 %v1294
        %v1595 = vunpack.c.l.b16 %v1295
        %v1596 = vunpack.c.l.b16 %v1296
        %v1597 = vunpack.c.h.b16 %v1296
        %v1598 = vunpack.c.l.b16 %v1297
        %v1599 = vunpack.c.l.b16 %v1298
        %v1600 = vunpack.c.h.b16 %v1298
        %v1601 = vunpack.c.l.b16 %v1299
        %v1602 = vunpack.c.l.b16 %v1300
        %v1603 = vunpack.c.h.b16 %v1300
        %v1604 = vunpack.c.l.b16 %v1301
        %v1605 = vunpack.c.l.b16 %v1302
        %v1606 = vunpack.c.h.b16 %v1302
        %v1607 = vunpack.c.l.b16 %v1303
        %v1608 = vunpack.c.l.b16 %v1304
        %v1609 = vunpack.c.h.b16 %v1304
        %v1610 = vunpack.c.l.b16 %v1305
        %v1611 = vunpack.c.l.b16 %v1306
        %v1612 = vunpack.c.h.b16 %v1306
        %v1613 = vunpack.c.l.b16 %v1307
        %v1614 = vunpack.c.l.b16 %v1308
        %v1615 = vunpack.c.h.b16 %v1308
        %v1616 = vunpack.c.l.b16 %v1309
        %v1617 = vunpack.c.l.b16 %v1310
        %v1618 = vunpack.c.h.b16 %v1310
        %v1619 = vunpack.c.l.b16 %v1311
        %v1620 = vunpack.c.l.b16 %v1312
        %v1621 = vunpack.c.h.b16 %v1312
        %v1622 = vunpack.c.l.b16 %v1313
        %v1623 = vunpack.c.l.b16 %v1314
        %v1624 = vunpack.c.h.b16 %v1314
        %v1625 = vunpack.c.l.b16 %v1315
        %v1626 = vunpack.c.l.b16 %v1316
        %v1627 = vunpack.c.h.b16 %v1316
        %v1628 = vunpack.c.l.b16 %v1317
        %v1629 = vunpack.c.l.b16 %v1318
        %v1630 = vunpack.c.h.b16 %v1318
        %v1631 = vunpack.c.l.b16 %v1319
        %v1632 = vunpack.c.l.b16 %v1320
        %v1633 = vunpack.c.h.b16 %v1320
        %v1634 = vunpack.c.l.b16 %v1321
        %v1635 = vunpack.c.l.b16 %v1322
        %v1636 = vunpack.c.h.b16 %v1322
        %v1637 = vunpack.c.l.b16 %v1323
        %v1638 = vunpack.c.l.b16 %v1324
        %v1639 = vunpack.c.h.b16 %v1324
        %v1640 = vunpack.c.l.b16 %v1325
        %v1641 = vunpack.c.l.b16 %v1326
        %v1642 = vunpack.c.h.b16 %v1326
        %v1643 = vunpack.c.l.b16 %v1327
        %v1644 = vunpack.c.l.b16 %v1328
        %v1645 = vunpack.c.h.b16 %v1328
        %v1646 = vunpack.c.l.b16 %v1329
        %v1647 = vunpack.c.l.b16 %v1330
        %v1648 = vunpack.c.h.b16 %v1330
        %v1649 = vunpack.c.l.b16 %v1331
        %v1650 = vunpack.c.l.b16 %v1332
        %v1651 = vunpack.c.h.b16 %v1332
        %v1652 = vunpack.c.l.b16 %v1333
        %v1653 = vunpack.c.l.b16 %v1334
        %v1654 = vunpack.c.h.b16 %v1334
        %v1655 = vunpack.c.l.b16 %v1335
        %v1656 = vpack.c.b16 %v1467, %v1464
        %v1657 = vpack.c.b16 %v1468, %v1465
        %v1658 = vpack.c.b16 %v1469, %v1466
        %v1659 = vpack.c.b16 %v1473, %v1470
        %v1660 = vpack.c.b16 %v1474, %v1471
        %v1661 = vpack.c.b16 %v1475, %v1472
        %v1662 = vpack.c.b16 %v1479, %v1476
        %v1663 = vpack.c.b16 %v1480, %v1477
        %v1664 = vpack.c.b16 %v1481, %v1478
        %v1665 = vpack.c.b16 %v1485, %v1482
        %v1666 = vpack.c.b16 %v1486, %v1483
        %v1667 = vpack.c.b16 %v1487, %v1484
        %v1668 = vpack.c.b16 %v1491, %v1488
        %v1669 = vpack.c.b16 %v1492, %v1489
        %v1670 = vpack.c.b16 %v1493, %v1490
        %v1671 = vpack.c.b16 %v1497, %v1494
        %v1672 = vpack.c.b16 %v1498, %v1495
        %v1673 = vpack.c.b16 %v1499, %v1496
        %v1674 = vpack.c.b16 %v1503, %v1500
        %v1675 = vpack.c.b16 %v1504, %v1501
        %v1676 = vpack.c.b16 %v1505, %v1502
        %v1677 = vpack.c.b16 %v1509, %v1506
        %v1678 = vpack.c.b16 %v1510, %v1507
        %v1679 = vpack.c.b16 %v1511, %v1508
        %v1680 = vpack.c.b16 %v1515, %v1512
        %v1681 = vpack.c.b16 %v1516, %v1513
        %v1682 = vpack.c.b16 %v1517, %v1514
        %v1683 = vpack.c.b16 %v1521, %v1518
        %v1684 = vpack.c.b16 %v1522, %v1519
        %v1685 = vpack.c.b16 %v1523, %v1520
        %v1686 = vpack.c.b16 %v1527, %v1524
        %v1687 = vpack.c.b16 %v1528, %v1525
        %v1688 = vpack.c.b16 %v1529, %v1526
        %v1689 = vpack.c.b16 %v1533, %v1530
        %v1690 = vpack.c.b16 %v1534, %v1531
        %v1691 = vpack.c.b16 %v1535, %v1532
        %v1692 = vpack.c.b16 %v1539, %v1536
        %v1693 = vpack.c.b16 %v1540, %v1537
        %v1694 = vpack.c.b16 %v1541, %v1538
        %v1695 = vpack.c.b16 %v1545, %v1542
        %v1696 = vpack.c.b16 %v1546, %v1543
        %v1697 = vpack.c.b16 %v1547, %v1544
        %v1698 = vpack.c.b16 %v1551, %v1548
        %v1699 = vpack.c.b16 %v1552, %v1549
        %v1700 = vpack.c.b16 %v1553, %v1550
        %v1701 = vpack.c.b16 %v1557, %v1554
        %v1702 = vpack.c.b16 %v1558, %v1555
        %v1703 = vpack.c.b16 %v1559, %v1556
        %v1704 = vpack.c.b16 %v1563, %v1560
        %v1705 = vpack.c.b16 %v1564, %v1561
        %v1706 = vpack.c.b16 %v1565, %v1562
        %v1707 = vpack.c.b16 %v1569, %v1566
        %v1708 = vpack.c.b16 %v1570, %v1567
        %v1709 = vpack.c.b16 %v1571, %v1568
        %v1710 = vpack.c.b16 %v1575, %v1572
        %v1711 = vpack.c.b16 %v1576, %v1573
        %v1712 = vpack.c.b16 %v1577, %v1574
        %v1713 = vpack.c.b16 %v1581, %v1578
        %v1714 = vpack.c.b16 %v1582, %v1579
        %v1715 = vpack.c.b16 %v1583, %v1580
        %v1716 = vpack.c.b16 %v1587, %v1584
        %v1717 = vpack.c.b16 %v1588, %v1585
        %v1718 = vpack.c.b16 %v1589, %v1586
        %v1719 = vpack.c.b16 %v1593, %v1590
        %v1720 = vpack.c.b16 %v1594, %v1591
        %v1721 = vpack.c.b16 %v1595, %v1592
        %v1722 = vpack.c.b16 %v1599, %v1596
        %v1723 = vpack.c.b16 %v1600, %v1597
        %v1724 = vpack.c.b16 %v1601, %v1598
        %v1725 = vpack.c.b16 %v1605, %v1602
        %v1726 = vpack.c.b16 %v1606, %v1603
        %v1727 = vpack.c.b16 %v1607, %v1604
        %v1728 = vpack.c.b16 %v1611, %v1608
        %v1729 = vpack.c.b16 %v1612, %v1609
        %v1730 = vpack.c.b16 %v1613, %v1610
        %v1731 = vpack.c.b16 %v1617, %v1614
        %v1732 = vpack.c.b16 %v1618, %v1615
        %v1733 = vpack.c.b16 %v1619, %v1616
        %v1734 = vpack.c.b16 %v1623, %v1620
        %v1735 = vpack.c.b16 %v1624, %v1621
        %v1736 = vpack.c.b16 %v1625, %v1622
        %v1737 = vpack.c.b16 %v1629, %v1626
        %v1738 = vpack.c.b16 %v1630, %v1627
        %v1739 = vpack.c.b16 %v1631, %v1628
        %v1740 = vpack.c.b16 %v1635, %v1632
        %v1741 = vpack.c.b16 %v1636, %v1633
        %v1742 = vpack.c.b16 %v1637, %v1634
        %v1743 = vpack.c.b16 %v1641, %v1638
        %v1744 = vpack.c.b16 %v1642, %v1639
        %v1745 = vpack.c.b16 %v1643, %v1640
        %v1746 = vpack.c.b16 %v1647, %v1644
        %v1747 = vpack.c.b16 %v1648, %v1645
        %v1748 = vpack.c.b16 %v1649, %v1646
        %v1749 = vpack.c.b16 %v1653, %v1650
        %v1750 = vpack.c.b16 %v1654, %v1651
        %v1751 = vpack.c.b16 %v1655, %v1652
        %1848 = vmatprep.subr.bf16.mxu0 %v1657
        %1849 = vmatpush1.bf16.msra.mxu0 %v1656
        %1850 = vmatprep.subr.bf16.mxu0 %v1660
        %1851 = vmatpush1.bf16.msra.mxu0 %v1659
        %1852 = vmatprep.subr.bf16.mxu0 %v1663
        %1853 = vmatpush1.bf16.msra.mxu0 %v1662
        %1854 = vmatprep.subr.bf16.mxu0 %v1666
        %1855 = vmatpush1.bf16.msra.mxu0 %v1665
        %1856 = vmatprep.subr.bf16.mxu0 %v1669
        %1857 = vmatpush1.bf16.msra.mxu0 %v1668
        %1858 = vmatprep.subr.bf16.mxu0 %v1672
        %1859 = vmatpush1.bf16.msra.mxu0 %v1671
        %1860 = vmatprep.subr.bf16.mxu0 %v1675
        %1861 = vmatpush1.bf16.msra.mxu0 %v1674
        %1862 = vmatprep.subr.bf16.mxu0 %v1678
        %1863 = vmatpush1.bf16.msra.mxu0 %v1677
        %1864 = vmatprep.subr.bf16.mxu0 %v1681
        %1865 = vmatpush1.bf16.msra.mxu0 %v1680
        %1866 = vmatprep.subr.bf16.mxu0 %v1684
        %1867 = vmatpush1.bf16.msra.mxu0 %v1683
        %1868 = vmatprep.subr.bf16.mxu0 %v1687
        %1869 = vmatpush1.bf16.msra.mxu0 %v1686
        %1870 = vmatprep.subr.bf16.mxu0 %v1690
        %1871 = vmatpush1.bf16.msra.mxu0 %v1689
        %1872 = vmatprep.subr.bf16.mxu0 %v1693
        %1873 = vmatpush1.bf16.msra.mxu0 %v1692
        %1874 = vmatprep.subr.bf16.mxu0 %v1696
        %1875 = vmatpush1.bf16.msra.mxu0 %v1695
        %1876 = vmatprep.subr.bf16.mxu0 %v1699
        %1877 = vmatpush1.bf16.msra.mxu0 %v1698
        %1878 = vmatprep.subr.bf16.mxu0 %v1702
        %1879 = vmatpush1.bf16.msra.mxu0 %v1701
        %1880 = vmatprep.mubr.bf16.mxu0 %v1012
        %1881 = vmatmul.mubr.bf16.gmra.mrb[0].mxu0 %v1011
        %v1882 = vpop.f32.mrb[0].mxu0
        %v1883 = vadd.f32 0.0, %v1882
        %v1884 = vpop.f32.mrb[0].mxu0
        %v1885 = vadd.f32 0.0, %v1884
        %v1886 = vpop.f32.mrb[0].mxu0
        %v1887 = vadd.f32 0.0, %v1886
        %v1888 = vpop.f32.mrb[0].mxu0
        %v1889 = vadd.f32 0.0, %v1888
        %1890 = vmatprep.mubr.bf16.mxu0 %v1016
        %1891 = vmatmul.mubr.bf16.gmra.mrb[0].mxu0 %v1015
        %v1892 = vpop.f32.mrb[0].mxu0
        %v1893 = vadd.f32 0.0, %v1892
        %v1894 = vpop.f32.mrb[0].mxu0
        %v1895 = vadd.f32 0.0, %v1894
        %v1896 = vpop.f32.mrb[0].mxu0
        %v1897 = vadd.f32 0.0, %v1896
        %v1898 = vpop.f32.mrb[0].mxu0
        %v1899 = vadd.f32 0.0, %v1898
        %1900 = vmatprep.mubr.bf16.mxu0 %v1020
        %1901 = vmatmul.mubr.bf16.gmra.mrb[0].mxu0 %v1019
        %v1902 = vpop.f32.mrb[0].mxu0
        %v1903 = vadd.f32 0.0, %v1902
        %v1904 = vpop.f32.mrb[0].mxu0
        %v1905 = vadd.f32 0.0, %v1904
        %v1906 = vpop.f32.mrb[0].mxu0
        %v1907 = vadd.f32 0.0, %v1906
        %v1908 = vpop.f32.mrb[0].mxu0
        %v1909 = vadd.f32 0.0, %v1908
        %1910 = vmatprep.mubr.bf16.mxu0 %v1024
        %1911 = vmatmul.mubr.bf16.gmra.mrb[0].mxu0 %v1023
        %v1912 = vpop.f32.mrb[0].mxu0
        %v1913 = vadd.f32 0.0, %v1912
        %v1914 = vpop.f32.mrb[0].mxu0
        %v1915 = vadd.f32 0.0, %v1914
        %v1916 = vpop.f32.mrb[0].mxu0
        %v1917 = vadd.f32 0.0, %v1916
        %v1918 = vpop.f32.mrb[0].mxu0
        %v1919 = vadd.f32 0.0, %v1918
        %1920 = vmatprep.mubr.bf16.mxu0 %v1028
        %1921 = vmatmul.mubr.bf16.gmra.mrb[0].mxu0 %v1027
        %v1922 = vpop.f32.mrb[0].mxu0
        %v1923 = vadd.f32 0.0, %v1922
        %v1924 = vpop.f32.mrb[0].mxu0
        %v1925 = vadd.f32 0.0, %v1924
        %v1926 = vpop.f32.mrb[0].mxu0
        %v1927 = vadd.f32 0.0, %v1926
        %v1928 = vpop.f32.mrb[0].mxu0
        %v1929 = vadd.f32 0.0, %v1928
        %1930 = vmatprep.mubr.bf16.mxu0 %v1032
        %1931 = vmatmul.mubr.bf16.gmra.mrb[0].mxu0 %v1031
        %v1932 = vpop.f32.mrb[0].mxu0
        %v1933 = vadd.f32 0.0, %v1932
        %v1934 = vpop.f32.mrb[0].mxu0
        %v1935 = vadd.f32 0.0, %v1934
        %v1936 = vpop.f32.mrb[0].mxu0
        %v1937 = vadd.f32 0.0, %v1936
        %v1938 = vpop.f32.mrb[0].mxu0
        %v1939 = vadd.f32 0.0, %v1938
        %1940 = vmatprep.mubr.bf16.mxu0 %v1036
        %1941 = vmatmul.mubr.bf16.gmra.mrb[0].mxu0 %v1035
        %v1942 = vpop.f32.mrb[0].mxu0
        %v1943 = vadd.f32 0.0, %v1942
        %v1944 = vpop.f32.mrb[0].mxu0
        %v1945 = vadd.f32 0.0, %v1944
        %v1946 = vpop.f32.mrb[0].mxu0
        %v1947 = vadd.f32 0.0, %v1946
        %v1948 = vpop.f32.mrb[0].mxu0
        %v1949 = vadd.f32 0.0, %v1948
        %1950 = vmatprep.mubr.bf16.mxu0 %v1040
        %1951 = vmatmul.mubr.bf16.gmra.mrb[0].mxu0 %v1039
        %v1952 = vpop.f32.mrb[0].mxu0
        %v1953 = vadd.f32 0.0, %v1952
        %v1954 = vpop.f32.mrb[0].mxu0
        %v1955 = vadd.f32 0.0, %v1954
        %v1956 = vpop.f32.mrb[0].mxu0
        %v1957 = vadd.f32 0.0, %v1956
        %v1958 = vpop.f32.mrb[0].mxu0
        %v1959 = vadd.f32 0.0, %v1958
        %1960 = vmatprep.mubr.bf16.mxu0 %v1044
        %1961 = vmatmul.mubr.bf16.gmra.mrb[0].mxu0 %v1043
        %v1962 = vpop.f32.mrb[0].mxu0
        %v1963 = vadd.f32 0.0, %v1962
        %v1964 = vpop.f32.mrb[0].mxu0
        %v1965 = vadd.f32 0.0, %v1964
        %v1966 = vpop.f32.mrb[0].mxu0
        %v1967 = vadd.f32 0.0, %v1966
        %v1968 = vpop.f32.mrb[0].mxu0
        %v1969 = vadd.f32 0.0, %v1968
        %1970 = vmatprep.mubr.bf16.mxu0 %v1048
        %1971 = vmatmul.mubr.bf16.gmra.mrb[0].mxu0 %v1047
        %v1972 = vpop.f32.mrb[0].mxu0
        %v1973 = vadd.f32 0.0, %v1972
        %v1974 = vpop.f32.mrb[0].mxu0
        %v1975 = vadd.f32 0.0, %v1974
        %v1976 = vpop.f32.mrb[0].mxu0
        %v1977 = vadd.f32 0.0, %v1976
        %v1978 = vpop.f32.mrb[0].mxu0
        %v1979 = vadd.f32 0.0, %v1978
        %1980 = vmatprep.mubr.bf16.mxu0 %v1052
        %1981 = vmatmul.mubr.bf16.gmra.mrb[0].mxu0 %v1051
        %v1982 = vpop.f32.mrb[0].mxu0
        %v1983 = vadd.f32 0.0, %v1982
        %v1984 = vpop.f32.mrb[0].mxu0
        %v1985 = vadd.f32 0.0, %v1984
        %v1986 = vpop.f32.mrb[0].mxu0
        %v1987 = vadd.f32 0.0, %v1986
        %v1988 = vpop.f32.mrb[0].mxu0
        %v1989 = vadd.f32 0.0, %v1988
        %1990 = vmatprep.mubr.bf16.mxu0 %v1056
        %1991 = vmatmul.mubr.bf16.gmra.mrb[0].mxu0 %v1055
        %v1992 = vpop.f32.mrb[0].mxu0
        %v1993 = vadd.f32 0.0, %v1992
        %v1994 = vpop.f32.mrb[0].mxu0
        %v1995 = vadd.f32 0.0, %v1994
        %v1996 = vpop.f32.mrb[0].mxu0
        %v1997 = vadd.f32 0.0, %v1996
        %v1998 = vpop.f32.mrb[0].mxu0
        %v1999 = vadd.f32 0.0, %v1998
        %2000 = vmatprep.mubr.bf16.mxu0 %v1060
        %2001 = vmatmul.mubr.bf16.gmra.mrb[0].mxu0 %v1059
        %v2002 = vpop.f32.mrb[0].mxu0
        %v2003 = vadd.f32 0.0, %v2002
        %v2004 = vpop.f32.mrb[0].mxu0
        %v2005 = vadd.f32 0.0, %v2004
        %v2006 = vpop.f32.mrb[0].mxu0
        %v2007 = vadd.f32 0.0, %v2006
        %v2008 = vpop.f32.mrb[0].mxu0
        %v2009 = vadd.f32 0.0, %v2008
        %2010 = vmatprep.mubr.bf16.mxu0 %v1064
        %2011 = vmatmul.mubr.bf16.gmra.mrb[0].mxu0 %v1063
        %v2012 = vpop.f32.mrb[0].mxu0
        %v2013 = vadd.f32 0.0, %v2012
        %v2014 = vpop.f32.mrb[0].mxu0
        %v2015 = vadd.f32 0.0, %v2014
        %v2016 = vpop.f32.mrb[0].mxu0
        %v2017 = vadd.f32 0.0, %v2016
        %v2018 = vpop.f32.mrb[0].mxu0
        %v2019 = vadd.f32 0.0, %v2018
        %2020 = vmatprep.mubr.bf16.mxu0 %v1068
        %2021 = vmatmul.mubr.bf16.gmra.mrb[0].mxu0 %v1067
        %v2022 = vpop.f32.mrb[0].mxu0
        %v2023 = vadd.f32 0.0, %v2022
        %v2024 = vpop.f32.mrb[0].mxu0
        %v2025 = vadd.f32 0.0, %v2024
        %v2026 = vpop.f32.mrb[0].mxu0
        %v2027 = vadd.f32 0.0, %v2026
        %v2028 = vpop.f32.mrb[0].mxu0
        %v2029 = vadd.f32 0.0, %v2028
        %2030 = vmatprep.mubr.bf16.mxu0 %v1200
        %2031 = vmatmul.mubr.bf16.gmra.mrb[0].mxu0 %v1199
        %v2032 = vpop.f32.mrb[0].mxu0
        %v2033 = vadd.f32 0.0, %v2032
        %v2034 = vpop.f32.mrb[0].mxu0
        %v2035 = vadd.f32 0.0, %v2034
        %v2036 = vpop.f32.mrb[0].mxu0
        %v2037 = vadd.f32 0.0, %v2036
        %v2038 = vpop.f32.mrb[0].mxu0
        %v2039 = vadd.f32 0.0, %v2038
        %2040 = vmatprep.mubr.bf16.mxu0 %v1204
        %2041 = vmatmul.mubr.bf16.gmra.mrb[0].mxu0 %v1203
        %v2042 = vpop.f32.mrb[0].mxu0
        %v2043 = vpop.f32.mrb[0].mxu0
        %v2044 = vadd.f32 0.0, %v2043
        %v2045 = vpop.f32.mrb[0].mxu0
        %v2046 = vpop.f32.mrb[0].mxu0
        %2047 = vdwg.mxu0
        %2048 = vmatprep.subr.bf16.mxu0 %v1705
        %2049 = vmatpush1.bf16.msra.mxu0 %v1704
        %2050 = vmatprep.subr.bf16.mxu0 %v1708
        %2051 = vmatpush1.bf16.msra.mxu0 %v1707
        %2052 = vmatprep.subr.bf16.mxu0 %v1711
        %2053 = vmatpush1.bf16.msra.mxu0 %v1710
        %2054 = vmatprep.subr.bf16.mxu0 %v1714
        %2055 = vmatpush1.bf16.msra.mxu0 %v1713
        %2056 = vmatprep.subr.bf16.mxu0 %v1717
        %2057 = vmatpush1.bf16.msra.mxu0 %v1716
        %2058 = vmatprep.subr.bf16.mxu0 %v1720
        %2059 = vmatpush1.bf16.msra.mxu0 %v1719
        %2060 = vmatprep.subr.bf16.mxu0 %v1723
        %2061 = vmatpush1.bf16.msra.mxu0 %v1722
        %2062 = vmatprep.subr.bf16.mxu0 %v1726
        %2063 = vmatpush1.bf16.msra.mxu0 %v1725
        %2064 = vmatprep.subr.bf16.mxu0 %v1729
        %2065 = vmatpush1.bf16.msra.mxu0 %v1728
        %2066 = vmatprep.subr.bf16.mxu0 %v1732
        %2067 = vmatpush1.bf16.msra.mxu0 %v1731
        %2068 = vmatprep.subr.bf16.mxu0 %v1735
        %2069 = vmatpush1.bf16.msra.mxu0 %v1734
        %2070 = vmatprep.subr.bf16.mxu0 %v1738
        %2071 = vmatpush1.bf16.msra.mxu0 %v1737
        %2072 = vmatprep.subr.bf16.mxu0 %v1741
        %2073 = vmatpush1.bf16.msra.mxu0 %v1740
        %2074 = vmatprep.subr.bf16.mxu0 %v1744
        %2075 = vmatpush1.bf16.msra.mxu0 %v1743
        %2076 = vmatprep.subr.bf16.mxu0 %v1747
        %2077 = vmatpush1.bf16.msra.mxu0 %v1746
        %2078 = vmatprep.subr.bf16.mxu0 %v1750
        %2079 = vmatpush1.bf16.msra.mxu0 %v1749
        %2080 = vmatprep.mubr.bf16.mxu0 %v1014
        %2081 = vmatmul.mubr.bf16.gmra.mrb[0].mxu0 %v1013
        %v2082 = vpop.f32.mrb[0].mxu0
        %v2083 = vadd.f32 %v1883, %v2082
        %v2084 = vpop.f32.mrb[0].mxu0
        %v2085 = vadd.f32 %v1885, %v2084
        %v2086 = vpop.f32.mrb[0].mxu0
        %v2087 = vadd.f32 %v1887, %v2086
        %v2088 = vpop.f32.mrb[0].mxu0
        %v2089 = vadd.f32 %v1889, %v2088
        %2090 = vmatprep.mubr.bf16.mxu0 %v1018
        %2091 = vmatmul.mubr.bf16.gmra.mrb[0].mxu0 %v1017
        %v2092 = vpop.f32.mrb[0].mxu0
        %v2093 = vadd.f32 %v1893, %v2092
        %v2094 = vpop.f32.mrb[0].mxu0
        %v2095 = vadd.f32 %v1895, %v2094
        %v2096 = vpop.f32.mrb[0].mxu0
        %v2097 = vadd.f32 %v1897, %v2096
        %v2098 = vpop.f32.mrb[0].mxu0
        %v2099 = vadd.f32 %v1899, %v2098
        %2100 = vmatprep.mubr.bf16.mxu0 %v1022
        %2101 = vmatmul.mubr.bf16.gmra.mrb[0].mxu0 %v1021
        %v2102 = vpop.f32.mrb[0].mxu0
        %v2103 = vadd.f32 %v1903, %v2102
        %v2104 = vpop.f32.mrb[0].mxu0
        %v2105 = vadd.f32 %v1905, %v2104
        %v2106 = vpop.f32.mrb[0].mxu0
        %v2107 = vadd.f32 %v1907, %v2106
        %v2108 = vpop.f32.mrb[0].mxu0
        %v2109 = vadd.f32 %v1909, %v2108
        %2110 = vmatprep.mubr.bf16.mxu0 %v1026
        %2111 = vmatmul.mubr.bf16.gmra.mrb[0].mxu0 %v1025
        %v2112 = vpop.f32.mrb[0].mxu0
        %v2113 = vadd.f32 %v1913, %v2112
        %v2114 = vpop.f32.mrb[0].mxu0
        %v2115 = vadd.f32 %v1915, %v2114
        %v2116 = vpop.f32.mrb[0].mxu0
        %v2117 = vadd.f32 %v1917, %v2116
        %v2118 = vpop.f32.mrb[0].mxu0
        %v2119 = vadd.f32 %v1919, %v2118
        %2120 = vmatprep.mubr.bf16.mxu0 %v1030
        %2121 = vmatmul.mubr.bf16.gmra.mrb[0].mxu0 %v1029
        %v2122 = vpop.f32.mrb[0].mxu0
        %v2123 = vadd.f32 %v1923, %v2122
        %v2124 = vpop.f32.mrb[0].mxu0
        %v2125 = vadd.f32 %v1925, %v2124
        %v2126 = vpop.f32.mrb[0].mxu0
        %v2127 = vadd.f32 %v1927, %v2126
        %v2128 = vpop.f32.mrb[0].mxu0
        %v2129 = vadd.f32 %v1929, %v2128
        %2130 = vmatprep.mubr.bf16.mxu0 %v1034
        %2131 = vmatmul.mubr.bf16.gmra.mrb[0].mxu0 %v1033
        %v2132 = vpop.f32.mrb[0].mxu0
        %v2133 = vadd.f32 %v1933, %v2132
        %v2134 = vpop.f32.mrb[0].mxu0
        %v2135 = vadd.f32 %v1935, %v2134
        %v2136 = vpop.f32.mrb[0].mxu0
        %v2137 = vadd.f32 %v1937, %v2136
        %v2138 = vpop.f32.mrb[0].mxu0
        %v2139 = vadd.f32 %v1939, %v2138
        %2140 = vmatprep.mubr.bf16.mxu0 %v1038
        %2141 = vmatmul.mubr.bf16.gmra.mrb[0].mxu0 %v1037
        %v2142 = vpop.f32.mrb[0].mxu0
        %v2143 = vadd.f32 %v1943, %v2142
        %v2144 = vpop.f32.mrb[0].mxu0
        %v2145 = vadd.f32 %v1945, %v2144
        %v2146 = vpop.f32.mrb[0].mxu0
        %v2147 = vadd.f32 %v1947, %v2146
        %v2148 = vpop.f32.mrb[0].mxu0
        %v2149 = vadd.f32 %v1949, %v2148
        %2150 = vmatprep.mubr.bf16.mxu0 %v1042
        %2151 = vmatmul.mubr.bf16.gmra.mrb[0].mxu0 %v1041
        %v2152 = vpop.f32.mrb[0].mxu0
        %v2153 = vadd.f32 %v1953, %v2152
        %v2154 = vpop.f32.mrb[0].mxu0
        %v2155 = vadd.f32 %v1955, %v2154
        %v2156 = vpop.f32.mrb[0].mxu0
        %v2157 = vadd.f32 %v1957, %v2156
        %v2158 = vpop.f32.mrb[0].mxu0
        %v2159 = vadd.f32 %v1959, %v2158
        %2160 = vmatprep.mubr.bf16.mxu0 %v1046
        %2161 = vmatmul.mubr.bf16.gmra.mrb[0].mxu0 %v1045
        %v2162 = vpop.f32.mrb[0].mxu0
        %v2163 = vadd.f32 %v1963, %v2162
        %v2164 = vpop.f32.mrb[0].mxu0
        %v2165 = vadd.f32 %v1965, %v2164
        %v2166 = vpop.f32.mrb[0].mxu0
        %v2167 = vadd.f32 %v1967, %v2166
        %v2168 = vpop.f32.mrb[0].mxu0
        %v2169 = vadd.f32 %v1969, %v2168
        %2170 = vmatprep.mubr.bf16.mxu0 %v1050
        %2171 = vmatmul.mubr.bf16.gmra.mrb[0].mxu0 %v1049
        %v2172 = vpop.f32.mrb[0].mxu0
        %v2173 = vadd.f32 %v1973, %v2172
        %v2174 = vpop.f32.mrb[0].mxu0
        %v2175 = vadd.f32 %v1975, %v2174
        %v2176 = vpop.f32.mrb[0].mxu0
        %v2177 = vadd.f32 %v1977, %v2176
        %v2178 = vpop.f32.mrb[0].mxu0
        %v2179 = vadd.f32 %v1979, %v2178
        %2180 = vmatprep.mubr.bf16.mxu0 %v1054
        %2181 = vmatmul.mubr.bf16.gmra.mrb[0].mxu0 %v1053
        %v2182 = vpop.f32.mrb[0].mxu0
        %v2183 = vadd.f32 %v1983, %v2182
        %v2184 = vpop.f32.mrb[0].mxu0
        %v2185 = vadd.f32 %v1985, %v2184
        %v2186 = vpop.f32.mrb[0].mxu0
        %v2187 = vadd.f32 %v1987, %v2186
        %v2188 = vpop.f32.mrb[0].mxu0
        %v2189 = vadd.f32 %v1989, %v2188
        %2190 = vmatprep.mubr.bf16.mxu0 %v1058
        %2191 = vmatmul.mubr.bf16.gmra.mrb[0].mxu0 %v1057
        %v2192 = vpop.f32.mrb[0].mxu0
        %v2193 = vadd.f32 %v1993, %v2192
        %v2194 = vpop.f32.mrb[0].mxu0
        %v2195 = vadd.f32 %v1995, %v2194
        %v2196 = vpop.f32.mrb[0].mxu0
        %v2197 = vadd.f32 %v1997, %v2196
        %v2198 = vpop.f32.mrb[0].mxu0
        %v2199 = vadd.f32 %v1999, %v2198
        %2200 = vmatprep.mubr.bf16.mxu0 %v1062
        %2201 = vmatmul.mubr.bf16.gmra.mrb[0].mxu0 %v1061
        %v2202 = vpop.f32.mrb[0].mxu0
        %v2203 = vadd.f32 %v2003, %v2202
        %v2204 = vpop.f32.mrb[0].mxu0
        %v2205 = vadd.f32 %v2005, %v2204
        %v2206 = vpop.f32.mrb[0].mxu0
        %v2207 = vadd.f32 %v2007, %v2206
        %v2208 = vpop.f32.mrb[0].mxu0
        %v2209 = vadd.f32 %v2009, %v2208
        %2210 = vmatprep.mubr.bf16.mxu0 %v1066
        %2211 = vmatmul.mubr.bf16.gmra.mrb[0].mxu0 %v1065
        %v2212 = vpop.f32.mrb[0].mxu0
        %v2213 = vadd.f32 %v2013, %v2212
        %v2214 = vpop.f32.mrb[0].mxu0
        %v2215 = vadd.f32 %v2015, %v2214
        %v2216 = vpop.f32.mrb[0].mxu0
        %v2217 = vadd.f32 %v2017, %v2216
        %v2218 = vpop.f32.mrb[0].mxu0
        %v2219 = vadd.f32 %v2019, %v2218
        %2220 = vmatprep.mubr.bf16.mxu0 %v1070
        %2221 = vmatmul.mubr.bf16.gmra.mrb[0].mxu0 %v1069
        %v2222 = vpop.f32.mrb[0].mxu0
        %v2223 = vadd.f32 %v2023, %v2222
        %v2224 = vpop.f32.mrb[0].mxu0
        %v2225 = vadd.f32 %v2025, %v2224
        %v2226 = vpop.f32.mrb[0].mxu0
        %v2227 = vadd.f32 %v2027, %v2226
        %v2228 = vpop.f32.mrb[0].mxu0
        %v2229 = vadd.f32 %v2029, %v2228
        %2230 = vmatprep.mubr.bf16.mxu0 %v1202
        %2231 = vmatmul.mubr.bf16.gmra.mrb[0].mxu0 %v1201
        %v2232 = vpop.f32.mrb[0].mxu0
        %v2233 = vadd.f32 %v2033, %v2232
        %v2234 = vpop.f32.mrb[0].mxu0
        %v2235 = vadd.f32 %v2035, %v2234
        %v2236 = vpop.f32.mrb[0].mxu0
        %v2237 = vadd.f32 %v2037, %v2236
        %v2238 = vpop.f32.mrb[0].mxu0
        %v2239 = vadd.f32 %v2039, %v2238
        %2240 = vmatprep.mubr.bf16.mxu0 %v1206
        %2241 = vmatmul.mubr.bf16.gmra.mrb[0].mxu0 %v1205
        %v2242 = vpop.f32.mrb[0].mxu0
        %v2243 = vpop.f32.mrb[0].mxu0
        %v2244 = vadd.f32 %v2044, %v2243
        %v2245 = vpop.f32.mrb[0].mxu0
        %v2246 = vpop.f32.mrb[0].mxu0
        %2247 = vdwg.mxu0
        %2248 = vmatprep.subr.bf16.mxu0 0
        %2249 = vmatpush1.bf16.msra.mxu0 %v1658
        %2250 = vmatprep.subr.bf16.mxu0 0
        %2251 = vmatpush1.bf16.msra.mxu0 %v1661
        %2252 = vmatprep.subr.bf16.mxu0 0
        %2253 = vmatpush1.bf16.msra.mxu0 %v1664
        %2254 = vmatprep.subr.bf16.mxu0 0
        %2255 = vmatpush1.bf16.msra.mxu0 %v1667
        %2256 = vmatprep.subr.bf16.mxu0 0
        %2257 = vmatpush1.bf16.msra.mxu0 %v1670
        %2258 = vmatprep.subr.bf16.mxu0 0
        %2259 = vmatpush1.bf16.msra.mxu0 %v1673
        %2260 = vmatprep.subr.bf16.mxu0 0
        %2261 = vmatpush1.bf16.msra.mxu0 %v1676
        %2262 = vmatprep.subr.bf16.mxu0 0
        %2263 = vmatpush1.bf16.msra.mxu0 %v1679
        %2264 = vmatprep.subr.bf16.mxu0 0
        %2265 = vmatpush1.bf16.msra.mxu0 %v1682
        %2266 = vmatprep.subr.bf16.mxu0 0
        %2267 = vmatpush1.bf16.msra.mxu0 %v1685
        %2268 = vmatprep.subr.bf16.mxu0 0
        %2269 = vmatpush1.bf16.msra.mxu0 %v1688
        %2270 = vmatprep.subr.bf16.mxu0 0
        %2271 = vmatpush1.bf16.msra.mxu0 %v1691
        %2272 = vmatprep.subr.bf16.mxu0 0
        %2273 = vmatpush1.bf16.msra.mxu0 %v1694
        %2274 = vmatprep.subr.bf16.mxu0 0
        %2275 = vmatpush1.bf16.msra.mxu0 %v1697
        %2276 = vmatprep.subr.bf16.mxu0 0
        %2277 = vmatpush1.bf16.msra.mxu0 %v1700
        %2278 = vmatprep.subr.bf16.mxu0 0
        %2279 = vmatpush1.bf16.msra.mxu0 %v1703
        %2280 = vmatprep.mubr.bf16.mxu0 %v1012
        %2281 = vmatmul.mubr.bf16.gmra.mrb[0].mxu0 %v1011
        %v2282 = vpop.f32.mrb[0].mxu0
        %v2283 = vadd.f32 0.0, %v2282
        %v2284 = vpop.f32.mrb[0].mxu0
        %v2285 = vpop.f32.mrb[0].mxu0
        %v2286 = vadd.f32 0.0, %v2285
        %v2287 = vpop.f32.mrb[0].mxu0
        %2288 = vmatprep.mubr.bf16.mxu0 %v1016
        %2289 = vmatmul.mubr.bf16.gmra.mrb[0].mxu0 %v1015
        %v2290 = vpop.f32.mrb[0].mxu0
        %v2291 = vadd.f32 0.0, %v2290
        %v2292 = vpop.f32.mrb[0].mxu0
        %v2293 = vpop.f32.mrb[0].mxu0
        %v2294 = vadd.f32 0.0, %v2293
        %v2295 = vpop.f32.mrb[0].mxu0
        %2296 = vmatprep.mubr.bf16.mxu0 %v1020
        %2297 = vmatmul.mubr.bf16.gmra.mrb[0].mxu0 %v1019
        %v2298 = vpop.f32.mrb[0].mxu0
        %v2299 = vadd.f32 0.0, %v2298
        %v2300 = vpop.f32.mrb[0].mxu0
        %v2301 = vpop.f32.mrb[0].mxu0
        %v2302 = vadd.f32 0.0, %v2301
        %v2303 = vpop.f32.mrb[0].mxu0
        %2304 = vmatprep.mubr.bf16.mxu0 %v1024
        %2305 = vmatmul.mubr.bf16.gmra.mrb[0].mxu0 %v1023
        %v2306 = vpop.f32.mrb[0].mxu0
        %v2307 = vadd.f32 0.0, %v2306
        %v2308 = vpop.f32.mrb[0].mxu0
        %v2309 = vpop.f32.mrb[0].mxu0
        %v2310 = vadd.f32 0.0, %v2309
        %v2311 = vpop.f32.mrb[0].mxu0
        %2312 = vmatprep.mubr.bf16.mxu0 %v1028
        %2313 = vmatmul.mubr.bf16.gmra.mrb[0].mxu0 %v1027
        %v2314 = vpop.f32.mrb[0].mxu0
        %v2315 = vadd.f32 0.0, %v2314
        %v2316 = vpop.f32.mrb[0].mxu0
        %v2317 = vpop.f32.mrb[0].mxu0
        %v2318 = vadd.f32 0.0, %v2317
        %v2319 = vpop.f32.mrb[0].mxu0
        %2320 = vmatprep.mubr.bf16.mxu0 %v1032
        %2321 = vmatmul.mubr.bf16.gmra.mrb[0].mxu0 %v1031
        %v2322 = vpop.f32.mrb[0].mxu0
        %v2323 = vadd.f32 0.0, %v2322
        %v2324 = vpop.f32.mrb[0].mxu0
        %v2325 = vpop.f32.mrb[0].mxu0
        %v2326 = vadd.f32 0.0, %v2325
        %v2327 = vpop.f32.mrb[0].mxu0
        %2328 = vmatprep.mubr.bf16.mxu0 %v1036
        %2329 = vmatmul.mubr.bf16.gmra.mrb[0].mxu0 %v1035
        %v2330 = vpop.f32.mrb[0].mxu0
        %v2331 = vadd.f32 0.0, %v2330
        %v2332 = vpop.f32.mrb[0].mxu0
        %v2333 = vpop.f32.mrb[0].mxu0
        %v2334 = vadd.f32 0.0, %v2333
        %v2335 = vpop.f32.mrb[0].mxu0
        %2336 = vmatprep.mubr.bf16.mxu0 %v1040
        %2337 = vmatmul.mubr.bf16.gmra.mrb[0].mxu0 %v1039
        %v2338 = vpop.f32.mrb[0].mxu0
        %v2339 = vadd.f32 0.0, %v2338
        %v2340 = vpop.f32.mrb[0].mxu0
        %v2341 = vpop.f32.mrb[0].mxu0
        %v2342 = vadd.f32 0.0, %v2341
        %v2343 = vpop.f32.mrb[0].mxu0
        %2344 = vmatprep.mubr.bf16.mxu0 %v1044
        %2345 = vmatmul.mubr.bf16.gmra.mrb[0].mxu0 %v1043
        %v2346 = vpop.f32.mrb[0].mxu0
        %v2347 = vadd.f32 0.0, %v2346
        %v2348 = vpop.f32.mrb[0].mxu0
        %v2349 = vpop.f32.mrb[0].mxu0
        %v2350 = vadd.f32 0.0, %v2349
        %v2351 = vpop.f32.mrb[0].mxu0
        %2352 = vmatprep.mubr.bf16.mxu0 %v1048
        %2353 = vmatmul.mubr.bf16.gmra.mrb[0].mxu0 %v1047
        %v2354 = vpop.f32.mrb[0].mxu0
        %v2355 = vadd.f32 0.0, %v2354
        %v2356 = vpop.f32.mrb[0].mxu0
        %v2357 = vpop.f32.mrb[0].mxu0
        %v2358 = vadd.f32 0.0, %v2357
        %v2359 = vpop.f32.mrb[0].mxu0
        %2360 = vmatprep.mubr.bf16.mxu0 %v1052
        %2361 = vmatmul.mubr.bf16.gmra.mrb[0].mxu0 %v1051
        %v2362 = vpop.f32.mrb[0].mxu0
        %v2363 = vadd.f32 0.0, %v2362
        %v2364 = vpop.f32.mrb[0].mxu0
        %v2365 = vpop.f32.mrb[0].mxu0
        %v2366 = vadd.f32 0.0, %v2365
        %v2367 = vpop.f32.mrb[0].mxu0
        %2368 = vmatprep.mubr.bf16.mxu0 %v1056
        %2369 = vmatmul.mubr.bf16.gmra.mrb[0].mxu0 %v1055
        %v2370 = vpop.f32.mrb[0].mxu0
        %v2371 = vadd.f32 0.0, %v2370
        %v2372 = vpop.f32.mrb[0].mxu0
        %v2373 = vpop.f32.mrb[0].mxu0
        %v2374 = vadd.f32 0.0, %v2373
        %v2375 = vpop.f32.mrb[0].mxu0
        %2376 = vmatprep.mubr.bf16.mxu0 %v1060
        %2377 = vmatmul.mubr.bf16.gmra.mrb[0].mxu0 %v1059
        %v2378 = vpop.f32.mrb[0].mxu0
        %v2379 = vadd.f32 0.0, %v2378
        %v2380 = vpop.f32.mrb[0].mxu0
        %v2381 = vpop.f32.mrb[0].mxu0
        %v2382 = vadd.f32 0.0, %v2381
        %v2383 = vpop.f32.mrb[0].mxu0
        %2384 = vmatprep.mubr.bf16.mxu0 %v1064
        %2385 = vmatmul.mubr.bf16.gmra.mrb[0].mxu0 %v1063
        %v2386 = vpop.f32.mrb[0].mxu0
        %v2387 = vadd.f32 0.0, %v2386
        %v2388 = vpop.f32.mrb[0].mxu0
        %v2389 = vpop.f32.mrb[0].mxu0
        %v2390 = vadd.f32 0.0, %v2389
        %v2391 = vpop.f32.mrb[0].mxu0
        %2392 = vmatprep.mubr.bf16.mxu0 %v1068
        %2393 = vmatmul.mubr.bf16.gmra.mrb[0].mxu0 %v1067
        %v2394 = vpop.f32.mrb[0].mxu0
        %v2395 = vadd.f32 0.0, %v2394
        %v2396 = vpop.f32.mrb[0].mxu0
        %v2397 = vpop.f32.mrb[0].mxu0
        %v2398 = vadd.f32 0.0, %v2397
        %v2399 = vpop.f32.mrb[0].mxu0
        %2400 = vmatprep.mubr.bf16.mxu0 %v1200
        %2401 = vmatmul.mubr.bf16.gmra.mrb[0].mxu0 %v1199
        %v2402 = vpop.f32.mrb[0].mxu0
        %v2403 = vadd.f32 0.0, %v2402
        %v2404 = vpop.f32.mrb[0].mxu0
        %v2405 = vpop.f32.mrb[0].mxu0
        %v2406 = vadd.f32 0.0, %v2405
        %v2407 = vpop.f32.mrb[0].mxu0
        %2408 = vmatprep.mubr.bf16.mxu0 %v1204
        %2409 = vmatmul.mubr.bf16.gmra.mrb[0].mxu0 %v1203
        %v2410 = vpop.f32.mrb[0].mxu0
        %v2411 = vadd.f32 0.0, %v2410
        %v2412 = vpop.f32.mrb[0].mxu0
        %v2413 = vpop.f32.mrb[0].mxu0
        %v2414 = vpop.f32.mrb[0].mxu0
        %2415 = vdwg.mxu0
        %2416 = vmatprep.subr.bf16.mxu0 0
        %2417 = vmatpush1.bf16.msra.mxu0 %v1706
        %2418 = vmatprep.subr.bf16.mxu0 0
        %2419 = vmatpush1.bf16.msra.mxu0 %v1709
        %2420 = vmatprep.subr.bf16.mxu0 0
        %2421 = vmatpush1.bf16.msra.mxu0 %v1712
        %2422 = vmatprep.subr.bf16.mxu0 0
        %2423 = vmatpush1.bf16.msra.mxu0 %v1715
        %2424 = vmatprep.subr.bf16.mxu0 0
        %2425 = vmatpush1.bf16.msra.mxu0 %v1718
        %2426 = vmatprep.subr.bf16.mxu0 0
        %2427 = vmatpush1.bf16.msra.mxu0 %v1721
        %2428 = vmatprep.subr.bf16.mxu0 0
        %2429 = vmatpush1.bf16.msra.mxu0 %v1724
        %2430 = vmatprep.subr.bf16.mxu0 0
        %2431 = vmatpush1.bf16.msra.mxu0 %v1727
        %2432 = vmatprep.subr.bf16.mxu0 0
        %2433 = vmatpush1.bf16.msra.mxu0 %v1730
        %2434 = vmatprep.subr.bf16.mxu0 0
        %2435 = vmatpush1.bf16.msra.mxu0 %v1733
        %2436 = vmatprep.subr.bf16.mxu0 0
        %2437 = vmatpush1.bf16.msra.mxu0 %v1736
        %2438 = vmatprep.subr.bf16.mxu0 0
        %2439 = vmatpush1.bf16.msra.mxu0 %v1739
        %2440 = vmatprep.subr.bf16.mxu0 0
        %2441 = vmatpush1.bf16.msra.mxu0 %v1742
        %2442 = vmatprep.subr.bf16.mxu0 0
        %2443 = vmatpush1.bf16.msra.mxu0 %v1745
        %2444 = vmatprep.subr.bf16.mxu0 0
        %2445 = vmatpush1.bf16.msra.mxu0 %v1748
        %2446 = vmatprep.subr.bf16.mxu0 0
        %2447 = vmatpush1.bf16.msra.mxu0 %v1751
        %2448 = vmatprep.mubr.bf16.mxu0 %v1014
        %2449 = vmatmul.mubr.bf16.gmra.mrb[0].mxu0 %v1013
        %v2450 = vpop.f32.mrb[0].mxu0
        %v2451 = vadd.f32 %v2283, %v2450
        %v2452 = vpop.f32.mrb[0].mxu0
        %v2453 = vpop.f32.mrb[0].mxu0
        %v2454 = vadd.f32 %v2286, %v2453
        %v2455 = vpop.f32.mrb[0].mxu0
        %2456 = vmatprep.mubr.bf16.mxu0 %v1018
        %2457 = vmatmul.mubr.bf16.gmra.mrb[0].mxu0 %v1017
        %v2458 = vpop.f32.mrb[0].mxu0
        %v2459 = vadd.f32 %v2291, %v2458
        %v2460 = vpop.f32.mrb[0].mxu0
        %v2461 = vpop.f32.mrb[0].mxu0
        %v2462 = vadd.f32 %v2294, %v2461
        %v2463 = vpop.f32.mrb[0].mxu0
        %2464 = vmatprep.mubr.bf16.mxu0 %v1022
        %2465 = vmatmul.mubr.bf16.gmra.mrb[0].mxu0 %v1021
        %v2466 = vpop.f32.mrb[0].mxu0
        %v2467 = vadd.f32 %v2299, %v2466
        %v2468 = vpop.f32.mrb[0].mxu0
        %v2469 = vpop.f32.mrb[0].mxu0
        %v2470 = vadd.f32 %v2302, %v2469
        %v2471 = vpop.f32.mrb[0].mxu0
        %2472 = vmatprep.mubr.bf16.mxu0 %v1026
        %2473 = vmatmul.mubr.bf16.gmra.mrb[0].mxu0 %v1025
        %v2474 = vpop.f32.mrb[0].mxu0
        %v2475 = vadd.f32 %v2307, %v2474
        %v2476 = vpop.f32.mrb[0].mxu0
        %v2477 = vpop.f32.mrb[0].mxu0
        %v2478 = vadd.f32 %v2310, %v2477
        %v2479 = vpop.f32.mrb[0].mxu0
        %2480 = vmatprep.mubr.bf16.mxu0 %v1030
        %2481 = vmatmul.mubr.bf16.gmra.mrb[0].mxu0 %v1029
        %v2482 = vpop.f32.mrb[0].mxu0
        %v2483 = vadd.f32 %v2315, %v2482
        %v2484 = vpop.f32.mrb[0].mxu0
        %v2485 = vpop.f32.mrb[0].mxu0
        %v2486 = vadd.f32 %v2318, %v2485
        %v2487 = vpop.f32.mrb[0].mxu0
        %2488 = vmatprep.mubr.bf16.mxu0 %v1034
        %2489 = vmatmul.mubr.bf16.gmra.mrb[0].mxu0 %v1033
        %v2490 = vpop.f32.mrb[0].mxu0
        %v2491 = vadd.f32 %v2323, %v2490
        %v2492 = vpop.f32.mrb[0].mxu0
        %v2493 = vpop.f32.mrb[0].mxu0
        %v2494 = vadd.f32 %v2326, %v2493
        %v2495 = vpop.f32.mrb[0].mxu0
        %2496 = vmatprep.mubr.bf16.mxu0 %v1038
        %2497 = vmatmul.mubr.bf16.gmra.mrb[0].mxu0 %v1037
        %v2498 = vpop.f32.mrb[0].mxu0
        %v2499 = vadd.f32 %v2331, %v2498
        %v2500 = vpop.f32.mrb[0].mxu0
        %v2501 = vpop.f32.mrb[0].mxu0
        %v2502 = vadd.f32 %v2334, %v2501
        %v2503 = vpop.f32.mrb[0].mxu0
        %2504 = vmatprep.mubr.bf16.mxu0 %v1042
        %2505 = vmatmul.mubr.bf16.gmra.mrb[0].mxu0 %v1041
        %v2506 = vpop.f32.mrb[0].mxu0
        %v2507 = vadd.f32 %v2339, %v2506
        %v2508 = vpop.f32.mrb[0].mxu0
        %v2509 = vpop.f32.mrb[0].mxu0
        %v2510 = vadd.f32 %v2342, %v2509
        %v2511 = vpop.f32.mrb[0].mxu0
        %2512 = vmatprep.mubr.bf16.mxu0 %v1046
        %2513 = vmatmul.mubr.bf16.gmra.mrb[0].mxu0 %v1045
        %v2514 = vpop.f32.mrb[0].mxu0
        %v2515 = vadd.f32 %v2347, %v2514
        %v2516 = vpop.f32.mrb[0].mxu0
        %v2517 = vpop.f32.mrb[0].mxu0
        %v2518 = vadd.f32 %v2350, %v2517
        %v2519 = vpop.f32.mrb[0].mxu0
        %2520 = vmatprep.mubr.bf16.mxu0 %v1050
        %2521 = vmatmul.mubr.bf16.gmra.mrb[0].mxu0 %v1049
        %v2522 = vpop.f32.mrb[0].mxu0
        %v2523 = vadd.f32 %v2355, %v2522
        %v2524 = vpop.f32.mrb[0].mxu0
        %v2525 = vpop.f32.mrb[0].mxu0
        %v2526 = vadd.f32 %v2358, %v2525
        %v2527 = vpop.f32.mrb[0].mxu0
        %2528 = vmatprep.mubr.bf16.mxu0 %v1054
        %2529 = vmatmul.mubr.bf16.gmra.mrb[0].mxu0 %v1053
        %v2530 = vpop.f32.mrb[0].mxu0
        %v2531 = vadd.f32 %v2363, %v2530
        %v2532 = vpop.f32.mrb[0].mxu0
        %v2533 = vpop.f32.mrb[0].mxu0
        %v2534 = vadd.f32 %v2366, %v2533
        %v2535 = vpop.f32.mrb[0].mxu0
        %2536 = vmatprep.mubr.bf16.mxu0 %v1058
        %2537 = vmatmul.mubr.bf16.gmra.mrb[0].mxu0 %v1057
        %v2538 = vpop.f32.mrb[0].mxu0
        %v2539 = vadd.f32 %v2371, %v2538
        %v2540 = vpop.f32.mrb[0].mxu0
        %v2541 = vpop.f32.mrb[0].mxu0
        %v2542 = vadd.f32 %v2374, %v2541
        %v2543 = vpop.f32.mrb[0].mxu0
        %2544 = vmatprep.mubr.bf16.mxu0 %v1062
        %2545 = vmatmul.mubr.bf16.gmra.mrb[0].mxu0 %v1061
        %v2546 = vpop.f32.mrb[0].mxu0
        %v2547 = vadd.f32 %v2379, %v2546
        %v2548 = vpop.f32.mrb[0].mxu0
        %v2549 = vpop.f32.mrb[0].mxu0
        %v2550 = vadd.f32 %v2382, %v2549
        %v2551 = vpop.f32.mrb[0].mxu0
        %2552 = vmatprep.mubr.bf16.mxu0 %v1066
        %2553 = vmatmul.mubr.bf16.gmra.mrb[0].mxu0 %v1065
        %v2554 = vpop.f32.mrb[0].mxu0
        %v2555 = vadd.f32 %v2387, %v2554
        %v2556 = vpop.f32.mrb[0].mxu0
        %v2557 = vpop.f32.mrb[0].mxu0
        %v2558 = vadd.f32 %v2390, %v2557
        %v2559 = vpop.f32.mrb[0].mxu0
        %2560 = vmatprep.mubr.bf16.mxu0 %v1070
        %2561 = vmatmul.mubr.bf16.gmra.mrb[0].mxu0 %v1069
        %v2562 = vpop.f32.mrb[0].mxu0
        %v2563 = vadd.f32 %v2395, %v2562
        %v2564 = vpop.f32.mrb[0].mxu0
        %v2565 = vpop.f32.mrb[0].mxu0
        %v2566 = vadd.f32 %v2398, %v2565
        %v2567 = vpop.f32.mrb[0].mxu0
        %2568 = vmatprep.mubr.bf16.mxu0 %v1202
        %2569 = vmatmul.mubr.bf16.gmra.mrb[0].mxu0 %v1201
        %v2570 = vpop.f32.mrb[0].mxu0
        %v2571 = vadd.f32 %v2403, %v2570
        %v2572 = vpop.f32.mrb[0].mxu0
        %v2573 = vpop.f32.mrb[0].mxu0
        %v2574 = vadd.f32 %v2406, %v2573
        %v2575 = vpop.f32.mrb[0].mxu0
        %2576 = vmatprep.mubr.bf16.mxu0 %v1206
        %2577 = vmatmul.mubr.bf16.gmra.mrb[0].mxu0 %v1205
        %v2578 = vpop.f32.mrb[0].mxu0
        %v2579 = vadd.f32 %v2411, %v2578
        %v2580 = vpop.f32.mrb[0].mxu0
        %v2581 = vpop.f32.mrb[0].mxu0
        %v2582 = vpop.f32.mrb[0].mxu0
        %2583 = vdwg.mxu0
        %v2712 = vunpack.c.l.b16 %v1071
        %v2713 = vunpack.c.h.b16 %v1071
        %v2714 = vunpack.c.l.b16 %v1072
        %v2715 = vunpack.c.l.b16 %v1073
        %v2716 = vunpack.c.h.b16 %v1073
        %v2717 = vunpack.c.l.b16 %v1074
        %v2718 = vunpack.c.l.b16 %v1075
        %v2719 = vunpack.c.h.b16 %v1075
        %v2720 = vunpack.c.l.b16 %v1076
        %v2721 = vunpack.c.l.b16 %v1077
        %v2722 = vunpack.c.h.b16 %v1077
        %v2723 = vunpack.c.l.b16 %v1078
        %v2724 = vunpack.c.l.b16 %v1079
        %v2725 = vunpack.c.h.b16 %v1079
        %v2726 = vunpack.c.l.b16 %v1080
        %v2727 = vunpack.c.l.b16 %v1081
        %v2728 = vunpack.c.h.b16 %v1081
        %v2729 = vunpack.c.l.b16 %v1082
        %v2730 = vunpack.c.l.b16 %v1083
        %v2731 = vunpack.c.h.b16 %v1083
        %v2732 = vunpack.c.l.b16 %v1084
        %v2733 = vunpack.c.l.b16 %v1085
        %v2734 = vunpack.c.h.b16 %v1085
        %v2735 = vunpack.c.l.b16 %v1086
        %v2736 = vunpack.c.l.b16 %v1087
        %v2737 = vunpack.c.h.b16 %v1087
        %v2738 = vunpack.c.l.b16 %v1088
        %v2739 = vunpack.c.l.b16 %v1089
        %v2740 = vunpack.c.h.b16 %v1089
        %v2741 = vunpack.c.l.b16 %v1090
        %v2742 = vunpack.c.l.b16 %v1091
        %v2743 = vunpack.c.h.b16 %v1091
        %v2744 = vunpack.c.l.b16 %v1092
        %v2745 = vunpack.c.l.b16 %v1093
        %v2746 = vunpack.c.h.b16 %v1093
        %v2747 = vunpack.c.l.b16 %v1094
        %v2748 = vunpack.c.l.b16 %v1095
        %v2749 = vunpack.c.h.b16 %v1095
        %v2750 = vunpack.c.l.b16 %v1096
        %v2751 = vunpack.c.l.b16 %v1097
        %v2752 = vunpack.c.h.b16 %v1097
        %v2753 = vunpack.c.l.b16 %v1098
        %v2754 = vunpack.c.l.b16 %v1099
        %v2755 = vunpack.c.h.b16 %v1099
        %v2756 = vunpack.c.l.b16 %v1100
        %v2757 = vunpack.c.l.b16 %v1101
        %v2758 = vunpack.c.h.b16 %v1101
        %v2759 = vunpack.c.l.b16 %v1102
        %v2760 = vunpack.c.l.b16 %v1103
        %v2761 = vunpack.c.h.b16 %v1103
        %v2762 = vunpack.c.l.b16 %v1104
        %v2763 = vunpack.c.l.b16 %v1105
        %v2764 = vunpack.c.h.b16 %v1105
        %v2765 = vunpack.c.l.b16 %v1106
        %v2766 = vunpack.c.l.b16 %v1107
        %v2767 = vunpack.c.h.b16 %v1107
        %v2768 = vunpack.c.l.b16 %v1108
        %v2769 = vunpack.c.l.b16 %v1109
        %v2770 = vunpack.c.h.b16 %v1109
        %v2771 = vunpack.c.l.b16 %v1110
        %v2772 = vunpack.c.l.b16 %v1111
        %v2773 = vunpack.c.h.b16 %v1111
        %v2774 = vunpack.c.l.b16 %v1112
        %v2775 = vunpack.c.l.b16 %v1113
        %v2776 = vunpack.c.h.b16 %v1113
        %v2777 = vunpack.c.l.b16 %v1114
        %v2778 = vunpack.c.l.b16 %v1115
        %v2779 = vunpack.c.h.b16 %v1115
        %v2780 = vunpack.c.l.b16 %v1116
        %v2781 = vunpack.c.l.b16 %v1117
        %v2782 = vunpack.c.h.b16 %v1117
        %v2783 = vunpack.c.l.b16 %v1118
        %v2784 = vunpack.c.l.b16 %v1119
        %v2785 = vunpack.c.h.b16 %v1119
        %v2786 = vunpack.c.l.b16 %v1120
        %v2787 = vunpack.c.l.b16 %v1121
        %v2788 = vunpack.c.h.b16 %v1121
        %v2789 = vunpack.c.l.b16 %v1122
        %v2790 = vunpack.c.l.b16 %v1123
        %v2791 = vunpack.c.h.b16 %v1123
        %v2792 = vunpack.c.l.b16 %v1124
        %v2793 = vunpack.c.l.b16 %v1125
        %v2794 = vunpack.c.h.b16 %v1125
        %v2795 = vunpack.c.l.b16 %v1126
        %v2796 = vunpack.c.l.b16 %v1127
        %v2797 = vunpack.c.h.b16 %v1127
        %v2798 = vunpack.c.l.b16 %v1128
        %v2799 = vunpack.c.l.b16 %v1129
        %v2800 = vunpack.c.h.b16 %v1129
        %v2801 = vunpack.c.l.b16 %v1130
        %v2802 = vunpack.c.l.b16 %v1131
        %v2803 = vunpack.c.h.b16 %v1131
        %v2804 = vunpack.c.l.b16 %v1132
        %v2805 = vunpack.c.l.b16 %v1133
        %v2806 = vunpack.c.h.b16 %v1133
        %v2807 = vunpack.c.l.b16 %v1134
        %v2808 = vunpack.c.l.b16 %v1135
        %v2809 = vunpack.c.h.b16 %v1135
        %v2810 = vunpack.c.l.b16 %v1136
        %v2811 = vunpack.c.l.b16 %v1137
        %v2812 = vunpack.c.h.b16 %v1137
        %v2813 = vunpack.c.l.b16 %v1138
        %v2814 = vunpack.c.l.b16 %v1139
        %v2815 = vunpack.c.h.b16 %v1139
        %v2816 = vunpack.c.l.b16 %v1140
        %v2817 = vunpack.c.l.b16 %v1141
        %v2818 = vunpack.c.h.b16 %v1141
        %v2819 = vunpack.c.l.b16 %v1142
        %v2820 = vunpack.c.l.b16 %v1143
        %v2821 = vunpack.c.h.b16 %v1143
        %v2822 = vunpack.c.l.b16 %v1144
        %v2823 = vunpack.c.l.b16 %v1145
        %v2824 = vunpack.c.h.b16 %v1145
        %v2825 = vunpack.c.l.b16 %v1146
        %v2826 = vunpack.c.l.b16 %v1147
        %v2827 = vunpack.c.h.b16 %v1147
        %v2828 = vunpack.c.l.b16 %v1148
        %v2829 = vunpack.c.l.b16 %v1149
        %v2830 = vunpack.c.h.b16 %v1149
        %v2831 = vunpack.c.l.b16 %v1150
        %v2832 = vunpack.c.l.b16 %v1151
        %v2833 = vunpack.c.h.b16 %v1151
        %v2834 = vunpack.c.l.b16 %v1152
        %v2835 = vunpack.c.l.b16 %v1153
        %v2836 = vunpack.c.h.b16 %v1153
        %v2837 = vunpack.c.l.b16 %v1154
        %v2838 = vunpack.c.l.b16 %v1155
        %v2839 = vunpack.c.h.b16 %v1155
        %v2840 = vunpack.c.l.b16 %v1156
        %v2841 = vunpack.c.l.b16 %v1157
        %v2842 = vunpack.c.h.b16 %v1157
        %v2843 = vunpack.c.l.b16 %v1158
        %v2844 = vunpack.c.l.b16 %v1159
        %v2845 = vunpack.c.h.b16 %v1159
        %v2846 = vunpack.c.l.b16 %v1160
        %v2847 = vunpack.c.l.b16 %v1161
        %v2848 = vunpack.c.h.b16 %v1161
        %v2849 = vunpack.c.l.b16 %v1162
        %v2850 = vunpack.c.l.b16 %v1163
        %v2851 = vunpack.c.h.b16 %v1163
        %v2852 = vunpack.c.l.b16 %v1164
        %v2853 = vunpack.c.l.b16 %v1165
        %v2854 = vunpack.c.h.b16 %v1165
        %v2855 = vunpack.c.l.b16 %v1166
        %v2856 = vunpack.c.l.b16 %v1167
        %v2857 = vunpack.c.h.b16 %v1167
        %v2858 = vunpack.c.l.b16 %v1168
        %v2859 = vunpack.c.l.b16 %v1169
        %v2860 = vunpack.c.h.b16 %v1169
        %v2861 = vunpack.c.l.b16 %v1170
        %v2862 = vunpack.c.l.b16 %v1171
        %v2863 = vunpack.c.h.b16 %v1171
        %v2864 = vunpack.c.l.b16 %v1172
        %v2865 = vunpack.c.l.b16 %v1173
        %v2866 = vunpack.c.h.b16 %v1173
        %v2867 = vunpack.c.l.b16 %v1174
        %v2868 = vunpack.c.l.b16 %v1175
        %v2869 = vunpack.c.h.b16 %v1175
        %v2870 = vunpack.c.l.b16 %v1176
        %v2871 = vunpack.c.l.b16 %v1177
        %v2872 = vunpack.c.h.b16 %v1177
        %v2873 = vunpack.c.l.b16 %v1178
        %v2874 = vunpack.c.l.b16 %v1179
        %v2875 = vunpack.c.h.b16 %v1179
        %v2876 = vunpack.c.l.b16 %v1180
        %v2877 = vunpack.c.l.b16 %v1181
        %v2878 = vunpack.c.h.b16 %v1181
        %v2879 = vunpack.c.l.b16 %v1182
        %v2880 = vunpack.c.l.b16 %v1183
        %v2881 = vunpack.c.h.b16 %v1183
        %v2882 = vunpack.c.l.b16 %v1184
        %v2883 = vunpack.c.l.b16 %v1185
        %v2884 = vunpack.c.h.b16 %v1185
        %v2885 = vunpack.c.l.b16 %v1186
        %v2886 = vunpack.c.l.b16 %v1187
        %v2887 = vunpack.c.h.b16 %v1187
        %v2888 = vunpack.c.l.b16 %v1188
        %v2889 = vunpack.c.l.b16 %v1189
        %v2890 = vunpack.c.h.b16 %v1189
        %v2891 = vunpack.c.l.b16 %v1190
        %v2892 = vunpack.c.l.b16 %v1191
        %v2893 = vunpack.c.h.b16 %v1191
        %v2894 = vunpack.c.l.b16 %v1192
        %v2895 = vunpack.c.l.b16 %v1193
        %v2896 = vunpack.c.h.b16 %v1193
        %v2897 = vunpack.c.l.b16 %v1194
        %v2898 = vunpack.c.l.b16 %v1195
        %v2899 = vunpack.c.h.b16 %v1195
        %v2900 = vunpack.c.l.b16 %v1196
        %v2901 = vunpack.c.l.b16 %v1197
        %v2902 = vunpack.c.h.b16 %v1197
        %v2903 = vunpack.c.l.b16 %v1198
        %v2904 = vpack.c.b16 %v2715, %v2712
        %v2905 = vpack.c.b16 %v2716, %v2713
        %v2906 = vpack.c.b16 %v2717, %v2714
        %v2907 = vpack.c.b16 %v2721, %v2718
        %v2908 = vpack.c.b16 %v2722, %v2719
        %v2909 = vpack.c.b16 %v2723, %v2720
        %v2910 = vpack.c.b16 %v2727, %v2724
        %v2911 = vpack.c.b16 %v2728, %v2725
        %v2912 = vpack.c.b16 %v2729, %v2726
        %v2913 = vpack.c.b16 %v2733, %v2730
        %v2914 = vpack.c.b16 %v2734, %v2731
        %v2915 = vpack.c.b16 %v2735, %v2732
        %v2916 = vpack.c.b16 %v2739, %v2736
        %v2917 = vpack.c.b16 %v2740, %v2737
        %v2918 = vpack.c.b16 %v2741, %v2738
        %v2919 = vpack.c.b16 %v2745, %v2742
        %v2920 = vpack.c.b16 %v2746, %v2743
        %v2921 = vpack.c.b16 %v2747, %v2744
        %v2922 = vpack.c.b16 %v2751, %v2748
        %v2923 = vpack.c.b16 %v2752, %v2749
        %v2924 = vpack.c.b16 %v2753, %v2750
        %v2925 = vpack.c.b16 %v2757, %v2754
        %v2926 = vpack.c.b16 %v2758, %v2755
        %v2927 = vpack.c.b16 %v2759, %v2756
        %v2928 = vpack.c.b16 %v2763, %v2760
        %v2929 = vpack.c.b16 %v2764, %v2761
        %v2930 = vpack.c.b16 %v2765, %v2762
        %v2931 = vpack.c.b16 %v2769, %v2766
        %v2932 = vpack.c.b16 %v2770, %v2767
        %v2933 = vpack.c.b16 %v2771, %v2768
        %v2934 = vpack.c.b16 %v2775, %v2772
        %v2935 = vpack.c.b16 %v2776, %v2773
        %v2936 = vpack.c.b16 %v2777, %v2774
        %v2937 = vpack.c.b16 %v2781, %v2778
        %v2938 = vpack.c.b16 %v2782, %v2779
        %v2939 = vpack.c.b16 %v2783, %v2780
        %v2940 = vpack.c.b16 %v2787, %v2784
        %v2941 = vpack.c.b16 %v2788, %v2785
        %v2942 = vpack.c.b16 %v2789, %v2786
        %v2943 = vpack.c.b16 %v2793, %v2790
        %v2944 = vpack.c.b16 %v2794, %v2791
        %v2945 = vpack.c.b16 %v2795, %v2792
        %v2946 = vpack.c.b16 %v2799, %v2796
        %v2947 = vpack.c.b16 %v2800, %v2797
        %v2948 = vpack.c.b16 %v2801, %v2798
        %v2949 = vpack.c.b16 %v2805, %v2802
        %v2950 = vpack.c.b16 %v2806, %v2803
        %v2951 = vpack.c.b16 %v2807, %v2804
        %v2952 = vpack.c.b16 %v2811, %v2808
        %v2953 = vpack.c.b16 %v2812, %v2809
        %v2954 = vpack.c.b16 %v2813, %v2810
        %v2955 = vpack.c.b16 %v2817, %v2814
        %v2956 = vpack.c.b16 %v2818, %v2815
        %v2957 = vpack.c.b16 %v2819, %v2816
        %v2958 = vpack.c.b16 %v2823, %v2820
        %v2959 = vpack.c.b16 %v2824, %v2821
        %v2960 = vpack.c.b16 %v2825, %v2822
        %v2961 = vpack.c.b16 %v2829, %v2826
        %v2962 = vpack.c.b16 %v2830, %v2827
        %v2963 = vpack.c.b16 %v2831, %v2828
        %v2964 = vpack.c.b16 %v2835, %v2832
        %v2965 = vpack.c.b16 %v2836, %v2833
        %v2966 = vpack.c.b16 %v2837, %v2834
        %v2967 = vpack.c.b16 %v2841, %v2838
        %v2968 = vpack.c.b16 %v2842, %v2839
        %v2969 = vpack.c.b16 %v2843, %v2840
        %v2970 = vpack.c.b16 %v2847, %v2844
        %v2971 = vpack.c.b16 %v2848, %v2845
        %v2972 = vpack.c.b16 %v2849, %v2846
        %v2973 = vpack.c.b16 %v2853, %v2850
        %v2974 = vpack.c.b16 %v2854, %v2851
        %v2975 = vpack.c.b16 %v2855, %v2852
        %v2976 = vpack.c.b16 %v2859, %v2856
        %v2977 = vpack.c.b16 %v2860, %v2857
        %v2978 = vpack.c.b16 %v2861, %v2858
        %v2979 = vpack.c.b16 %v2865, %v2862
        %v2980 = vpack.c.b16 %v2866, %v2863
        %v2981 = vpack.c.b16 %v2867, %v2864
        %v2982 = vpack.c.b16 %v2871, %v2868
        %v2983 = vpack.c.b16 %v2872, %v2869
        %v2984 = vpack.c.b16 %v2873, %v2870
        %v2985 = vpack.c.b16 %v2877, %v2874
        %v2986 = vpack.c.b16 %v2878, %v2875
        %v2987 = vpack.c.b16 %v2879, %v2876
        %v2988 = vpack.c.b16 %v2883, %v2880
        %v2989 = vpack.c.b16 %v2884, %v2881
        %v2990 = vpack.c.b16 %v2885, %v2882
        %v2991 = vpack.c.b16 %v2889, %v2886
        %v2992 = vpack.c.b16 %v2890, %v2887
        %v2993 = vpack.c.b16 %v2891, %v2888
        %v2994 = vpack.c.b16 %v2895, %v2892
        %v2995 = vpack.c.b16 %v2896, %v2893
        %v2996 = vpack.c.b16 %v2897, %v2894
        %v2997 = vpack.c.b16 %v2901, %v2898
        %v2998 = vpack.c.b16 %v2902, %v2899
        %v2999 = vpack.c.b16 %v2903, %v2900
        %3096 = vmatprep.subr.bf16.mxu0 %v2905
        %3097 = vmatpush1.bf16.msra.mxu0 %v2904
        %3098 = vmatprep.subr.bf16.mxu0 %v2908
        %3099 = vmatpush1.bf16.msra.mxu0 %v2907
        %3100 = vmatprep.subr.bf16.mxu0 %v2911
        %3101 = vmatpush1.bf16.msra.mxu0 %v2910
        %3102 = vmatprep.subr.bf16.mxu0 %v2914
        %3103 = vmatpush1.bf16.msra.mxu0 %v2913
        %3104 = vmatprep.subr.bf16.mxu0 %v2917
        %3105 = vmatpush1.bf16.msra.mxu0 %v2916
        %3106 = vmatprep.subr.bf16.mxu0 %v2920
        %3107 = vmatpush1.bf16.msra.mxu0 %v2919
        %3108 = vmatprep.subr.bf16.mxu0 %v2923
        %3109 = vmatpush1.bf16.msra.mxu0 %v2922
        %3110 = vmatprep.subr.bf16.mxu0 %v2926
        %3111 = vmatpush1.bf16.msra.mxu0 %v2925
        %3112 = vmatprep.subr.bf16.mxu0 %v2929
        %3113 = vmatpush1.bf16.msra.mxu0 %v2928
        %3114 = vmatprep.subr.bf16.mxu0 %v2932
        %3115 = vmatpush1.bf16.msra.mxu0 %v2931
        %3116 = vmatprep.subr.bf16.mxu0 %v2935
        %3117 = vmatpush1.bf16.msra.mxu0 %v2934
        %3118 = vmatprep.subr.bf16.mxu0 %v2938
        %3119 = vmatpush1.bf16.msra.mxu0 %v2937
        %3120 = vmatprep.subr.bf16.mxu0 %v2941
        %3121 = vmatpush1.bf16.msra.mxu0 %v2940
        %3122 = vmatprep.subr.bf16.mxu0 %v2944
        %3123 = vmatpush1.bf16.msra.mxu0 %v2943
        %3124 = vmatprep.subr.bf16.mxu0 %v2947
        %3125 = vmatpush1.bf16.msra.mxu0 %v2946
        %3126 = vmatprep.subr.bf16.mxu0 %v2950
        %3127 = vmatpush1.bf16.msra.mxu0 %v2949
        %3128 = vmatprep.mubr.bf16.mxu0 %v1004
        %3129 = vmatmul.mubr.bf16.gmra.mrb[0].mxu0 %v1003
        %v3130 = vpop.f32.mrb[0].mxu0
        %v3131 = vadd.f32 %v2083, %v3130
        %v3132 = vpop.f32.mrb[0].mxu0
        %v3133 = vadd.f32 %v2085, %v3132
        %v3134 = vpop.f32.mrb[0].mxu0
        %v3135 = vadd.f32 %v2087, %v3134
        %v3136 = vpop.f32.mrb[0].mxu0
        %v3137 = vadd.f32 %v2089, %v3136
        %3138 = vmatprep.mubr.bf16.mxu0 %v1008
        %3139 = vmatmul.mubr.bf16.gmra.mrb[0].mxu0 %v1007
        %v3140 = vpop.f32.mrb[0].mxu0
        %v3141 = vadd.f32 %v2093, %v3140
        %v3142 = vpop.f32.mrb[0].mxu0
        %v3143 = vadd.f32 %v2095, %v3142
        %v3144 = vpop.f32.mrb[0].mxu0
        %v3145 = vadd.f32 %v2097, %v3144
        %v3146 = vpop.f32.mrb[0].mxu0
        %v3147 = vadd.f32 %v2099, %v3146
        %3148 = vmatprep.mubr.bf16.mxu0 %v1012
        %3149 = vmatmul.mubr.bf16.gmra.mrb[0].mxu0 %v1011
        %v3150 = vpop.f32.mrb[0].mxu0
        %v3151 = vadd.f32 %v2103, %v3150
        %v3152 = vpop.f32.mrb[0].mxu0
        %v3153 = vadd.f32 %v2105, %v3152
        %v3154 = vpop.f32.mrb[0].mxu0
        %v3155 = vadd.f32 %v2107, %v3154
        %v3156 = vpop.f32.mrb[0].mxu0
        %v3157 = vadd.f32 %v2109, %v3156
        %3158 = vmatprep.mubr.bf16.mxu0 %v1016
        %3159 = vmatmul.mubr.bf16.gmra.mrb[0].mxu0 %v1015
        %v3160 = vpop.f32.mrb[0].mxu0
        %v3161 = vadd.f32 %v2113, %v3160
        %v3162 = vpop.f32.mrb[0].mxu0
        %v3163 = vadd.f32 %v2115, %v3162
        %v3164 = vpop.f32.mrb[0].mxu0
        %v3165 = vadd.f32 %v2117, %v3164
        %v3166 = vpop.f32.mrb[0].mxu0
        %v3167 = vadd.f32 %v2119, %v3166
        %3168 = vmatprep.mubr.bf16.mxu0 %v1020
        %3169 = vmatmul.mubr.bf16.gmra.mrb[0].mxu0 %v1019
        %v3170 = vpop.f32.mrb[0].mxu0
        %v3171 = vadd.f32 %v2123, %v3170
        %v3172 = vpop.f32.mrb[0].mxu0
        %v3173 = vadd.f32 %v2125, %v3172
        %v3174 = vpop.f32.mrb[0].mxu0
        %v3175 = vadd.f32 %v2127, %v3174
        %v3176 = vpop.f32.mrb[0].mxu0
        %v3177 = vadd.f32 %v2129, %v3176
        %3178 = vmatprep.mubr.bf16.mxu0 %v1024
        %3179 = vmatmul.mubr.bf16.gmra.mrb[0].mxu0 %v1023
        %v3180 = vpop.f32.mrb[0].mxu0
        %v3181 = vadd.f32 %v2133, %v3180
        %v3182 = vpop.f32.mrb[0].mxu0
        %v3183 = vadd.f32 %v2135, %v3182
        %v3184 = vpop.f32.mrb[0].mxu0
        %v3185 = vadd.f32 %v2137, %v3184
        %v3186 = vpop.f32.mrb[0].mxu0
        %v3187 = vadd.f32 %v2139, %v3186
        %3188 = vmatprep.mubr.bf16.mxu0 %v1028
        %3189 = vmatmul.mubr.bf16.gmra.mrb[0].mxu0 %v1027
        %v3190 = vpop.f32.mrb[0].mxu0
        %v3191 = vadd.f32 %v2143, %v3190
        %v3192 = vpop.f32.mrb[0].mxu0
        %v3193 = vadd.f32 %v2145, %v3192
        %v3194 = vpop.f32.mrb[0].mxu0
        %v3195 = vadd.f32 %v2147, %v3194
        %v3196 = vpop.f32.mrb[0].mxu0
        %v3197 = vadd.f32 %v2149, %v3196
        %3198 = vmatprep.mubr.bf16.mxu0 %v1032
        %3199 = vmatmul.mubr.bf16.gmra.mrb[0].mxu0 %v1031
        %v3200 = vpop.f32.mrb[0].mxu0
        %v3201 = vadd.f32 %v2153, %v3200
        %v3202 = vpop.f32.mrb[0].mxu0
        %v3203 = vadd.f32 %v2155, %v3202
        %v3204 = vpop.f32.mrb[0].mxu0
        %v3205 = vadd.f32 %v2157, %v3204
        %v3206 = vpop.f32.mrb[0].mxu0
        %v3207 = vadd.f32 %v2159, %v3206
        %3208 = vmatprep.mubr.bf16.mxu0 %v1036
        %3209 = vmatmul.mubr.bf16.gmra.mrb[0].mxu0 %v1035
        %v3210 = vpop.f32.mrb[0].mxu0
        %v3211 = vadd.f32 %v2163, %v3210
        %v3212 = vpop.f32.mrb[0].mxu0
        %v3213 = vadd.f32 %v2165, %v3212
        %v3214 = vpop.f32.mrb[0].mxu0
        %v3215 = vadd.f32 %v2167, %v3214
        %v3216 = vpop.f32.mrb[0].mxu0
        %v3217 = vadd.f32 %v2169, %v3216
        %3218 = vmatprep.mubr.bf16.mxu0 %v1040
        %3219 = vmatmul.mubr.bf16.gmra.mrb[0].mxu0 %v1039
        %v3220 = vpop.f32.mrb[0].mxu0
        %v3221 = vadd.f32 %v2173, %v3220
        %v3222 = vpop.f32.mrb[0].mxu0
        %v3223 = vadd.f32 %v2175, %v3222
        %v3224 = vpop.f32.mrb[0].mxu0
        %v3225 = vadd.f32 %v2177, %v3224
        %v3226 = vpop.f32.mrb[0].mxu0
        %v3227 = vadd.f32 %v2179, %v3226
        %3228 = vmatprep.mubr.bf16.mxu0 %v1044
        %3229 = vmatmul.mubr.bf16.gmra.mrb[0].mxu0 %v1043
        %v3230 = vpop.f32.mrb[0].mxu0
        %v3231 = vadd.f32 %v2183, %v3230
        %v3232 = vpop.f32.mrb[0].mxu0
        %v3233 = vadd.f32 %v2185, %v3232
        %v3234 = vpop.f32.mrb[0].mxu0
        %v3235 = vadd.f32 %v2187, %v3234
        %v3236 = vpop.f32.mrb[0].mxu0
        %v3237 = vadd.f32 %v2189, %v3236
        %3238 = vmatprep.mubr.bf16.mxu0 %v1048
        %3239 = vmatmul.mubr.bf16.gmra.mrb[0].mxu0 %v1047
        %v3240 = vpop.f32.mrb[0].mxu0
        %v3241 = vadd.f32 %v2193, %v3240
        %v3242 = vpop.f32.mrb[0].mxu0
        %v3243 = vadd.f32 %v2195, %v3242
        %v3244 = vpop.f32.mrb[0].mxu0
        %v3245 = vadd.f32 %v2197, %v3244
        %v3246 = vpop.f32.mrb[0].mxu0
        %v3247 = vadd.f32 %v2199, %v3246
        %3248 = vmatprep.mubr.bf16.mxu0 %v1052
        %3249 = vmatmul.mubr.bf16.gmra.mrb[0].mxu0 %v1051
        %v3250 = vpop.f32.mrb[0].mxu0
        %v3251 = vadd.f32 %v2203, %v3250
        %v3252 = vpop.f32.mrb[0].mxu0
        %v3253 = vadd.f32 %v2205, %v3252
        %v3254 = vpop.f32.mrb[0].mxu0
        %v3255 = vadd.f32 %v2207, %v3254
        %v3256 = vpop.f32.mrb[0].mxu0
        %v3257 = vadd.f32 %v2209, %v3256
        %3258 = vmatprep.mubr.bf16.mxu0 %v1056
        %3259 = vmatmul.mubr.bf16.gmra.mrb[0].mxu0 %v1055
        %v3260 = vpop.f32.mrb[0].mxu0
        %v3261 = vadd.f32 %v2213, %v3260
        %v3262 = vpop.f32.mrb[0].mxu0
        %v3263 = vadd.f32 %v2215, %v3262
        %v3264 = vpop.f32.mrb[0].mxu0
        %v3265 = vadd.f32 %v2217, %v3264
        %v3266 = vpop.f32.mrb[0].mxu0
        %v3267 = vadd.f32 %v2219, %v3266
        %3268 = vmatprep.mubr.bf16.mxu0 %v1060
        %3269 = vmatmul.mubr.bf16.gmra.mrb[0].mxu0 %v1059
        %v3270 = vpop.f32.mrb[0].mxu0
        %v3271 = vadd.f32 %v2223, %v3270
        %v3272 = vpop.f32.mrb[0].mxu0
        %v3273 = vadd.f32 %v2225, %v3272
        %v3274 = vpop.f32.mrb[0].mxu0
        %v3275 = vadd.f32 %v2227, %v3274
        %v3276 = vpop.f32.mrb[0].mxu0
        %v3277 = vadd.f32 %v2229, %v3276
        %3278 = vmatprep.mubr.bf16.mxu0 %v1064
        %3279 = vmatmul.mubr.bf16.gmra.mrb[0].mxu0 %v1063
        %v3280 = vpop.f32.mrb[0].mxu0
        %v3281 = vadd.f32 %v2233, %v3280
        %v3282 = vpop.f32.mrb[0].mxu0
        %v3283 = vadd.f32 %v2235, %v3282
        %v3284 = vpop.f32.mrb[0].mxu0
        %v3285 = vadd.f32 %v2237, %v3284
        %v3286 = vpop.f32.mrb[0].mxu0
        %v3287 = vadd.f32 %v2239, %v3286
        %3288 = vmatprep.mubr.bf16.mxu0 %v1068
        %3289 = vmatmul.mubr.bf16.gmra.mrb[0].mxu0 %v1067
        %v3290 = vpop.f32.mrb[0].mxu0
        %v3291 = vpop.f32.mrb[0].mxu0
        %v3292 = vadd.f32 %v2244, %v3291
        %v3293 = vpop.f32.mrb[0].mxu0
        %v3294 = vpop.f32.mrb[0].mxu0
        %3295 = vdwg.mxu0
        %3296 = vmatprep.subr.bf16.mxu0 %v2953
        %3297 = vmatpush1.bf16.msra.mxu0 %v2952
        %3298 = vmatprep.subr.bf16.mxu0 %v2956
        %3299 = vmatpush1.bf16.msra.mxu0 %v2955
        %3300 = vmatprep.subr.bf16.mxu0 %v2959
        %3301 = vmatpush1.bf16.msra.mxu0 %v2958
        %3302 = vmatprep.subr.bf16.mxu0 %v2962
        %3303 = vmatpush1.bf16.msra.mxu0 %v2961
        %3304 = vmatprep.subr.bf16.mxu0 %v2965
        %3305 = vmatpush1.bf16.msra.mxu0 %v2964
        %3306 = vmatprep.subr.bf16.mxu0 %v2968
        %3307 = vmatpush1.bf16.msra.mxu0 %v2967
        %3308 = vmatprep.subr.bf16.mxu0 %v2971
        %3309 = vmatpush1.bf16.msra.mxu0 %v2970
        %3310 = vmatprep.subr.bf16.mxu0 %v2974
        %3311 = vmatpush1.bf16.msra.mxu0 %v2973
        %3312 = vmatprep.subr.bf16.mxu0 %v2977
        %3313 = vmatpush1.bf16.msra.mxu0 %v2976
        %3314 = vmatprep.subr.bf16.mxu0 %v2980
        %3315 = vmatpush1.bf16.msra.mxu0 %v2979
        %3316 = vmatprep.subr.bf16.mxu0 %v2983
        %3317 = vmatpush1.bf16.msra.mxu0 %v2982
        %3318 = vmatprep.subr.bf16.mxu0 %v2986
        %3319 = vmatpush1.bf16.msra.mxu0 %v2985
        %3320 = vmatprep.subr.bf16.mxu0 %v2989
        %3321 = vmatpush1.bf16.msra.mxu0 %v2988
        %3322 = vmatprep.subr.bf16.mxu0 %v2992
        %3323 = vmatpush1.bf16.msra.mxu0 %v2991
        %3324 = vmatprep.subr.bf16.mxu0 %v2995
        %3325 = vmatpush1.bf16.msra.mxu0 %v2994
        %3326 = vmatprep.subr.bf16.mxu0 %v2998
        %3327 = vmatpush1.bf16.msra.mxu0 %v2997
        %3328 = vmatprep.mubr.bf16.mxu0 %v1006
        %3329 = vmatmul.mubr.bf16.gmra.mrb[0].mxu0 %v1005
        %v3330 = vpop.f32.mrb[0].mxu0
        %v3331 = vadd.f32 %v3131, %v3330
        %v3332 = vpop.f32.mrb[0].mxu0
        %v3333 = vadd.f32 %v3133, %v3332
        %v3334 = vpop.f32.mrb[0].mxu0
        %v3335 = vadd.f32 %v3135, %v3334
        %v3336 = vpop.f32.mrb[0].mxu0
        %v3337 = vadd.f32 %v3137, %v3336
        %3338 = vmatprep.mubr.bf16.mxu0 %v1010
        %3339 = vmatmul.mubr.bf16.gmra.mrb[0].mxu0 %v1009
        %v3340 = vpop.f32.mrb[0].mxu0
        %v3341 = vadd.f32 %v3141, %v3340
        %v3342 = vpop.f32.mrb[0].mxu0
        %v3343 = vadd.f32 %v3143, %v3342
        %v3344 = vpop.f32.mrb[0].mxu0
        %v3345 = vadd.f32 %v3145, %v3344
        %v3346 = vpop.f32.mrb[0].mxu0
        %v3347 = vadd.f32 %v3147, %v3346
        %3348 = vmatprep.mubr.bf16.mxu0 %v1014
        %3349 = vmatmul.mubr.bf16.gmra.mrb[0].mxu0 %v1013
        %v3350 = vpop.f32.mrb[0].mxu0
        %v3351 = vadd.f32 %v3151, %v3350
        %v3352 = vpop.f32.mrb[0].mxu0
        %v3353 = vadd.f32 %v3153, %v3352
        %v3354 = vpop.f32.mrb[0].mxu0
        %v3355 = vadd.f32 %v3155, %v3354
        %v3356 = vpop.f32.mrb[0].mxu0
        %v3357 = vadd.f32 %v3157, %v3356
        %3358 = vmatprep.mubr.bf16.mxu0 %v1018
        %3359 = vmatmul.mubr.bf16.gmra.mrb[0].mxu0 %v1017
        %v3360 = vpop.f32.mrb[0].mxu0
        %v3361 = vadd.f32 %v3161, %v3360
        %v3362 = vpop.f32.mrb[0].mxu0
        %v3363 = vadd.f32 %v3163, %v3362
        %v3364 = vpop.f32.mrb[0].mxu0
        %v3365 = vadd.f32 %v3165, %v3364
        %v3366 = vpop.f32.mrb[0].mxu0
        %v3367 = vadd.f32 %v3167, %v3366
        %3368 = vmatprep.mubr.bf16.mxu0 %v1022
        %3369 = vmatmul.mubr.bf16.gmra.mrb[0].mxu0 %v1021
        %v3370 = vpop.f32.mrb[0].mxu0
        %v3371 = vadd.f32 %v3171, %v3370
        %v3372 = vpop.f32.mrb[0].mxu0
        %v3373 = vadd.f32 %v3173, %v3372
        %v3374 = vpop.f32.mrb[0].mxu0
        %v3375 = vadd.f32 %v3175, %v3374
        %v3376 = vpop.f32.mrb[0].mxu0
        %v3377 = vadd.f32 %v3177, %v3376
        %3378 = vmatprep.mubr.bf16.mxu0 %v1026
        %3379 = vmatmul.mubr.bf16.gmra.mrb[0].mxu0 %v1025
        %v3380 = vpop.f32.mrb[0].mxu0
        %v3381 = vadd.f32 %v3181, %v3380
        %v3382 = vpop.f32.mrb[0].mxu0
        %v3383 = vadd.f32 %v3183, %v3382
        %v3384 = vpop.f32.mrb[0].mxu0
        %v3385 = vadd.f32 %v3185, %v3384
        %v3386 = vpop.f32.mrb[0].mxu0
        %v3387 = vadd.f32 %v3187, %v3386
        %3388 = vmatprep.mubr.bf16.mxu0 %v1030
        %3389 = vmatmul.mubr.bf16.gmra.mrb[0].mxu0 %v1029
        %v3390 = vpop.f32.mrb[0].mxu0
        %v3391 = vadd.f32 %v3191, %v3390
        %v3392 = vpop.f32.mrb[0].mxu0
        %v3393 = vadd.f32 %v3193, %v3392
        %v3394 = vpop.f32.mrb[0].mxu0
        %v3395 = vadd.f32 %v3195, %v3394
        %v3396 = vpop.f32.mrb[0].mxu0
        %v3397 = vadd.f32 %v3197, %v3396
        %3398 = vmatprep.mubr.bf16.mxu0 %v1034
        %3399 = vmatmul.mubr.bf16.gmra.mrb[0].mxu0 %v1033
        %v3400 = vpop.f32.mrb[0].mxu0
        %v3401 = vadd.f32 %v3201, %v3400
        %v3402 = vpop.f32.mrb[0].mxu0
        %v3403 = vadd.f32 %v3203, %v3402
        %v3404 = vpop.f32.mrb[0].mxu0
        %v3405 = vadd.f32 %v3205, %v3404
        %v3406 = vpop.f32.mrb[0].mxu0
        %v3407 = vadd.f32 %v3207, %v3406
        %3408 = vmatprep.mubr.bf16.mxu0 %v1038
        %3409 = vmatmul.mubr.bf16.gmra.mrb[0].mxu0 %v1037
        %v3410 = vpop.f32.mrb[0].mxu0
        %v3411 = vadd.f32 %v3211, %v3410
        %v3412 = vpop.f32.mrb[0].mxu0
        %v3413 = vadd.f32 %v3213, %v3412
        %v3414 = vpop.f32.mrb[0].mxu0
        %v3415 = vadd.f32 %v3215, %v3414
        %v3416 = vpop.f32.mrb[0].mxu0
        %v3417 = vadd.f32 %v3217, %v3416
        %3418 = vmatprep.mubr.bf16.mxu0 %v1042
        %3419 = vmatmul.mubr.bf16.gmra.mrb[0].mxu0 %v1041
        %v3420 = vpop.f32.mrb[0].mxu0
        %v3421 = vadd.f32 %v3221, %v3420
        %v3422 = vpop.f32.mrb[0].mxu0
        %v3423 = vadd.f32 %v3223, %v3422
        %v3424 = vpop.f32.mrb[0].mxu0
        %v3425 = vadd.f32 %v3225, %v3424
        %v3426 = vpop.f32.mrb[0].mxu0
        %v3427 = vadd.f32 %v3227, %v3426
        %3428 = vmatprep.mubr.bf16.mxu0 %v1046
        %3429 = vmatmul.mubr.bf16.gmra.mrb[0].mxu0 %v1045
        %v3430 = vpop.f32.mrb[0].mxu0
        %v3431 = vadd.f32 %v3231, %v3430
        %v3432 = vpop.f32.mrb[0].mxu0
        %v3433 = vadd.f32 %v3233, %v3432
        %v3434 = vpop.f32.mrb[0].mxu0
        %v3435 = vadd.f32 %v3235, %v3434
        %v3436 = vpop.f32.mrb[0].mxu0
        %v3437 = vadd.f32 %v3237, %v3436
        %3438 = vmatprep.mubr.bf16.mxu0 %v1050
        %3439 = vmatmul.mubr.bf16.gmra.mrb[0].mxu0 %v1049
        %v3440 = vpop.f32.mrb[0].mxu0
        %v3441 = vadd.f32 %v3241, %v3440
        %v3442 = vpop.f32.mrb[0].mxu0
        %v3443 = vadd.f32 %v3243, %v3442
        %v3444 = vpop.f32.mrb[0].mxu0
        %v3445 = vadd.f32 %v3245, %v3444
        %v3446 = vpop.f32.mrb[0].mxu0
        %v3447 = vadd.f32 %v3247, %v3446
        %3448 = vmatprep.mubr.bf16.mxu0 %v1054
        %3449 = vmatmul.mubr.bf16.gmra.mrb[0].mxu0 %v1053
        %v3450 = vpop.f32.mrb[0].mxu0
        %v3451 = vadd.f32 %v3251, %v3450
        %v3452 = vpop.f32.mrb[0].mxu0
        %v3453 = vadd.f32 %v3253, %v3452
        %v3454 = vpop.f32.mrb[0].mxu0
        %v3455 = vadd.f32 %v3255, %v3454
        %v3456 = vpop.f32.mrb[0].mxu0
        %v3457 = vadd.f32 %v3257, %v3456
        %3458 = vmatprep.mubr.bf16.mxu0 %v1058
        %3459 = vmatmul.mubr.bf16.gmra.mrb[0].mxu0 %v1057
        %v3460 = vpop.f32.mrb[0].mxu0
        %v3461 = vadd.f32 %v3261, %v3460
        %v3462 = vpop.f32.mrb[0].mxu0
        %v3463 = vadd.f32 %v3263, %v3462
        %v3464 = vpop.f32.mrb[0].mxu0
        %v3465 = vadd.f32 %v3265, %v3464
        %v3466 = vpop.f32.mrb[0].mxu0
        %v3467 = vadd.f32 %v3267, %v3466
        %3468 = vmatprep.mubr.bf16.mxu0 %v1062
        %3469 = vmatmul.mubr.bf16.gmra.mrb[0].mxu0 %v1061
        %v3470 = vpop.f32.mrb[0].mxu0
        %v3471 = vadd.f32 %v3271, %v3470
        %v3472 = vpop.f32.mrb[0].mxu0
        %v3473 = vadd.f32 %v3273, %v3472
        %v3474 = vpop.f32.mrb[0].mxu0
        %v3475 = vadd.f32 %v3275, %v3474
        %v3476 = vpop.f32.mrb[0].mxu0
        %v3477 = vadd.f32 %v3277, %v3476
        %3478 = vmatprep.mubr.bf16.mxu0 %v1066
        %3479 = vmatmul.mubr.bf16.gmra.mrb[0].mxu0 %v1065
        %v3480 = vpop.f32.mrb[0].mxu0
        %v3481 = vadd.f32 %v3281, %v3480
        %v3482 = vpop.f32.mrb[0].mxu0
        %v3483 = vadd.f32 %v3283, %v3482
        %v3484 = vpop.f32.mrb[0].mxu0
        %v3485 = vadd.f32 %v3285, %v3484
        %v3486 = vpop.f32.mrb[0].mxu0
        %v3487 = vadd.f32 %v3287, %v3486
        %3488 = vmatprep.mubr.bf16.mxu0 %v1070
        %3489 = vmatmul.mubr.bf16.gmra.mrb[0].mxu0 %v1069
        %v3490 = vpop.f32.mrb[0].mxu0
        %v3491 = vpop.f32.mrb[0].mxu0
        %v3492 = vadd.f32 %v3292, %v3491
        %v3493 = vpop.f32.mrb[0].mxu0
        %v3494 = vpop.f32.mrb[0].mxu0
        %3495 = vdwg.mxu0
        %3496 = vmatprep.subr.bf16.mxu0 0
        %3497 = vmatpush1.bf16.msra.mxu0 %v2906
        %3498 = vmatprep.subr.bf16.mxu0 0
        %3499 = vmatpush1.bf16.msra.mxu0 %v2909
        %3500 = vmatprep.subr.bf16.mxu0 0
        %3501 = vmatpush1.bf16.msra.mxu0 %v2912
        %3502 = vmatprep.subr.bf16.mxu0 0
        %3503 = vmatpush1.bf16.msra.mxu0 %v2915
        %3504 = vmatprep.subr.bf16.mxu0 0
        %3505 = vmatpush1.bf16.msra.mxu0 %v2918
        %3506 = vmatprep.subr.bf16.mxu0 0
        %3507 = vmatpush1.bf16.msra.mxu0 %v2921
        %3508 = vmatprep.subr.bf16.mxu0 0
        %3509 = vmatpush1.bf16.msra.mxu0 %v2924
        %3510 = vmatprep.subr.bf16.mxu0 0
        %3511 = vmatpush1.bf16.msra.mxu0 %v2927
        %3512 = vmatprep.subr.bf16.mxu0 0
        %3513 = vmatpush1.bf16.msra.mxu0 %v2930
        %3514 = vmatprep.subr.bf16.mxu0 0
        %3515 = vmatpush1.bf16.msra.mxu0 %v2933
        %3516 = vmatprep.subr.bf16.mxu0 0
        %3517 = vmatpush1.bf16.msra.mxu0 %v2936
        %3518 = vmatprep.subr.bf16.mxu0 0
        %3519 = vmatpush1.bf16.msra.mxu0 %v2939
        %3520 = vmatprep.subr.bf16.mxu0 0
        %3521 = vmatpush1.bf16.msra.mxu0 %v2942
        %3522 = vmatprep.subr.bf16.mxu0 0
        %3523 = vmatpush1.bf16.msra.mxu0 %v2945
        %3524 = vmatprep.subr.bf16.mxu0 0
        %3525 = vmatpush1.bf16.msra.mxu0 %v2948
        %3526 = vmatprep.subr.bf16.mxu0 0
        %3527 = vmatpush1.bf16.msra.mxu0 %v2951
        %3528 = vmatprep.mubr.bf16.mxu0 %v1004
        %3529 = vmatmul.mubr.bf16.gmra.mrb[0].mxu0 %v1003
        %v3530 = vpop.f32.mrb[0].mxu0
        %v3531 = vadd.f32 %v2451, %v3530
        %v3532 = vpop.f32.mrb[0].mxu0
        %v3533 = vpop.f32.mrb[0].mxu0
        %v3534 = vadd.f32 %v2454, %v3533
        %v3535 = vpop.f32.mrb[0].mxu0
        %3536 = vmatprep.mubr.bf16.mxu0 %v1008
        %3537 = vmatmul.mubr.bf16.gmra.mrb[0].mxu0 %v1007
        %v3538 = vpop.f32.mrb[0].mxu0
        %v3539 = vadd.f32 %v2459, %v3538
        %v3540 = vpop.f32.mrb[0].mxu0
        %v3541 = vpop.f32.mrb[0].mxu0
        %v3542 = vadd.f32 %v2462, %v3541
        %v3543 = vpop.f32.mrb[0].mxu0
        %3544 = vmatprep.mubr.bf16.mxu0 %v1012
        %3545 = vmatmul.mubr.bf16.gmra.mrb[0].mxu0 %v1011
        %v3546 = vpop.f32.mrb[0].mxu0
        %v3547 = vadd.f32 %v2467, %v3546
        %v3548 = vpop.f32.mrb[0].mxu0
        %v3549 = vpop.f32.mrb[0].mxu0
        %v3550 = vadd.f32 %v2470, %v3549
        %v3551 = vpop.f32.mrb[0].mxu0
        %3552 = vmatprep.mubr.bf16.mxu0 %v1016
        %3553 = vmatmul.mubr.bf16.gmra.mrb[0].mxu0 %v1015
        %v3554 = vpop.f32.mrb[0].mxu0
        %v3555 = vadd.f32 %v2475, %v3554
        %v3556 = vpop.f32.mrb[0].mxu0
        %v3557 = vpop.f32.mrb[0].mxu0
        %v3558 = vadd.f32 %v2478, %v3557
        %v3559 = vpop.f32.mrb[0].mxu0
        %3560 = vmatprep.mubr.bf16.mxu0 %v1020
        %3561 = vmatmul.mubr.bf16.gmra.mrb[0].mxu0 %v1019
        %v3562 = vpop.f32.mrb[0].mxu0
        %v3563 = vadd.f32 %v2483, %v3562
        %v3564 = vpop.f32.mrb[0].mxu0
        %v3565 = vpop.f32.mrb[0].mxu0
        %v3566 = vadd.f32 %v2486, %v3565
        %v3567 = vpop.f32.mrb[0].mxu0
        %3568 = vmatprep.mubr.bf16.mxu0 %v1024
        %3569 = vmatmul.mubr.bf16.gmra.mrb[0].mxu0 %v1023
        %v3570 = vpop.f32.mrb[0].mxu0
        %v3571 = vadd.f32 %v2491, %v3570
        %v3572 = vpop.f32.mrb[0].mxu0
        %v3573 = vpop.f32.mrb[0].mxu0
        %v3574 = vadd.f32 %v2494, %v3573
        %v3575 = vpop.f32.mrb[0].mxu0
        %3576 = vmatprep.mubr.bf16.mxu0 %v1028
        %3577 = vmatmul.mubr.bf16.gmra.mrb[0].mxu0 %v1027
        %v3578 = vpop.f32.mrb[0].mxu0
        %v3579 = vadd.f32 %v2499, %v3578
        %v3580 = vpop.f32.mrb[0].mxu0
        %v3581 = vpop.f32.mrb[0].mxu0
        %v3582 = vadd.f32 %v2502, %v3581
        %v3583 = vpop.f32.mrb[0].mxu0
        %3584 = vmatprep.mubr.bf16.mxu0 %v1032
        %3585 = vmatmul.mubr.bf16.gmra.mrb[0].mxu0 %v1031
        %v3586 = vpop.f32.mrb[0].mxu0
        %v3587 = vadd.f32 %v2507, %v3586
        %v3588 = vpop.f32.mrb[0].mxu0
        %v3589 = vpop.f32.mrb[0].mxu0
        %v3590 = vadd.f32 %v2510, %v3589
        %v3591 = vpop.f32.mrb[0].mxu0
        %3592 = vmatprep.mubr.bf16.mxu0 %v1036
        %3593 = vmatmul.mubr.bf16.gmra.mrb[0].mxu0 %v1035
        %v3594 = vpop.f32.mrb[0].mxu0
        %v3595 = vadd.f32 %v2515, %v3594
        %v3596 = vpop.f32.mrb[0].mxu0
        %v3597 = vpop.f32.mrb[0].mxu0
        %v3598 = vadd.f32 %v2518, %v3597
        %v3599 = vpop.f32.mrb[0].mxu0
        %3600 = vmatprep.mubr.bf16.mxu0 %v1040
        %3601 = vmatmul.mubr.bf16.gmra.mrb[0].mxu0 %v1039
        %v3602 = vpop.f32.mrb[0].mxu0
        %v3603 = vadd.f32 %v2523, %v3602
        %v3604 = vpop.f32.mrb[0].mxu0
        %v3605 = vpop.f32.mrb[0].mxu0
        %v3606 = vadd.f32 %v2526, %v3605
        %v3607 = vpop.f32.mrb[0].mxu0
        %3608 = vmatprep.mubr.bf16.mxu0 %v1044
        %3609 = vmatmul.mubr.bf16.gmra.mrb[0].mxu0 %v1043
        %v3610 = vpop.f32.mrb[0].mxu0
        %v3611 = vadd.f32 %v2531, %v3610
        %v3612 = vpop.f32.mrb[0].mxu0
        %v3613 = vpop.f32.mrb[0].mxu0
        %v3614 = vadd.f32 %v2534, %v3613
        %v3615 = vpop.f32.mrb[0].mxu0
        %3616 = vmatprep.mubr.bf16.mxu0 %v1048
        %3617 = vmatmul.mubr.bf16.gmra.mrb[0].mxu0 %v1047
        %v3618 = vpop.f32.mrb[0].mxu0
        %v3619 = vadd.f32 %v2539, %v3618
        %v3620 = vpop.f32.mrb[0].mxu0
        %v3621 = vpop.f32.mrb[0].mxu0
        %v3622 = vadd.f32 %v2542, %v3621
        %v3623 = vpop.f32.mrb[0].mxu0
        %3624 = vmatprep.mubr.bf16.mxu0 %v1052
        %3625 = vmatmul.mubr.bf16.gmra.mrb[0].mxu0 %v1051
        %v3626 = vpop.f32.mrb[0].mxu0
        %v3627 = vadd.f32 %v2547, %v3626
        %v3628 = vpop.f32.mrb[0].mxu0
        %v3629 = vpop.f32.mrb[0].mxu0
        %v3630 = vadd.f32 %v2550, %v3629
        %v3631 = vpop.f32.mrb[0].mxu0
        %3632 = vmatprep.mubr.bf16.mxu0 %v1056
        %3633 = vmatmul.mubr.bf16.gmra.mrb[0].mxu0 %v1055
        %v3634 = vpop.f32.mrb[0].mxu0
        %v3635 = vadd.f32 %v2555, %v3634
        %v3636 = vpop.f32.mrb[0].mxu0
        %v3637 = vpop.f32.mrb[0].mxu0
        %v3638 = vadd.f32 %v2558, %v3637
        %v3639 = vpop.f32.mrb[0].mxu0
        %3640 = vmatprep.mubr.bf16.mxu0 %v1060
        %3641 = vmatmul.mubr.bf16.gmra.mrb[0].mxu0 %v1059
        %v3642 = vpop.f32.mrb[0].mxu0
        %v3643 = vadd.f32 %v2563, %v3642
        %v3644 = vpop.f32.mrb[0].mxu0
        %v3645 = vpop.f32.mrb[0].mxu0
        %v3646 = vadd.f32 %v2566, %v3645
        %v3647 = vpop.f32.mrb[0].mxu0
        %3648 = vmatprep.mubr.bf16.mxu0 %v1064
        %3649 = vmatmul.mubr.bf16.gmra.mrb[0].mxu0 %v1063
        %v3650 = vpop.f32.mrb[0].mxu0
        %v3651 = vadd.f32 %v2571, %v3650
        %v3652 = vpop.f32.mrb[0].mxu0
        %v3653 = vpop.f32.mrb[0].mxu0
        %v3654 = vadd.f32 %v2574, %v3653
        %v3655 = vpop.f32.mrb[0].mxu0
        %3656 = vmatprep.mubr.bf16.mxu0 %v1068
        %3657 = vmatmul.mubr.bf16.gmra.mrb[0].mxu0 %v1067
        %v3658 = vpop.f32.mrb[0].mxu0
        %v3659 = vadd.f32 %v2579, %v3658
        %v3660 = vpop.f32.mrb[0].mxu0
        %v3661 = vpop.f32.mrb[0].mxu0
        %v3662 = vpop.f32.mrb[0].mxu0
        %3663 = vdwg.mxu0
        %3664 = vmatprep.subr.bf16.mxu0 0
        %3665 = vmatpush1.bf16.msra.mxu0 %v2954
        %3666 = vmatprep.subr.bf16.mxu0 0
        %3667 = vmatpush1.bf16.msra.mxu0 %v2957
        %3668 = vmatprep.subr.bf16.mxu0 0
        %3669 = vmatpush1.bf16.msra.mxu0 %v2960
        %3670 = vmatprep.subr.bf16.mxu0 0
        %3671 = vmatpush1.bf16.msra.mxu0 %v2963
        %3672 = vmatprep.subr.bf16.mxu0 0
        %3673 = vmatpush1.bf16.msra.mxu0 %v2966
        %3674 = vmatprep.subr.bf16.mxu0 0
        %3675 = vmatpush1.bf16.msra.mxu0 %v2969
        %3676 = vmatprep.subr.bf16.mxu0 0
        %3677 = vmatpush1.bf16.msra.mxu0 %v2972
        %3678 = vmatprep.subr.bf16.mxu0 0
        %3679 = vmatpush1.bf16.msra.mxu0 %v2975
        %3680 = vmatprep.subr.bf16.mxu0 0
        %3681 = vmatpush1.bf16.msra.mxu0 %v2978
        %3682 = vmatprep.subr.bf16.mxu0 0
        %3683 = vmatpush1.bf16.msra.mxu0 %v2981
        %3684 = vmatprep.subr.bf16.mxu0 0
        %3685 = vmatpush1.bf16.msra.mxu0 %v2984
        %3686 = vmatprep.subr.bf16.mxu0 0
        %3687 = vmatpush1.bf16.msra.mxu0 %v2987
        %3688 = vmatprep.subr.bf16.mxu0 0
        %3689 = vmatpush1.bf16.msra.mxu0 %v2990
        %3690 = vmatprep.subr.bf16.mxu0 0
        %3691 = vmatpush1.bf16.msra.mxu0 %v2993
        %3692 = vmatprep.subr.bf16.mxu0 0
        %3693 = vmatpush1.bf16.msra.mxu0 %v2996
        %3694 = vmatprep.subr.bf16.mxu0 0
        %3695 = vmatpush1.bf16.msra.mxu0 %v2999
        %3696 = vmatprep.mubr.bf16.mxu0 %v1006
        %3697 = vmatmul.mubr.bf16.gmra.mrb[0].mxu0 %v1005
        %v3698 = vpop.f32.mrb[0].mxu0
        %v3699 = vadd.f32 %v3531, %v3698
        %v3700 = vpop.f32.mrb[0].mxu0
        %v3701 = vpop.f32.mrb[0].mxu0
        %v3702 = vadd.f32 %v3534, %v3701
        %v3703 = vpop.f32.mrb[0].mxu0
        %3704 = vmatprep.mubr.bf16.mxu0 %v1010
        %3705 = vmatmul.mubr.bf16.gmra.mrb[0].mxu0 %v1009
        %v3706 = vpop.f32.mrb[0].mxu0
        %v3707 = vadd.f32 %v3539, %v3706
        %v3708 = vpop.f32.mrb[0].mxu0
        %v3709 = vpop.f32.mrb[0].mxu0
        %v3710 = vadd.f32 %v3542, %v3709
        %v3711 = vpop.f32.mrb[0].mxu0
        %3712 = vmatprep.mubr.bf16.mxu0 %v1014
        %3713 = vmatmul.mubr.bf16.gmra.mrb[0].mxu0 %v1013
        %v3714 = vpop.f32.mrb[0].mxu0
        %v3715 = vadd.f32 %v3547, %v3714
        %v3716 = vpop.f32.mrb[0].mxu0
        %v3717 = vpop.f32.mrb[0].mxu0
        %v3718 = vadd.f32 %v3550, %v3717
        %v3719 = vpop.f32.mrb[0].mxu0
        %3720 = vmatprep.mubr.bf16.mxu0 %v1018
        %3721 = vmatmul.mubr.bf16.gmra.mrb[0].mxu0 %v1017
        %v3722 = vpop.f32.mrb[0].mxu0
        %v3723 = vadd.f32 %v3555, %v3722
        %v3724 = vpop.f32.mrb[0].mxu0
        %v3725 = vpop.f32.mrb[0].mxu0
        %v3726 = vadd.f32 %v3558, %v3725
        %v3727 = vpop.f32.mrb[0].mxu0
        %3728 = vmatprep.mubr.bf16.mxu0 %v1022
        %3729 = vmatmul.mubr.bf16.gmra.mrb[0].mxu0 %v1021
        %v3730 = vpop.f32.mrb[0].mxu0
        %v3731 = vadd.f32 %v3563, %v3730
        %v3732 = vpop.f32.mrb[0].mxu0
        %v3733 = vpop.f32.mrb[0].mxu0
        %v3734 = vadd.f32 %v3566, %v3733
        %v3735 = vpop.f32.mrb[0].mxu0
        %3736 = vmatprep.mubr.bf16.mxu0 %v1026
        %3737 = vmatmul.mubr.bf16.gmra.mrb[0].mxu0 %v1025
        %v3738 = vpop.f32.mrb[0].mxu0
        %v3739 = vadd.f32 %v3571, %v3738
        %v3740 = vpop.f32.mrb[0].mxu0
        %v3741 = vpop.f32.mrb[0].mxu0
        %v3742 = vadd.f32 %v3574, %v3741
        %v3743 = vpop.f32.mrb[0].mxu0
        %3744 = vmatprep.mubr.bf16.mxu0 %v1030
        %3745 = vmatmul.mubr.bf16.gmra.mrb[0].mxu0 %v1029
        %v3746 = vpop.f32.mrb[0].mxu0
        %v3747 = vadd.f32 %v3579, %v3746
        %v3748 = vpop.f32.mrb[0].mxu0
        %v3749 = vpop.f32.mrb[0].mxu0
        %v3750 = vadd.f32 %v3582, %v3749
        %v3751 = vpop.f32.mrb[0].mxu0
        %3752 = vmatprep.mubr.bf16.mxu0 %v1034
        %3753 = vmatmul.mubr.bf16.gmra.mrb[0].mxu0 %v1033
        %v3754 = vpop.f32.mrb[0].mxu0
        %v3755 = vadd.f32 %v3587, %v3754
        %v3756 = vpop.f32.mrb[0].mxu0
        %v3757 = vpop.f32.mrb[0].mxu0
        %v3758 = vadd.f32 %v3590, %v3757
        %v3759 = vpop.f32.mrb[0].mxu0
        %3760 = vmatprep.mubr.bf16.mxu0 %v1038
        %3761 = vmatmul.mubr.bf16.gmra.mrb[0].mxu0 %v1037
        %v3762 = vpop.f32.mrb[0].mxu0
        %v3763 = vadd.f32 %v3595, %v3762
        %v3764 = vpop.f32.mrb[0].mxu0
        %v3765 = vpop.f32.mrb[0].mxu0
        %v3766 = vadd.f32 %v3598, %v3765
        %v3767 = vpop.f32.mrb[0].mxu0
        %3768 = vmatprep.mubr.bf16.mxu0 %v1042
        %3769 = vmatmul.mubr.bf16.gmra.mrb[0].mxu0 %v1041
        %v3770 = vpop.f32.mrb[0].mxu0
        %v3771 = vadd.f32 %v3603, %v3770
        %v3772 = vpop.f32.mrb[0].mxu0
        %v3773 = vpop.f32.mrb[0].mxu0
        %v3774 = vadd.f32 %v3606, %v3773
        %v3775 = vpop.f32.mrb[0].mxu0
        %3776 = vmatprep.mubr.bf16.mxu0 %v1046
        %3777 = vmatmul.mubr.bf16.gmra.mrb[0].mxu0 %v1045
        %v3778 = vpop.f32.mrb[0].mxu0
        %v3779 = vadd.f32 %v3611, %v3778
        %v3780 = vpop.f32.mrb[0].mxu0
        %v3781 = vpop.f32.mrb[0].mxu0
        %v3782 = vadd.f32 %v3614, %v3781
        %v3783 = vpop.f32.mrb[0].mxu0
        %3784 = vmatprep.mubr.bf16.mxu0 %v1050
        %3785 = vmatmul.mubr.bf16.gmra.mrb[0].mxu0 %v1049
        %v3786 = vpop.f32.mrb[0].mxu0
        %v3787 = vadd.f32 %v3619, %v3786
        %v3788 = vpop.f32.mrb[0].mxu0
        %v3789 = vpop.f32.mrb[0].mxu0
        %v3790 = vadd.f32 %v3622, %v3789
        %v3791 = vpop.f32.mrb[0].mxu0
        %3792 = vmatprep.mubr.bf16.mxu0 %v1054
        %3793 = vmatmul.mubr.bf16.gmra.mrb[0].mxu0 %v1053
        %v3794 = vpop.f32.mrb[0].mxu0
        %v3795 = vadd.f32 %v3627, %v3794
        %v3796 = vpop.f32.mrb[0].mxu0
        %v3797 = vpop.f32.mrb[0].mxu0
        %v3798 = vadd.f32 %v3630, %v3797
        %v3799 = vpop.f32.mrb[0].mxu0
        %3800 = vmatprep.mubr.bf16.mxu0 %v1058
        %3801 = vmatmul.mubr.bf16.gmra.mrb[0].mxu0 %v1057
        %v3802 = vpop.f32.mrb[0].mxu0
        %v3803 = vadd.f32 %v3635, %v3802
        %v3804 = vpop.f32.mrb[0].mxu0
        %v3805 = vpop.f32.mrb[0].mxu0
        %v3806 = vadd.f32 %v3638, %v3805
        %v3807 = vpop.f32.mrb[0].mxu0
        %3808 = vmatprep.mubr.bf16.mxu0 %v1062
        %3809 = vmatmul.mubr.bf16.gmra.mrb[0].mxu0 %v1061
        %v3810 = vpop.f32.mrb[0].mxu0
        %v3811 = vadd.f32 %v3643, %v3810
        %v3812 = vpop.f32.mrb[0].mxu0
        %v3813 = vpop.f32.mrb[0].mxu0
        %v3814 = vadd.f32 %v3646, %v3813
        %v3815 = vpop.f32.mrb[0].mxu0
        %3816 = vmatprep.mubr.bf16.mxu0 %v1066
        %3817 = vmatmul.mubr.bf16.gmra.mrb[0].mxu0 %v1065
        %v3818 = vpop.f32.mrb[0].mxu0
        %v3819 = vadd.f32 %v3651, %v3818
        %v3820 = vpop.f32.mrb[0].mxu0
        %v3821 = vpop.f32.mrb[0].mxu0
        %v3822 = vadd.f32 %v3654, %v3821
        %v3823 = vpop.f32.mrb[0].mxu0
        %3824 = vmatprep.mubr.bf16.mxu0 %v1070
        %3825 = vmatmul.mubr.bf16.gmra.mrb[0].mxu0 %v1069
        %v3826 = vpop.f32.mrb[0].mxu0
        %v3827 = vadd.f32 %v3659, %v3826
        %v3828 = vpop.f32.mrb[0].mxu0
        %v3829 = vpop.f32.mrb[0].mxu0
        %v3830 = vpop.f32.mrb[0].mxu0
        %3831 = vdwg.mxu0
        %v3832 = vld [vmem:[#allocation2 + $0x80] sm:$0xff]
        %v3833 = vld [vmem:[#allocation2 + $0x88] sm:$0xff]
        %v3834 = vld [vmem:[#allocation2 + $0x90] sm:$0xff]
        %v3835 = vld [vmem:[#allocation2 + $0x98] sm:$0xff]
        %v3836 = vld [vmem:[#allocation2 + $0xa0] sm:$0xff]
        %v3837 = vld [vmem:[#allocation2 + $0xa8] sm:$0xff]
        %v3838 = vld [vmem:[#allocation2 + $0xb0] sm:$0xff]
        %v3839 = vld [vmem:[#allocation2 + $0xb8] sm:$0xff]
        %v3840 = vld [vmem:[#allocation2 + $0xc0] sm:$0xff]
        %v3841 = vld [vmem:[#allocation2 + $0xc8] sm:$0xff]
        %v3842 = vld [vmem:[#allocation2 + $0xd0] sm:$0xff]
        %v3843 = vld [vmem:[#allocation2 + $0xd8] sm:$0xff]
        %v3844 = vld [vmem:[#allocation2 + $0xe0] sm:$0xff]
        %v3845 = vld [vmem:[#allocation2 + $0xe8] sm:$0xff]
        %v3846 = vld [vmem:[#allocation2 + $0xf0] sm:$0xff]
        %v3847 = vld [vmem:[#allocation2 + $0xf8] sm:$0xff]
        %v3848 = vld [vmem:[#allocation2 + $0x100] sm:$0xff]
        %v3849 = vld [vmem:[#allocation2 + $0x108] sm:$0xff]
        %v3850 = vld [vmem:[#allocation2 + $0x110] sm:$0xff]
        %v3851 = vld [vmem:[#allocation2 + $0x118] sm:$0xff]
        %v3852 = vld [vmem:[#allocation2 + $0x120] sm:$0xff]
        %v3853 = vld [vmem:[#allocation2 + $0x128] sm:$0xff]
        %v3854 = vld [vmem:[#allocation2 + $0x130] sm:$0xff]
        %v3855 = vld [vmem:[#allocation2 + $0x138] sm:$0xff]
        %v3856 = vld [vmem:[#allocation2 + $0x140] sm:$0xff]
        %v3857 = vld [vmem:[#allocation2 + $0x148] sm:$0xff]
        %v3858 = vld [vmem:[#allocation2 + $0x150] sm:$0xff]
        %v3859 = vld [vmem:[#allocation2 + $0x158] sm:$0xff]
        %v3860 = vld [vmem:[#allocation2 + $0x160] sm:$0xff]
        %v3861 = vld [vmem:[#allocation2 + $0x168] sm:$0xff]
        %v3862 = vld [vmem:[#allocation2 + $0x170] sm:$0xff]
        %v3863 = vld [vmem:[#allocation2 + $0x178] sm:$0xff]
        %v3864 = vld [vmem:[#allocation2 + $0x180] sm:$0xff]
        %v3865 = vld [vmem:[#allocation2 + $0x188] sm:$0xff]
        %v3866 = vld [vmem:[#allocation2 + $0x190] sm:$0xff]
        %v3867 = vld [vmem:[#allocation2 + $0x198] sm:$0xff]
        %v3868 = vld [vmem:[#allocation2 + $0x1a0] sm:$0xff]
        %v3869 = vld [vmem:[#allocation2 + $0x1a8] sm:$0xff]
        %v3870 = vld [vmem:[#allocation2 + $0x1b0] sm:$0xff]
        %v3871 = vld [vmem:[#allocation2 + $0x1b8] sm:$0xff]
        %v3872 = vld [vmem:[#allocation2 + $0x1c0] sm:$0xff]
        %v3873 = vld [vmem:[#allocation2 + $0x1c8] sm:$0xff]
        %v3874 = vld [vmem:[#allocation2 + $0x1d0] sm:$0xff]
        %v3875 = vld [vmem:[#allocation2 + $0x1d8] sm:$0xff]
        %v3876 = vld [vmem:[#allocation2 + $0x1e0] sm:$0xff]
        %v3877 = vld [vmem:[#allocation2 + $0x1e8] sm:$0xff]
        %v3878 = vld [vmem:[#allocation2 + $0x1f0] sm:$0xff]
        %v3879 = vld [vmem:[#allocation2 + $0x1f8] sm:$0xff]
        %v3880 = vld [vmem:[#allocation2 + $0x200] sm:$0xff]
        %v3881 = vld [vmem:[#allocation2 + $0x208] sm:$0xff]
        %v3882 = vld [vmem:[#allocation2 + $0x210] sm:$0xff]
        %v3883 = vld [vmem:[#allocation2 + $0x218] sm:$0xff]
        %v3884 = vld [vmem:[#allocation2 + $0x220] sm:$0xff]
        %v3885 = vld [vmem:[#allocation2 + $0x228] sm:$0xff]
        %v3886 = vld [vmem:[#allocation2 + $0x230] sm:$0xff]
        %v3887 = vld [vmem:[#allocation2 + $0x238] sm:$0xff]
        %v3888 = vld [vmem:[#allocation2 + $0x240] sm:$0xff]
        %v3889 = vld [vmem:[#allocation2 + $0x248] sm:$0xff]
        %v3890 = vld [vmem:[#allocation2 + $0x250] sm:$0xff]
        %v3891 = vld [vmem:[#allocation2 + $0x258] sm:$0xff]
        %v3892 = vld [vmem:[#allocation2 + $0x260] sm:$0xff]
        %v3893 = vld [vmem:[#allocation2 + $0x268] sm:$0xff]
        %v3894 = vld [vmem:[#allocation2 + $0x270] sm:$0xff]
        %v3895 = vld [vmem:[#allocation2 + $0x278] sm:$0xff]
        %v3896 = vld [vmem:[#allocation2 + $0x280] sm:$0xff]
        %v3897 = vld [vmem:[#allocation2 + $0x288] sm:$0xff]
        %v3898 = vld [vmem:[#allocation2 + $0x290] sm:$0xff]
        %v3899 = vld [vmem:[#allocation2 + $0x298] sm:$0xff]
        %s3900 = scalar_lea.vmem [#allocation8], 1536
        %v3901 = vld [vmem:[%s3900] sm:$0xff]
        %v3902 = vld [vmem:[%s3900 + $0x8] sm:$0xf]
        %v3903 = vld [vmem:[%s3900 + $0xc] sm:$0xff]
        %v3904 = vld [vmem:[%s3900 + $0x14] sm:$0xf]
        %v3905 = vld [vmem:[%s3900 + $0x18] sm:$0xff]
        %v3906 = vld [vmem:[%s3900 + $0x20] sm:$0xf]
        %v3907 = vld [vmem:[%s3900 + $0x24] sm:$0xff]
        %v3908 = vld [vmem:[%s3900 + $0x2c] sm:$0xf]
        %v3909 = vld [vmem:[%s3900 + $0x30] sm:$0xff]
        %v3910 = vld [vmem:[%s3900 + $0x38] sm:$0xf]
        %v3911 = vld [vmem:[%s3900 + $0x3c] sm:$0xff]
        %v3912 = vld [vmem:[%s3900 + $0x44] sm:$0xf]
        %v3913 = vld [vmem:[%s3900 + $0x48] sm:$0xff]
        %v3914 = vld [vmem:[%s3900 + $0x50] sm:$0xf]
        %v3915 = vld [vmem:[%s3900 + $0x54] sm:$0xff]
        %v3916 = vld [vmem:[%s3900 + $0x5c] sm:$0xf]
        %v3917 = vld [vmem:[%s3900 + $0x60] sm:$0xff]
        %v3918 = vld [vmem:[%s3900 + $0x68] sm:$0xf]
        %v3919 = vld [vmem:[%s3900 + $0x6c] sm:$0xff]
        %v3920 = vld [vmem:[%s3900 + $0x74] sm:$0xf]
        %v3921 = vld [vmem:[%s3900 + $0x78] sm:$0xff]
        %v3922 = vld [vmem:[%s3900 + $0x80] sm:$0xf]
        %v3923 = vld [vmem:[%s3900 + $0x84] sm:$0xff]
        %v3924 = vld [vmem:[%s3900 + $0x8c] sm:$0xf]
        %v3925 = vld [vmem:[%s3900 + $0x90] sm:$0xff]
        %v3926 = vld [vmem:[%s3900 + $0x98] sm:$0xf]
        %v3927 = vld [vmem:[%s3900 + $0x9c] sm:$0xff]
        %v3928 = vld [vmem:[%s3900 + $0xa4] sm:$0xf]
        %v3929 = vld [vmem:[%s3900 + $0xa8] sm:$0xff]
        %v3930 = vld [vmem:[%s3900 + $0xb0] sm:$0xf]
        %v3931 = vld [vmem:[%s3900 + $0xb4] sm:$0xff]
        %v3932 = vld [vmem:[%s3900 + $0xbc] sm:$0xf]
        %v3933 = vld [vmem:[%s3900 + $0xc0] sm:$0xff]
        %v3934 = vld [vmem:[%s3900 + $0xc8] sm:$0xf]
        %v3935 = vld [vmem:[%s3900 + $0xcc] sm:$0xff]
        %v3936 = vld [vmem:[%s3900 + $0xd4] sm:$0xf]
        %v3937 = vld [vmem:[%s3900 + $0xd8] sm:$0xff]
        %v3938 = vld [vmem:[%s3900 + $0xe0] sm:$0xf]
        %v3939 = vld [vmem:[%s3900 + $0xe4] sm:$0xff]
        %v3940 = vld [vmem:[%s3900 + $0xec] sm:$0xf]
        %v3941 = vld [vmem:[%s3900 + $0xf0] sm:$0xff]
        %v3942 = vld [vmem:[%s3900 + $0xf8] sm:$0xf]
        %v3943 = vld [vmem:[%s3900 + $0xfc] sm:$0xff]
        %v3944 = vld [vmem:[%s3900 + $0x104] sm:$0xf]
        %v3945 = vld [vmem:[%s3900 + $0x108] sm:$0xff]
        %v3946 = vld [vmem:[%s3900 + $0x110] sm:$0xf]
        %v3947 = vld [vmem:[%s3900 + $0x114] sm:$0xff]
        %v3948 = vld [vmem:[%s3900 + $0x11c] sm:$0xf]
        %v3949 = vld [vmem:[%s3900 + $0x120] sm:$0xff]
        %v3950 = vld [vmem:[%s3900 + $0x128] sm:$0xf]
        %v3951 = vld [vmem:[%s3900 + $0x12c] sm:$0xff]
        %v3952 = vld [vmem:[%s3900 + $0x134] sm:$0xf]
        %v3953 = vld [vmem:[%s3900 + $0x138] sm:$0xff]
        %v3954 = vld [vmem:[%s3900 + $0x140] sm:$0xf]
        %v3955 = vld [vmem:[%s3900 + $0x144] sm:$0xff]
        %v3956 = vld [vmem:[%s3900 + $0x14c] sm:$0xf]
        %v3957 = vld [vmem:[%s3900 + $0x150] sm:$0xff]
        %v3958 = vld [vmem:[%s3900 + $0x158] sm:$0xf]
        %v3959 = vld [vmem:[%s3900 + $0x15c] sm:$0xff]
        %v3960 = vld [vmem:[%s3900 + $0x164] sm:$0xf]
        %v3961 = vld [vmem:[%s3900 + $0x168] sm:$0xff]
        %v3962 = vld [vmem:[%s3900 + $0x170] sm:$0xf]
        %v3963 = vld [vmem:[%s3900 + $0x174] sm:$0xff]
        %v3964 = vld [vmem:[%s3900 + $0x17c] sm:$0xf]
        %v3965 = vld [vmem:[%s3900 + $0x180] sm:$0xff]
        %v3966 = vld [vmem:[%s3900 + $0x188] sm:$0xf]
        %v3967 = vld [vmem:[%s3900 + $0x18c] sm:$0xff]
        %v3968 = vld [vmem:[%s3900 + $0x194] sm:$0xf]
        %v3969 = vld [vmem:[%s3900 + $0x198] sm:$0xff]
        %v3970 = vld [vmem:[%s3900 + $0x1a0] sm:$0xf]
        %v3971 = vld [vmem:[%s3900 + $0x1a4] sm:$0xff]
        %v3972 = vld [vmem:[%s3900 + $0x1ac] sm:$0xf]
        %v3973 = vld [vmem:[%s3900 + $0x1b0] sm:$0xff]
        %v3974 = vld [vmem:[%s3900 + $0x1b8] sm:$0xf]
        %v3975 = vld [vmem:[%s3900 + $0x1bc] sm:$0xff]
        %v3976 = vld [vmem:[%s3900 + $0x1c4] sm:$0xf]
        %v3977 = vld [vmem:[%s3900 + $0x1c8] sm:$0xff]
        %v3978 = vld [vmem:[%s3900 + $0x1d0] sm:$0xf]
        %v3979 = vld [vmem:[%s3900 + $0x1d4] sm:$0xff]
        %v3980 = vld [vmem:[%s3900 + $0x1dc] sm:$0xf]
        %v3981 = vld [vmem:[%s3900 + $0x1e0] sm:$0xff]
        %v3982 = vld [vmem:[%s3900 + $0x1e8] sm:$0xf]
        %v3983 = vld [vmem:[%s3900 + $0x1ec] sm:$0xff]
        %v3984 = vld [vmem:[%s3900 + $0x1f4] sm:$0xf]
        %v3985 = vld [vmem:[%s3900 + $0x1f8] sm:$0xff]
        %v3986 = vld [vmem:[%s3900 + $0x200] sm:$0xf]
        %v3987 = vld [vmem:[%s3900 + $0x204] sm:$0xff]
        %v3988 = vld [vmem:[%s3900 + $0x20c] sm:$0xf]
        %v3989 = vld [vmem:[%s3900 + $0x210] sm:$0xff]
        %v3990 = vld [vmem:[%s3900 + $0x218] sm:$0xf]
        %v3991 = vld [vmem:[%s3900 + $0x21c] sm:$0xff]
        %v3992 = vld [vmem:[%s3900 + $0x224] sm:$0xf]
        %v3993 = vld [vmem:[%s3900 + $0x228] sm:$0xff]
        %v3994 = vld [vmem:[%s3900 + $0x230] sm:$0xf]
        %v3995 = vld [vmem:[%s3900 + $0x234] sm:$0xff]
        %v3996 = vld [vmem:[%s3900 + $0x23c] sm:$0xf]
        %v3997 = vld [vmem:[%s3900 + $0x240] sm:$0xff]
        %v3998 = vld [vmem:[%s3900 + $0x248] sm:$0xf]
        %v3999 = vld [vmem:[%s3900 + $0x24c] sm:$0xff]
        %v4000 = vld [vmem:[%s3900 + $0x254] sm:$0xf]
        %v4001 = vld [vmem:[%s3900 + $0x258] sm:$0xff]
        %v4002 = vld [vmem:[%s3900 + $0x260] sm:$0xf]
        %v4003 = vld [vmem:[%s3900 + $0x264] sm:$0xff]
        %v4004 = vld [vmem:[%s3900 + $0x26c] sm:$0xf]
        %v4005 = vld [vmem:[%s3900 + $0x270] sm:$0xff]
        %v4006 = vld [vmem:[%s3900 + $0x278] sm:$0xf]
        %v4007 = vld [vmem:[%s3900 + $0x27c] sm:$0xff]
        %v4008 = vld [vmem:[%s3900 + $0x284] sm:$0xf]
        %v4009 = vld [vmem:[%s3900 + $0x288] sm:$0xff]
        %v4010 = vld [vmem:[%s3900 + $0x290] sm:$0xf]
        %v4011 = vld [vmem:[%s3900 + $0x294] sm:$0xff]
        %v4012 = vld [vmem:[%s3900 + $0x29c] sm:$0xf]
        %v4013 = vld [vmem:[%s3900 + $0x2a0] sm:$0xff]
        %v4014 = vld [vmem:[%s3900 + $0x2a8] sm:$0xf]
        %v4015 = vld [vmem:[%s3900 + $0x2ac] sm:$0xff]
        %v4016 = vld [vmem:[%s3900 + $0x2b4] sm:$0xf]
        %v4017 = vld [vmem:[%s3900 + $0x2b8] sm:$0xff]
        %v4018 = vld [vmem:[%s3900 + $0x2c0] sm:$0xf]
        %v4019 = vld [vmem:[%s3900 + $0x2c4] sm:$0xff]
        %v4020 = vld [vmem:[%s3900 + $0x2cc] sm:$0xf]
        %v4021 = vld [vmem:[%s3900 + $0x2d0] sm:$0xff]
        %v4022 = vld [vmem:[%s3900 + $0x2d8] sm:$0xf]
        %v4023 = vld [vmem:[%s3900 + $0x2dc] sm:$0xff]
        %v4024 = vld [vmem:[%s3900 + $0x2e4] sm:$0xf]
        %v4025 = vld [vmem:[%s3900 + $0x2e8] sm:$0xff]
        %v4026 = vld [vmem:[%s3900 + $0x2f0] sm:$0xf]
        %v4027 = vld [vmem:[%s3900 + $0x2f4] sm:$0xff]
        %v4028 = vld [vmem:[%s3900 + $0x2fc] sm:$0xf]
        %v4157 = vunpack.c.l.b16 %v3901
        %v4158 = vunpack.c.h.b16 %v3901
        %v4159 = vunpack.c.l.b16 %v3902
        %v4160 = vunpack.c.l.b16 %v3903
        %v4161 = vunpack.c.h.b16 %v3903
        %v4162 = vunpack.c.l.b16 %v3904
        %v4163 = vunpack.c.l.b16 %v3905
        %v4164 = vunpack.c.h.b16 %v3905
        %v4165 = vunpack.c.l.b16 %v3906
        %v4166 = vunpack.c.l.b16 %v3907
        %v4167 = vunpack.c.h.b16 %v3907
        %v4168 = vunpack.c.l.b16 %v3908
        %v4169 = vunpack.c.l.b16 %v3909
        %v4170 = vunpack.c.h.b16 %v3909
        %v4171 = vunpack.c.l.b16 %v3910
        %v4172 = vunpack.c.l.b16 %v3911
        %v4173 = vunpack.c.h.b16 %v3911
        %v4174 = vunpack.c.l.b16 %v3912
        %v4175 = vunpack.c.l.b16 %v3913
        %v4176 = vunpack.c.h.b16 %v3913
        %v4177 = vunpack.c.l.b16 %v3914
        %v4178 = vunpack.c.l.b16 %v3915
        %v4179 = vunpack.c.h.b16 %v3915
        %v4180 = vunpack.c.l.b16 %v3916
        %v4181 = vunpack.c.l.b16 %v3917
        %v4182 = vunpack.c.h.b16 %v3917
        %v4183 = vunpack.c.l.b16 %v3918
        %v4184 = vunpack.c.l.b16 %v3919
        %v4185 = vunpack.c.h.b16 %v3919
        %v4186 = vunpack.c.l.b16 %v3920
        %v4187 = vunpack.c.l.b16 %v3921
        %v4188 = vunpack.c.h.b16 %v3921
        %v4189 = vunpack.c.l.b16 %v3922
        %v4190 = vunpack.c.l.b16 %v3923
        %v4191 = vunpack.c.h.b16 %v3923
        %v4192 = vunpack.c.l.b16 %v3924
        %v4193 = vunpack.c.l.b16 %v3925
        %v4194 = vunpack.c.h.b16 %v3925
        %v4195 = vunpack.c.l.b16 %v3926
        %v4196 = vunpack.c.l.b16 %v3927
        %v4197 = vunpack.c.h.b16 %v3927
        %v4198 = vunpack.c.l.b16 %v3928
        %v4199 = vunpack.c.l.b16 %v3929
        %v4200 = vunpack.c.h.b16 %v3929
        %v4201 = vunpack.c.l.b16 %v3930
        %v4202 = vunpack.c.l.b16 %v3931
        %v4203 = vunpack.c.h.b16 %v3931
        %v4204 = vunpack.c.l.b16 %v3932
        %v4205 = vunpack.c.l.b16 %v3933
        %v4206 = vunpack.c.h.b16 %v3933
        %v4207 = vunpack.c.l.b16 %v3934
        %v4208 = vunpack.c.l.b16 %v3935
        %v4209 = vunpack.c.h.b16 %v3935
        %v4210 = vunpack.c.l.b16 %v3936
        %v4211 = vunpack.c.l.b16 %v3937
        %v4212 = vunpack.c.h.b16 %v3937
        %v4213 = vunpack.c.l.b16 %v3938
        %v4214 = vunpack.c.l.b16 %v3939
        %v4215 = vunpack.c.h.b16 %v3939
        %v4216 = vunpack.c.l.b16 %v3940
        %v4217 = vunpack.c.l.b16 %v3941
        %v4218 = vunpack.c.h.b16 %v3941
        %v4219 = vunpack.c.l.b16 %v3942
        %v4220 = vunpack.c.l.b16 %v3943
        %v4221 = vunpack.c.h.b16 %v3943
        %v4222 = vunpack.c.l.b16 %v3944
        %v4223 = vunpack.c.l.b16 %v3945
        %v4224 = vunpack.c.h.b16 %v3945
        %v4225 = vunpack.c.l.b16 %v3946
        %v4226 = vunpack.c.l.b16 %v3947
        %v4227 = vunpack.c.h.b16 %v3947
        %v4228 = vunpack.c.l.b16 %v3948
        %v4229 = vunpack.c.l.b16 %v3949
        %v4230 = vunpack.c.h.b16 %v3949
        %v4231 = vunpack.c.l.b16 %v3950
        %v4232 = vunpack.c.l.b16 %v3951
        %v4233 = vunpack.c.h.b16 %v3951
        %v4234 = vunpack.c.l.b16 %v3952
        %v4235 = vunpack.c.l.b16 %v3953
        %v4236 = vunpack.c.h.b16 %v3953
        %v4237 = vunpack.c.l.b16 %v3954
        %v4238 = vunpack.c.l.b16 %v3955
        %v4239 = vunpack.c.h.b16 %v3955
        %v4240 = vunpack.c.l.b16 %v3956
        %v4241 = vunpack.c.l.b16 %v3957
        %v4242 = vunpack.c.h.b16 %v3957
        %v4243 = vunpack.c.l.b16 %v3958
        %v4244 = vunpack.c.l.b16 %v3959
        %v4245 = vunpack.c.h.b16 %v3959
        %v4246 = vunpack.c.l.b16 %v3960
        %v4247 = vunpack.c.l.b16 %v3961
        %v4248 = vunpack.c.h.b16 %v3961
        %v4249 = vunpack.c.l.b16 %v3962
        %v4250 = vunpack.c.l.b16 %v3963
        %v4251 = vunpack.c.h.b16 %v3963
        %v4252 = vunpack.c.l.b16 %v3964
        %v4253 = vunpack.c.l.b16 %v3965
        %v4254 = vunpack.c.h.b16 %v3965
        %v4255 = vunpack.c.l.b16 %v3966
        %v4256 = vunpack.c.l.b16 %v3967
        %v4257 = vunpack.c.h.b16 %v3967
        %v4258 = vunpack.c.l.b16 %v3968
        %v4259 = vunpack.c.l.b16 %v3969
        %v4260 = vunpack.c.h.b16 %v3969
        %v4261 = vunpack.c.l.b16 %v3970
        %v4262 = vunpack.c.l.b16 %v3971
        %v4263 = vunpack.c.h.b16 %v3971
        %v4264 = vunpack.c.l.b16 %v3972
        %v4265 = vunpack.c.l.b16 %v3973
        %v4266 = vunpack.c.h.b16 %v3973
        %v4267 = vunpack.c.l.b16 %v3974
        %v4268 = vunpack.c.l.b16 %v3975
        %v4269 = vunpack.c.h.b16 %v3975
        %v4270 = vunpack.c.l.b16 %v3976
        %v4271 = vunpack.c.l.b16 %v3977
        %v4272 = vunpack.c.h.b16 %v3977
        %v4273 = vunpack.c.l.b16 %v3978
        %v4274 = vunpack.c.l.b16 %v3979
        %v4275 = vunpack.c.h.b16 %v3979
        %v4276 = vunpack.c.l.b16 %v3980
        %v4277 = vunpack.c.l.b16 %v3981
        %v4278 = vunpack.c.h.b16 %v3981
        %v4279 = vunpack.c.l.b16 %v3982
        %v4280 = vunpack.c.l.b16 %v3983
        %v4281 = vunpack.c.h.b16 %v3983
        %v4282 = vunpack.c.l.b16 %v3984
        %v4283 = vunpack.c.l.b16 %v3985
        %v4284 = vunpack.c.h.b16 %v3985
        %v4285 = vunpack.c.l.b16 %v3986
        %v4286 = vunpack.c.l.b16 %v3987
        %v4287 = vunpack.c.h.b16 %v3987
        %v4288 = vunpack.c.l.b16 %v3988
        %v4289 = vunpack.c.l.b16 %v3989
        %v4290 = vunpack.c.h.b16 %v3989
        %v4291 = vunpack.c.l.b16 %v3990
        %v4292 = vunpack.c.l.b16 %v3991
        %v4293 = vunpack.c.h.b16 %v3991
        %v4294 = vunpack.c.l.b16 %v3992
        %v4295 = vunpack.c.l.b16 %v3993
        %v4296 = vunpack.c.h.b16 %v3993
        %v4297 = vunpack.c.l.b16 %v3994
        %v4298 = vunpack.c.l.b16 %v3995
        %v4299 = vunpack.c.h.b16 %v3995
        %v4300 = vunpack.c.l.b16 %v3996
        %v4301 = vunpack.c.l.b16 %v3997
        %v4302 = vunpack.c.h.b16 %v3997
        %v4303 = vunpack.c.l.b16 %v3998
        %v4304 = vunpack.c.l.b16 %v3999
        %v4305 = vunpack.c.h.b16 %v3999
        %v4306 = vunpack.c.l.b16 %v4000
        %v4307 = vunpack.c.l.b16 %v4001
        %v4308 = vunpack.c.h.b16 %v4001
        %v4309 = vunpack.c.l.b16 %v4002
        %v4310 = vunpack.c.l.b16 %v4003
        %v4311 = vunpack.c.h.b16 %v4003
        %v4312 = vunpack.c.l.b16 %v4004
        %v4313 = vunpack.c.l.b16 %v4005
        %v4314 = vunpack.c.h.b16 %v4005
        %v4315 = vunpack.c.l.b16 %v4006
        %v4316 = vunpack.c.l.b16 %v4007
        %v4317 = vunpack.c.h.b16 %v4007
        %v4318 = vunpack.c.l.b16 %v4008
        %v4319 = vunpack.c.l.b16 %v4009
        %v4320 = vunpack.c.h.b16 %v4009
        %v4321 = vunpack.c.l.b16 %v4010
        %v4322 = vunpack.c.l.b16 %v4011
        %v4323 = vunpack.c.h.b16 %v4011
        %v4324 = vunpack.c.l.b16 %v4012
        %v4325 = vunpack.c.l.b16 %v4013
        %v4326 = vunpack.c.h.b16 %v4013
        %v4327 = vunpack.c.l.b16 %v4014
        %v4328 = vunpack.c.l.b16 %v4015
        %v4329 = vunpack.c.h.b16 %v4015
        %v4330 = vunpack.c.l.b16 %v4016
        %v4331 = vunpack.c.l.b16 %v4017
        %v4332 = vunpack.c.h.b16 %v4017
        %v4333 = vunpack.c.l.b16 %v4018
        %v4334 = vunpack.c.l.b16 %v4019
        %v4335 = vunpack.c.h.b16 %v4019
        %v4336 = vunpack.c.l.b16 %v4020
        %v4337 = vunpack.c.l.b16 %v4021
        %v4338 = vunpack.c.h.b16 %v4021
        %v4339 = vunpack.c.l.b16 %v4022
        %v4340 = vunpack.c.l.b16 %v4023
        %v4341 = vunpack.c.h.b16 %v4023
        %v4342 = vunpack.c.l.b16 %v4024
        %v4343 = vunpack.c.l.b16 %v4025
        %v4344 = vunpack.c.h.b16 %v4025
        %v4345 = vunpack.c.l.b16 %v4026
        %v4346 = vunpack.c.l.b16 %v4027
        %v4347 = vunpack.c.h.b16 %v4027
        %v4348 = vunpack.c.l.b16 %v4028
        %v4349 = vpack.c.b16 %v4160, %v4157
        %v4350 = vpack.c.b16 %v4161, %v4158
        %v4351 = vpack.c.b16 %v4162, %v4159
        %v4352 = vpack.c.b16 %v4166, %v4163
        %v4353 = vpack.c.b16 %v4167, %v4164
        %v4354 = vpack.c.b16 %v4168, %v4165
        %v4355 = vpack.c.b16 %v4172, %v4169
        %v4356 = vpack.c.b16 %v4173, %v4170
        %v4357 = vpack.c.b16 %v4174, %v4171
        %v4358 = vpack.c.b16 %v4178, %v4175
        %v4359 = vpack.c.b16 %v4179, %v4176
        %v4360 = vpack.c.b16 %v4180, %v4177
        %v4361 = vpack.c.b16 %v4184, %v4181
        %v4362 = vpack.c.b16 %v4185, %v4182
        %v4363 = vpack.c.b16 %v4186, %v4183
        %v4364 = vpack.c.b16 %v4190, %v4187
        %v4365 = vpack.c.b16 %v4191, %v4188
        %v4366 = vpack.c.b16 %v4192, %v4189
        %v4367 = vpack.c.b16 %v4196, %v4193
        %v4368 = vpack.c.b16 %v4197, %v4194
        %v4369 = vpack.c.b16 %v4198, %v4195
        %v4370 = vpack.c.b16 %v4202, %v4199
        %v4371 = vpack.c.b16 %v4203, %v4200
        %v4372 = vpack.c.b16 %v4204, %v4201
        %v4373 = vpack.c.b16 %v4208, %v4205
        %v4374 = vpack.c.b16 %v4209, %v4206
        %v4375 = vpack.c.b16 %v4210, %v4207
        %v4376 = vpack.c.b16 %v4214, %v4211
        %v4377 = vpack.c.b16 %v4215, %v4212
        %v4378 = vpack.c.b16 %v4216, %v4213
        %v4379 = vpack.c.b16 %v4220, %v4217
        %v4380 = vpack.c.b16 %v4221, %v4218
        %v4381 = vpack.c.b16 %v4222, %v4219
        %v4382 = vpack.c.b16 %v4226, %v4223
        %v4383 = vpack.c.b16 %v4227, %v4224
        %v4384 = vpack.c.b16 %v4228, %v4225
        %v4385 = vpack.c.b16 %v4232, %v4229
        %v4386 = vpack.c.b16 %v4233, %v4230
        %v4387 = vpack.c.b16 %v4234, %v4231
        %v4388 = vpack.c.b16 %v4238, %v4235
        %v4389 = vpack.c.b16 %v4239, %v4236
        %v4390 = vpack.c.b16 %v4240, %v4237
        %v4391 = vpack.c.b16 %v4244, %v4241
        %v4392 = vpack.c.b16 %v4245, %v4242
        %v4393 = vpack.c.b16 %v4246, %v4243
        %v4394 = vpack.c.b16 %v4250, %v4247
        %v4395 = vpack.c.b16 %v4251, %v4248
        %v4396 = vpack.c.b16 %v4252, %v4249
        %v4397 = vpack.c.b16 %v4256, %v4253
        %v4398 = vpack.c.b16 %v4257, %v4254
        %v4399 = vpack.c.b16 %v4258, %v4255
        %v4400 = vpack.c.b16 %v4262, %v4259
        %v4401 = vpack.c.b16 %v4263, %v4260
        %v4402 = vpack.c.b16 %v4264, %v4261
        %v4403 = vpack.c.b16 %v4268, %v4265
        %v4404 = vpack.c.b16 %v4269, %v4266
        %v4405 = vpack.c.b16 %v4270, %v4267
        %v4406 = vpack.c.b16 %v4274, %v4271
        %v4407 = vpack.c.b16 %v4275, %v4272
        %v4408 = vpack.c.b16 %v4276, %v4273
        %v4409 = vpack.c.b16 %v4280, %v4277
        %v4410 = vpack.c.b16 %v4281, %v4278
        %v4411 = vpack.c.b16 %v4282, %v4279
        %v4412 = vpack.c.b16 %v4286, %v4283
        %v4413 = vpack.c.b16 %v4287, %v4284
        %v4414 = vpack.c.b16 %v4288, %v4285
        %v4415 = vpack.c.b16 %v4292, %v4289
        %v4416 = vpack.c.b16 %v4293, %v4290
        %v4417 = vpack.c.b16 %v4294, %v4291
        %v4418 = vpack.c.b16 %v4298, %v4295
        %v4419 = vpack.c.b16 %v4299, %v4296
        %v4420 = vpack.c.b16 %v4300, %v4297
        %v4421 = vpack.c.b16 %v4304, %v4301
        %v4422 = vpack.c.b16 %v4305, %v4302
        %v4423 = vpack.c.b16 %v4306, %v4303
        %v4424 = vpack.c.b16 %v4310, %v4307
        %v4425 = vpack.c.b16 %v4311, %v4308
        %v4426 = vpack.c.b16 %v4312, %v4309
        %v4427 = vpack.c.b16 %v4316, %v4313
        %v4428 = vpack.c.b16 %v4317, %v4314
        %v4429 = vpack.c.b16 %v4318, %v4315
        %v4430 = vpack.c.b16 %v4322, %v4319
        %v4431 = vpack.c.b16 %v4323, %v4320
        %v4432 = vpack.c.b16 %v4324, %v4321
        %v4433 = vpack.c.b16 %v4328, %v4325
        %v4434 = vpack.c.b16 %v4329, %v4326
        %v4435 = vpack.c.b16 %v4330, %v4327
        %v4436 = vpack.c.b16 %v4334, %v4331
        %v4437 = vpack.c.b16 %v4335, %v4332
        %v4438 = vpack.c.b16 %v4336, %v4333
        %v4439 = vpack.c.b16 %v4340, %v4337
        %v4440 = vpack.c.b16 %v4341, %v4338
        %v4441 = vpack.c.b16 %v4342, %v4339
        %v4442 = vpack.c.b16 %v4346, %v4343
        %v4443 = vpack.c.b16 %v4347, %v4344
        %v4444 = vpack.c.b16 %v4348, %v4345
        %4541 = vmatprep.subr.bf16.mxu0 %v4350
        %4542 = vmatpush1.bf16.msra.mxu0 %v4349
        %4543 = vmatprep.subr.bf16.mxu0 %v4353
        %4544 = vmatpush1.bf16.msra.mxu0 %v4352
        %4545 = vmatprep.subr.bf16.mxu0 %v4356
        %4546 = vmatpush1.bf16.msra.mxu0 %v4355
        %4547 = vmatprep.subr.bf16.mxu0 %v4359
        %4548 = vmatpush1.bf16.msra.mxu0 %v4358
        %4549 = vmatprep.subr.bf16.mxu0 %v4362
        %4550 = vmatpush1.bf16.msra.mxu0 %v4361
        %4551 = vmatprep.subr.bf16.mxu0 %v4365
        %4552 = vmatpush1.bf16.msra.mxu0 %v4364
        %4553 = vmatprep.subr.bf16.mxu0 %v4368
        %4554 = vmatpush1.bf16.msra.mxu0 %v4367
        %4555 = vmatprep.subr.bf16.mxu0 %v4371
        %4556 = vmatpush1.bf16.msra.mxu0 %v4370
        %4557 = vmatprep.subr.bf16.mxu0 %v4374
        %4558 = vmatpush1.bf16.msra.mxu0 %v4373
        %4559 = vmatprep.subr.bf16.mxu0 %v4377
        %4560 = vmatpush1.bf16.msra.mxu0 %v4376
        %4561 = vmatprep.subr.bf16.mxu0 %v4380
        %4562 = vmatpush1.bf16.msra.mxu0 %v4379
        %4563 = vmatprep.subr.bf16.mxu0 %v4383
        %4564 = vmatpush1.bf16.msra.mxu0 %v4382
        %4565 = vmatprep.subr.bf16.mxu0 %v4386
        %4566 = vmatpush1.bf16.msra.mxu0 %v4385
        %4567 = vmatprep.subr.bf16.mxu0 %v4389
        %4568 = vmatpush1.bf16.msra.mxu0 %v4388
        %4569 = vmatprep.subr.bf16.mxu0 %v4392
        %4570 = vmatpush1.bf16.msra.mxu0 %v4391
        %4571 = vmatprep.subr.bf16.mxu0 %v4395
        %4572 = vmatpush1.bf16.msra.mxu0 %v4394
        %4573 = vmatprep.mubr.bf16.mxu0 %v3833
        %4574 = vmatmul.mubr.bf16.gmra.mrb[0].mxu0 %v3832
        %v4575 = vpop.f32.mrb[0].mxu0
        %v4576 = vadd.f32 0.0, %v4575
        %v4577 = vpop.f32.mrb[0].mxu0
        %v4578 = vadd.f32 0.0, %v4577
        %v4579 = vpop.f32.mrb[0].mxu0
        %v4580 = vadd.f32 0.0, %v4579
        %v4581 = vpop.f32.mrb[0].mxu0
        %v4582 = vadd.f32 0.0, %v4581
        %4583 = vmatprep.mubr.bf16.mxu0 %v3837
        %4584 = vmatmul.mubr.bf16.gmra.mrb[0].mxu0 %v3836
        %v4585 = vpop.f32.mrb[0].mxu0
        %v4586 = vadd.f32 0.0, %v4585
        %v4587 = vpop.f32.mrb[0].mxu0
        %v4588 = vadd.f32 0.0, %v4587
        %v4589 = vpop.f32.mrb[0].mxu0
        %v4590 = vadd.f32 0.0, %v4589
        %v4591 = vpop.f32.mrb[0].mxu0
        %v4592 = vadd.f32 0.0, %v4591
        %4593 = vmatprep.mubr.bf16.mxu0 %v3841
        %4594 = vmatmul.mubr.bf16.gmra.mrb[0].mxu0 %v3840
        %v4595 = vpop.f32.mrb[0].mxu0
        %v4596 = vadd.f32 0.0, %v4595
        %v4597 = vpop.f32.mrb[0].mxu0
        %v4598 = vadd.f32 0.0, %v4597
        %v4599 = vpop.f32.mrb[0].mxu0
        %v4600 = vadd.f32 0.0, %v4599
        %v4601 = vpop.f32.mrb[0].mxu0
        %v4602 = vadd.f32 0.0, %v4601
        %4603 = vmatprep.mubr.bf16.mxu0 %v3845
        %4604 = vmatmul.mubr.bf16.gmra.mrb[0].mxu0 %v3844
        %v4605 = vpop.f32.mrb[0].mxu0
        %v4606 = vadd.f32 0.0, %v4605
        %v4607 = vpop.f32.mrb[0].mxu0
        %v4608 = vadd.f32 0.0, %v4607
        %v4609 = vpop.f32.mrb[0].mxu0
        %v4610 = vadd.f32 0.0, %v4609
        %v4611 = vpop.f32.mrb[0].mxu0
        %v4612 = vadd.f32 0.0, %v4611
        %4613 = vmatprep.mubr.bf16.mxu0 %v3849
        %4614 = vmatmul.mubr.bf16.gmra.mrb[0].mxu0 %v3848
        %v4615 = vpop.f32.mrb[0].mxu0
        %v4616 = vadd.f32 0.0, %v4615
        %v4617 = vpop.f32.mrb[0].mxu0
        %v4618 = vadd.f32 0.0, %v4617
        %v4619 = vpop.f32.mrb[0].mxu0
        %v4620 = vadd.f32 0.0, %v4619
        %v4621 = vpop.f32.mrb[0].mxu0
        %v4622 = vadd.f32 0.0, %v4621
        %4623 = vmatprep.mubr.bf16.mxu0 %v3853
        %4624 = vmatmul.mubr.bf16.gmra.mrb[0].mxu0 %v3852
        %v4625 = vpop.f32.mrb[0].mxu0
        %v4626 = vadd.f32 0.0, %v4625
        %v4627 = vpop.f32.mrb[0].mxu0
        %v4628 = vadd.f32 0.0, %v4627
        %v4629 = vpop.f32.mrb[0].mxu0
        %v4630 = vadd.f32 0.0, %v4629
        %v4631 = vpop.f32.mrb[0].mxu0
        %v4632 = vadd.f32 0.0, %v4631
        %4633 = vmatprep.mubr.bf16.mxu0 %v3857
        %4634 = vmatmul.mubr.bf16.gmra.mrb[0].mxu0 %v3856
        %v4635 = vpop.f32.mrb[0].mxu0
        %v4636 = vadd.f32 0.0, %v4635
        %v4637 = vpop.f32.mrb[0].mxu0
        %v4638 = vadd.f32 0.0, %v4637
        %v4639 = vpop.f32.mrb[0].mxu0
        %v4640 = vadd.f32 0.0, %v4639
        %v4641 = vpop.f32.mrb[0].mxu0
        %v4642 = vadd.f32 0.0, %v4641
        %4643 = vmatprep.mubr.bf16.mxu0 %v3861
        %4644 = vmatmul.mubr.bf16.gmra.mrb[0].mxu0 %v3860
        %v4645 = vpop.f32.mrb[0].mxu0
        %v4646 = vadd.f32 0.0, %v4645
        %v4647 = vpop.f32.mrb[0].mxu0
        %v4648 = vadd.f32 0.0, %v4647
        %v4649 = vpop.f32.mrb[0].mxu0
        %v4650 = vadd.f32 0.0, %v4649
        %v4651 = vpop.f32.mrb[0].mxu0
        %v4652 = vadd.f32 0.0, %v4651
        %4653 = vmatprep.mubr.bf16.mxu0 %v3865
        %4654 = vmatmul.mubr.bf16.gmra.mrb[0].mxu0 %v3864
        %v4655 = vpop.f32.mrb[0].mxu0
        %v4656 = vadd.f32 0.0, %v4655
        %v4657 = vpop.f32.mrb[0].mxu0
        %v4658 = vadd.f32 0.0, %v4657
        %v4659 = vpop.f32.mrb[0].mxu0
        %v4660 = vadd.f32 0.0, %v4659
        %v4661 = vpop.f32.mrb[0].mxu0
        %v4662 = vadd.f32 0.0, %v4661
        %4663 = vmatprep.mubr.bf16.mxu0 %v3869
        %4664 = vmatmul.mubr.bf16.gmra.mrb[0].mxu0 %v3868
        %v4665 = vpop.f32.mrb[0].mxu0
        %v4666 = vadd.f32 0.0, %v4665
        %v4667 = vpop.f32.mrb[0].mxu0
        %v4668 = vadd.f32 0.0, %v4667
        %v4669 = vpop.f32.mrb[0].mxu0
        %v4670 = vadd.f32 0.0, %v4669
        %v4671 = vpop.f32.mrb[0].mxu0
        %v4672 = vadd.f32 0.0, %v4671
        %4673 = vmatprep.mubr.bf16.mxu0 %v3873
        %4674 = vmatmul.mubr.bf16.gmra.mrb[0].mxu0 %v3872
        %v4675 = vpop.f32.mrb[0].mxu0
        %v4676 = vadd.f32 0.0, %v4675
        %v4677 = vpop.f32.mrb[0].mxu0
        %v4678 = vadd.f32 0.0, %v4677
        %v4679 = vpop.f32.mrb[0].mxu0
        %v4680 = vadd.f32 0.0, %v4679
        %v4681 = vpop.f32.mrb[0].mxu0
        %v4682 = vadd.f32 0.0, %v4681
        %4683 = vmatprep.mubr.bf16.mxu0 %v3877
        %4684 = vmatmul.mubr.bf16.gmra.mrb[0].mxu0 %v3876
        %v4685 = vpop.f32.mrb[0].mxu0
        %v4686 = vadd.f32 0.0, %v4685
        %v4687 = vpop.f32.mrb[0].mxu0
        %v4688 = vadd.f32 0.0, %v4687
        %v4689 = vpop.f32.mrb[0].mxu0
        %v4690 = vadd.f32 0.0, %v4689
        %v4691 = vpop.f32.mrb[0].mxu0
        %v4692 = vadd.f32 0.0, %v4691
        %4693 = vmatprep.mubr.bf16.mxu0 %v3881
        %4694 = vmatmul.mubr.bf16.gmra.mrb[0].mxu0 %v3880
        %v4695 = vpop.f32.mrb[0].mxu0
        %v4696 = vadd.f32 0.0, %v4695
        %v4697 = vpop.f32.mrb[0].mxu0
        %v4698 = vadd.f32 0.0, %v4697
        %v4699 = vpop.f32.mrb[0].mxu0
        %v4700 = vadd.f32 0.0, %v4699
        %v4701 = vpop.f32.mrb[0].mxu0
        %v4702 = vadd.f32 0.0, %v4701
        %4703 = vmatprep.mubr.bf16.mxu0 %v3885
        %4704 = vmatmul.mubr.bf16.gmra.mrb[0].mxu0 %v3884
        %v4705 = vpop.f32.mrb[0].mxu0
        %v4706 = vadd.f32 0.0, %v4705
        %v4707 = vpop.f32.mrb[0].mxu0
        %v4708 = vadd.f32 0.0, %v4707
        %v4709 = vpop.f32.mrb[0].mxu0
        %v4710 = vadd.f32 0.0, %v4709
        %v4711 = vpop.f32.mrb[0].mxu0
        %v4712 = vadd.f32 0.0, %v4711
        %4713 = vmatprep.mubr.bf16.mxu0 %v3889
        %4714 = vmatmul.mubr.bf16.gmra.mrb[0].mxu0 %v3888
        %v4715 = vpop.f32.mrb[0].mxu0
        %v4716 = vadd.f32 0.0, %v4715
        %v4717 = vpop.f32.mrb[0].mxu0
        %v4718 = vadd.f32 0.0, %v4717
        %v4719 = vpop.f32.mrb[0].mxu0
        %v4720 = vadd.f32 0.0, %v4719
        %v4721 = vpop.f32.mrb[0].mxu0
        %v4722 = vadd.f32 0.0, %v4721
        %4723 = vmatprep.mubr.bf16.mxu0 %v3893
        %4724 = vmatmul.mubr.bf16.gmra.mrb[0].mxu0 %v3892
        %v4725 = vpop.f32.mrb[0].mxu0
        %v4726 = vadd.f32 0.0, %v4725
        %v4727 = vpop.f32.mrb[0].mxu0
        %v4728 = vadd.f32 0.0, %v4727
        %v4729 = vpop.f32.mrb[0].mxu0
        %v4730 = vadd.f32 0.0, %v4729
        %v4731 = vpop.f32.mrb[0].mxu0
        %v4732 = vadd.f32 0.0, %v4731
        %4733 = vmatprep.mubr.bf16.mxu0 %v3897
        %4734 = vmatmul.mubr.bf16.gmra.mrb[0].mxu0 %v3896
        %v4735 = vpop.f32.mrb[0].mxu0
        %v4736 = vpop.f32.mrb[0].mxu0
        %v4737 = vadd.f32 0.0, %v4736
        %v4738 = vpop.f32.mrb[0].mxu0
        %v4739 = vpop.f32.mrb[0].mxu0
        %4740 = vdwg.mxu0
        %4741 = vmatprep.subr.bf16.mxu0 %v4398
        %4742 = vmatpush1.bf16.msra.mxu0 %v4397
        %4743 = vmatprep.subr.bf16.mxu0 %v4401
        %4744 = vmatpush1.bf16.msra.mxu0 %v4400
        %4745 = vmatprep.subr.bf16.mxu0 %v4404
        %4746 = vmatpush1.bf16.msra.mxu0 %v4403
        %4747 = vmatprep.subr.bf16.mxu0 %v4407
        %4748 = vmatpush1.bf16.msra.mxu0 %v4406
        %4749 = vmatprep.subr.bf16.mxu0 %v4410
        %4750 = vmatpush1.bf16.msra.mxu0 %v4409
        %4751 = vmatprep.subr.bf16.mxu0 %v4413
        %4752 = vmatpush1.bf16.msra.mxu0 %v4412
        %4753 = vmatprep.subr.bf16.mxu0 %v4416
        %4754 = vmatpush1.bf16.msra.mxu0 %v4415
        %4755 = vmatprep.subr.bf16.mxu0 %v4419
        %4756 = vmatpush1.bf16.msra.mxu0 %v4418
        %4757 = vmatprep.subr.bf16.mxu0 %v4422
        %4758 = vmatpush1.bf16.msra.mxu0 %v4421
        %4759 = vmatprep.subr.bf16.mxu0 %v4425
        %4760 = vmatpush1.bf16.msra.mxu0 %v4424
        %4761 = vmatprep.subr.bf16.mxu0 %v4428
        %4762 = vmatpush1.bf16.msra.mxu0 %v4427
        %4763 = vmatprep.subr.bf16.mxu0 %v4431
        %4764 = vmatpush1.bf16.msra.mxu0 %v4430
        %4765 = vmatprep.subr.bf16.mxu0 %v4434
        %4766 = vmatpush1.bf16.msra.mxu0 %v4433
        %4767 = vmatprep.subr.bf16.mxu0 %v4437
        %4768 = vmatpush1.bf16.msra.mxu0 %v4436
        %4769 = vmatprep.subr.bf16.mxu0 %v4440
        %4770 = vmatpush1.bf16.msra.mxu0 %v4439
        %4771 = vmatprep.subr.bf16.mxu0 %v4443
        %4772 = vmatpush1.bf16.msra.mxu0 %v4442
        %4773 = vmatprep.mubr.bf16.mxu0 %v3835
        %4774 = vmatmul.mubr.bf16.gmra.mrb[0].mxu0 %v3834
        %v4775 = vpop.f32.mrb[0].mxu0
        %v4776 = vadd.f32 %v4576, %v4775
        %v4777 = vpop.f32.mrb[0].mxu0
        %v4778 = vadd.f32 %v4578, %v4777
        %v4779 = vpop.f32.mrb[0].mxu0
        %v4780 = vadd.f32 %v4580, %v4779
        %v4781 = vpop.f32.mrb[0].mxu0
        %v4782 = vadd.f32 %v4582, %v4781
        %4783 = vmatprep.mubr.bf16.mxu0 %v3839
        %4784 = vmatmul.mubr.bf16.gmra.mrb[0].mxu0 %v3838
        %v4785 = vpop.f32.mrb[0].mxu0
        %v4786 = vadd.f32 %v4586, %v4785
        %v4787 = vpop.f32.mrb[0].mxu0
        %v4788 = vadd.f32 %v4588, %v4787
        %v4789 = vpop.f32.mrb[0].mxu0
        %v4790 = vadd.f32 %v4590, %v4789
        %v4791 = vpop.f32.mrb[0].mxu0
        %v4792 = vadd.f32 %v4592, %v4791
        %4793 = vmatprep.mubr.bf16.mxu0 %v3843
        %4794 = vmatmul.mubr.bf16.gmra.mrb[0].mxu0 %v3842
        %v4795 = vpop.f32.mrb[0].mxu0
        %v4796 = vadd.f32 %v4596, %v4795
        %v4797 = vpop.f32.mrb[0].mxu0
        %v4798 = vadd.f32 %v4598, %v4797
        %v4799 = vpop.f32.mrb[0].mxu0
        %v4800 = vadd.f32 %v4600, %v4799
        %v4801 = vpop.f32.mrb[0].mxu0
        %v4802 = vadd.f32 %v4602, %v4801
        %4803 = vmatprep.mubr.bf16.mxu0 %v3847
        %4804 = vmatmul.mubr.bf16.gmra.mrb[0].mxu0 %v3846
        %v4805 = vpop.f32.mrb[0].mxu0
        %v4806 = vadd.f32 %v4606, %v4805
        %v4807 = vpop.f32.mrb[0].mxu0
        %v4808 = vadd.f32 %v4608, %v4807
        %v4809 = vpop.f32.mrb[0].mxu0
        %v4810 = vadd.f32 %v4610, %v4809
        %v4811 = vpop.f32.mrb[0].mxu0
        %v4812 = vadd.f32 %v4612, %v4811
        %4813 = vmatprep.mubr.bf16.mxu0 %v3851
        %4814 = vmatmul.mubr.bf16.gmra.mrb[0].mxu0 %v3850
        %v4815 = vpop.f32.mrb[0].mxu0
        %v4816 = vadd.f32 %v4616, %v4815
        %v4817 = vpop.f32.mrb[0].mxu0
        %v4818 = vadd.f32 %v4618, %v4817
        %v4819 = vpop.f32.mrb[0].mxu0
        %v4820 = vadd.f32 %v4620, %v4819
        %v4821 = vpop.f32.mrb[0].mxu0
        %v4822 = vadd.f32 %v4622, %v4821
        %4823 = vmatprep.mubr.bf16.mxu0 %v3855
        %4824 = vmatmul.mubr.bf16.gmra.mrb[0].mxu0 %v3854
        %v4825 = vpop.f32.mrb[0].mxu0
        %v4826 = vadd.f32 %v4626, %v4825
        %v4827 = vpop.f32.mrb[0].mxu0
        %v4828 = vadd.f32 %v4628, %v4827
        %v4829 = vpop.f32.mrb[0].mxu0
        %v4830 = vadd.f32 %v4630, %v4829
        %v4831 = vpop.f32.mrb[0].mxu0
        %v4832 = vadd.f32 %v4632, %v4831
        %4833 = vmatprep.mubr.bf16.mxu0 %v3859
        %4834 = vmatmul.mubr.bf16.gmra.mrb[0].mxu0 %v3858
        %v4835 = vpop.f32.mrb[0].mxu0
        %v4836 = vadd.f32 %v4636, %v4835
        %v4837 = vpop.f32.mrb[0].mxu0
        %v4838 = vadd.f32 %v4638, %v4837
        %v4839 = vpop.f32.mrb[0].mxu0
        %v4840 = vadd.f32 %v4640, %v4839
        %v4841 = vpop.f32.mrb[0].mxu0
        %v4842 = vadd.f32 %v4642, %v4841
        %4843 = vmatprep.mubr.bf16.mxu0 %v3863
        %4844 = vmatmul.mubr.bf16.gmra.mrb[0].mxu0 %v3862
        %v4845 = vpop.f32.mrb[0].mxu0
        %v4846 = vadd.f32 %v4646, %v4845
        %v4847 = vpop.f32.mrb[0].mxu0
        %v4848 = vadd.f32 %v4648, %v4847
        %v4849 = vpop.f32.mrb[0].mxu0
        %v4850 = vadd.f32 %v4650, %v4849
        %v4851 = vpop.f32.mrb[0].mxu0
        %v4852 = vadd.f32 %v4652, %v4851
        %4853 = vmatprep.mubr.bf16.mxu0 %v3867
        %4854 = vmatmul.mubr.bf16.gmra.mrb[0].mxu0 %v3866
        %v4855 = vpop.f32.mrb[0].mxu0
        %v4856 = vadd.f32 %v4656, %v4855
        %v4857 = vpop.f32.mrb[0].mxu0
        %v4858 = vadd.f32 %v4658, %v4857
        %v4859 = vpop.f32.mrb[0].mxu0
        %v4860 = vadd.f32 %v4660, %v4859
        %v4861 = vpop.f32.mrb[0].mxu0
        %v4862 = vadd.f32 %v4662, %v4861
        %4863 = vmatprep.mubr.bf16.mxu0 %v3871
        %4864 = vmatmul.mubr.bf16.gmra.mrb[0].mxu0 %v3870
        %v4865 = vpop.f32.mrb[0].mxu0
        %v4866 = vadd.f32 %v4666, %v4865
        %v4867 = vpop.f32.mrb[0].mxu0
        %v4868 = vadd.f32 %v4668, %v4867
        %v4869 = vpop.f32.mrb[0].mxu0
        %v4870 = vadd.f32 %v4670, %v4869
        %v4871 = vpop.f32.mrb[0].mxu0
        %v4872 = vadd.f32 %v4672, %v4871
        %4873 = vmatprep.mubr.bf16.mxu0 %v3875
        %4874 = vmatmul.mubr.bf16.gmra.mrb[0].mxu0 %v3874
        %v4875 = vpop.f32.mrb[0].mxu0
        %v4876 = vadd.f32 %v4676, %v4875
        %v4877 = vpop.f32.mrb[0].mxu0
        %v4878 = vadd.f32 %v4678, %v4877
        %v4879 = vpop.f32.mrb[0].mxu0
        %v4880 = vadd.f32 %v4680, %v4879
        %v4881 = vpop.f32.mrb[0].mxu0
        %v4882 = vadd.f32 %v4682, %v4881
        %4883 = vmatprep.mubr.bf16.mxu0 %v3879
        %4884 = vmatmul.mubr.bf16.gmra.mrb[0].mxu0 %v3878
        %v4885 = vpop.f32.mrb[0].mxu0
        %v4886 = vadd.f32 %v4686, %v4885
        %v4887 = vpop.f32.mrb[0].mxu0
        %v4888 = vadd.f32 %v4688, %v4887
        %v4889 = vpop.f32.mrb[0].mxu0
        %v4890 = vadd.f32 %v4690, %v4889
        %v4891 = vpop.f32.mrb[0].mxu0
        %v4892 = vadd.f32 %v4692, %v4891
        %4893 = vmatprep.mubr.bf16.mxu0 %v3883
        %4894 = vmatmul.mubr.bf16.gmra.mrb[0].mxu0 %v3882
        %v4895 = vpop.f32.mrb[0].mxu0
        %v4896 = vadd.f32 %v4696, %v4895
        %v4897 = vpop.f32.mrb[0].mxu0
        %v4898 = vadd.f32 %v4698, %v4897
        %v4899 = vpop.f32.mrb[0].mxu0
        %v4900 = vadd.f32 %v4700, %v4899
        %v4901 = vpop.f32.mrb[0].mxu0
        %v4902 = vadd.f32 %v4702, %v4901
        %4903 = vmatprep.mubr.bf16.mxu0 %v3887
        %4904 = vmatmul.mubr.bf16.gmra.mrb[0].mxu0 %v3886
        %v4905 = vpop.f32.mrb[0].mxu0
        %v4906 = vadd.f32 %v4706, %v4905
        %v4907 = vpop.f32.mrb[0].mxu0
        %v4908 = vadd.f32 %v4708, %v4907
        %v4909 = vpop.f32.mrb[0].mxu0
        %v4910 = vadd.f32 %v4710, %v4909
        %v4911 = vpop.f32.mrb[0].mxu0
        %v4912 = vadd.f32 %v4712, %v4911
        %4913 = vmatprep.mubr.bf16.mxu0 %v3891
        %4914 = vmatmul.mubr.bf16.gmra.mrb[0].mxu0 %v3890
        %v4915 = vpop.f32.mrb[0].mxu0
        %v4916 = vadd.f32 %v4716, %v4915
        %v4917 = vpop.f32.mrb[0].mxu0
        %v4918 = vadd.f32 %v4718, %v4917
        %v4919 = vpop.f32.mrb[0].mxu0
        %v4920 = vadd.f32 %v4720, %v4919
        %v4921 = vpop.f32.mrb[0].mxu0
        %v4922 = vadd.f32 %v4722, %v4921
        %4923 = vmatprep.mubr.bf16.mxu0 %v3895
        %4924 = vmatmul.mubr.bf16.gmra.mrb[0].mxu0 %v3894
        %v4925 = vpop.f32.mrb[0].mxu0
        %v4926 = vadd.f32 %v4726, %v4925
        %v4927 = vpop.f32.mrb[0].mxu0
        %v4928 = vadd.f32 %v4728, %v4927
        %v4929 = vpop.f32.mrb[0].mxu0
        %v4930 = vadd.f32 %v4730, %v4929
        %v4931 = vpop.f32.mrb[0].mxu0
        %v4932 = vadd.f32 %v4732, %v4931
        %4933 = vmatprep.mubr.bf16.mxu0 %v3899
        %4934 = vmatmul.mubr.bf16.gmra.mrb[0].mxu0 %v3898
        %v4935 = vpop.f32.mrb[0].mxu0
        %v4936 = vpop.f32.mrb[0].mxu0
        %v4937 = vadd.f32 %v4737, %v4936
        %v4938 = vpop.f32.mrb[0].mxu0
        %v4939 = vpop.f32.mrb[0].mxu0
        %4940 = vdwg.mxu0
        %4941 = vmatprep.subr.bf16.mxu0 0
        %4942 = vmatpush1.bf16.msra.mxu0 %v4351
        %4943 = vmatprep.subr.bf16.mxu0 0
        %4944 = vmatpush1.bf16.msra.mxu0 %v4354
        %4945 = vmatprep.subr.bf16.mxu0 0
        %4946 = vmatpush1.bf16.msra.mxu0 %v4357
        %4947 = vmatprep.subr.bf16.mxu0 0
        %4948 = vmatpush1.bf16.msra.mxu0 %v4360
        %4949 = vmatprep.subr.bf16.mxu0 0
        %4950 = vmatpush1.bf16.msra.mxu0 %v4363
        %4951 = vmatprep.subr.bf16.mxu0 0
        %4952 = vmatpush1.bf16.msra.mxu0 %v4366
        %4953 = vmatprep.subr.bf16.mxu0 0
        %4954 = vmatpush1.bf16.msra.mxu0 %v4369
        %4955 = vmatprep.subr.bf16.mxu0 0
        %4956 = vmatpush1.bf16.msra.mxu0 %v4372
        %4957 = vmatprep.subr.bf16.mxu0 0
        %4958 = vmatpush1.bf16.msra.mxu0 %v4375
        %4959 = vmatprep.subr.bf16.mxu0 0
        %4960 = vmatpush1.bf16.msra.mxu0 %v4378
        %4961 = vmatprep.subr.bf16.mxu0 0
        %4962 = vmatpush1.bf16.msra.mxu0 %v4381
        %4963 = vmatprep.subr.bf16.mxu0 0
        %4964 = vmatpush1.bf16.msra.mxu0 %v4384
        %4965 = vmatprep.subr.bf16.mxu0 0
        %4966 = vmatpush1.bf16.msra.mxu0 %v4387
        %4967 = vmatprep.subr.bf16.mxu0 0
        %4968 = vmatpush1.bf16.msra.mxu0 %v4390
        %4969 = vmatprep.subr.bf16.mxu0 0
        %4970 = vmatpush1.bf16.msra.mxu0 %v4393
        %4971 = vmatprep.subr.bf16.mxu0 0
        %4972 = vmatpush1.bf16.msra.mxu0 %v4396
        %4973 = vmatprep.mubr.bf16.mxu0 %v3833
        %4974 = vmatmul.mubr.bf16.gmra.mrb[0].mxu0 %v3832
        %v4975 = vpop.f32.mrb[0].mxu0
        %v4976 = vadd.f32 0.0, %v4975
        %v4977 = vpop.f32.mrb[0].mxu0
        %v4978 = vpop.f32.mrb[0].mxu0
        %v4979 = vadd.f32 0.0, %v4978
        %v4980 = vpop.f32.mrb[0].mxu0
        %4981 = vmatprep.mubr.bf16.mxu0 %v3837
        %4982 = vmatmul.mubr.bf16.gmra.mrb[0].mxu0 %v3836
        %v4983 = vpop.f32.mrb[0].mxu0
        %v4984 = vadd.f32 0.0, %v4983
        %v4985 = vpop.f32.mrb[0].mxu0
        %v4986 = vpop.f32.mrb[0].mxu0
        %v4987 = vadd.f32 0.0, %v4986
        %v4988 = vpop.f32.mrb[0].mxu0
        %4989 = vmatprep.mubr.bf16.mxu0 %v3841
        %4990 = vmatmul.mubr.bf16.gmra.mrb[0].mxu0 %v3840
        %v4991 = vpop.f32.mrb[0].mxu0
        %v4992 = vadd.f32 0.0, %v4991
        %v4993 = vpop.f32.mrb[0].mxu0
        %v4994 = vpop.f32.mrb[0].mxu0
        %v4995 = vadd.f32 0.0, %v4994
        %v4996 = vpop.f32.mrb[0].mxu0
        %4997 = vmatprep.mubr.bf16.mxu0 %v3845
        %4998 = vmatmul.mubr.bf16.gmra.mrb[0].mxu0 %v3844
        %v4999 = vpop.f32.mrb[0].mxu0
        %v5000 = vadd.f32 0.0, %v4999
        %v5001 = vpop.f32.mrb[0].mxu0
        %v5002 = vpop.f32.mrb[0].mxu0
        %v5003 = vadd.f32 0.0, %v5002
        %v5004 = vpop.f32.mrb[0].mxu0
        %5005 = vmatprep.mubr.bf16.mxu0 %v3849
        %5006 = vmatmul.mubr.bf16.gmra.mrb[0].mxu0 %v3848
        %v5007 = vpop.f32.mrb[0].mxu0
        %v5008 = vadd.f32 0.0, %v5007
        %v5009 = vpop.f32.mrb[0].mxu0
        %v5010 = vpop.f32.mrb[0].mxu0
        %v5011 = vadd.f32 0.0, %v5010
        %v5012 = vpop.f32.mrb[0].mxu0
        %5013 = vmatprep.mubr.bf16.mxu0 %v3853
        %5014 = vmatmul.mubr.bf16.gmra.mrb[0].mxu0 %v3852
        %v5015 = vpop.f32.mrb[0].mxu0
        %v5016 = vadd.f32 0.0, %v5015
        %v5017 = vpop.f32.mrb[0].mxu0
        %v5018 = vpop.f32.mrb[0].mxu0
        %v5019 = vadd.f32 0.0, %v5018
        %v5020 = vpop.f32.mrb[0].mxu0
        %5021 = vmatprep.mubr.bf16.mxu0 %v3857
        %5022 = vmatmul.mubr.bf16.gmra.mrb[0].mxu0 %v3856
        %v5023 = vpop.f32.mrb[0].mxu0
        %v5024 = vadd.f32 0.0, %v5023
        %v5025 = vpop.f32.mrb[0].mxu0
        %v5026 = vpop.f32.mrb[0].mxu0
        %v5027 = vadd.f32 0.0, %v5026
        %v5028 = vpop.f32.mrb[0].mxu0
        %5029 = vmatprep.mubr.bf16.mxu0 %v3861
        %5030 = vmatmul.mubr.bf16.gmra.mrb[0].mxu0 %v3860
        %v5031 = vpop.f32.mrb[0].mxu0
        %v5032 = vadd.f32 0.0, %v5031
        %v5033 = vpop.f32.mrb[0].mxu0
        %v5034 = vpop.f32.mrb[0].mxu0
        %v5035 = vadd.f32 0.0, %v5034
        %v5036 = vpop.f32.mrb[0].mxu0
        %5037 = vmatprep.mubr.bf16.mxu0 %v3865
        %5038 = vmatmul.mubr.bf16.gmra.mrb[0].mxu0 %v3864
        %v5039 = vpop.f32.mrb[0].mxu0
        %v5040 = vadd.f32 0.0, %v5039
        %v5041 = vpop.f32.mrb[0].mxu0
        %v5042 = vpop.f32.mrb[0].mxu0
        %v5043 = vadd.f32 0.0, %v5042
        %v5044 = vpop.f32.mrb[0].mxu0
        %5045 = vmatprep.mubr.bf16.mxu0 %v3869
        %5046 = vmatmul.mubr.bf16.gmra.mrb[0].mxu0 %v3868
        %v5047 = vpop.f32.mrb[0].mxu0
        %v5048 = vadd.f32 0.0, %v5047
        %v5049 = vpop.f32.mrb[0].mxu0
        %v5050 = vpop.f32.mrb[0].mxu0
        %v5051 = vadd.f32 0.0, %v5050
        %v5052 = vpop.f32.mrb[0].mxu0
        %5053 = vmatprep.mubr.bf16.mxu0 %v3873
        %5054 = vmatmul.mubr.bf16.gmra.mrb[0].mxu0 %v3872
        %v5055 = vpop.f32.mrb[0].mxu0
        %v5056 = vadd.f32 0.0, %v5055
        %v5057 = vpop.f32.mrb[0].mxu0
        %v5058 = vpop.f32.mrb[0].mxu0
        %v5059 = vadd.f32 0.0, %v5058
        %v5060 = vpop.f32.mrb[0].mxu0
        %5061 = vmatprep.mubr.bf16.mxu0 %v3877
        %5062 = vmatmul.mubr.bf16.gmra.mrb[0].mxu0 %v3876
        %v5063 = vpop.f32.mrb[0].mxu0
        %v5064 = vadd.f32 0.0, %v5063
        %v5065 = vpop.f32.mrb[0].mxu0
        %v5066 = vpop.f32.mrb[0].mxu0
        %v5067 = vadd.f32 0.0, %v5066
        %v5068 = vpop.f32.mrb[0].mxu0
        %5069 = vmatprep.mubr.bf16.mxu0 %v3881
        %5070 = vmatmul.mubr.bf16.gmra.mrb[0].mxu0 %v3880
        %v5071 = vpop.f32.mrb[0].mxu0
        %v5072 = vadd.f32 0.0, %v5071
        %v5073 = vpop.f32.mrb[0].mxu0
        %v5074 = vpop.f32.mrb[0].mxu0
        %v5075 = vadd.f32 0.0, %v5074
        %v5076 = vpop.f32.mrb[0].mxu0
        %5077 = vmatprep.mubr.bf16.mxu0 %v3885
        %5078 = vmatmul.mubr.bf16.gmra.mrb[0].mxu0 %v3884
        %v5079 = vpop.f32.mrb[0].mxu0
        %v5080 = vadd.f32 0.0, %v5079
        %v5081 = vpop.f32.mrb[0].mxu0
        %v5082 = vpop.f32.mrb[0].mxu0
        %v5083 = vadd.f32 0.0, %v5082
        %v5084 = vpop.f32.mrb[0].mxu0
        %5085 = vmatprep.mubr.bf16.mxu0 %v3889
        %5086 = vmatmul.mubr.bf16.gmra.mrb[0].mxu0 %v3888
        %v5087 = vpop.f32.mrb[0].mxu0
        %v5088 = vadd.f32 0.0, %v5087
        %v5089 = vpop.f32.mrb[0].mxu0
        %v5090 = vpop.f32.mrb[0].mxu0
        %v5091 = vadd.f32 0.0, %v5090
        %v5092 = vpop.f32.mrb[0].mxu0
        %5093 = vmatprep.mubr.bf16.mxu0 %v3893
        %5094 = vmatmul.mubr.bf16.gmra.mrb[0].mxu0 %v3892
        %v5095 = vpop.f32.mrb[0].mxu0
        %v5096 = vadd.f32 0.0, %v5095
        %v5097 = vpop.f32.mrb[0].mxu0
        %v5098 = vpop.f32.mrb[0].mxu0
        %v5099 = vadd.f32 0.0, %v5098
        %v5100 = vpop.f32.mrb[0].mxu0
        %5101 = vmatprep.mubr.bf16.mxu0 %v3897
        %5102 = vmatmul.mubr.bf16.gmra.mrb[0].mxu0 %v3896
        %v5103 = vpop.f32.mrb[0].mxu0
        %v5104 = vadd.f32 0.0, %v5103
        %v5105 = vpop.f32.mrb[0].mxu0
        %v5106 = vpop.f32.mrb[0].mxu0
        %v5107 = vpop.f32.mrb[0].mxu0
        %5108 = vdwg.mxu0
        %5109 = vmatprep.subr.bf16.mxu0 0
        %5110 = vmatpush1.bf16.msra.mxu0 %v4399
        %5111 = vmatprep.subr.bf16.mxu0 0
        %5112 = vmatpush1.bf16.msra.mxu0 %v4402
        %5113 = vmatprep.subr.bf16.mxu0 0
        %5114 = vmatpush1.bf16.msra.mxu0 %v4405
        %5115 = vmatprep.subr.bf16.mxu0 0
        %5116 = vmatpush1.bf16.msra.mxu0 %v4408
        %5117 = vmatprep.subr.bf16.mxu0 0
        %5118 = vmatpush1.bf16.msra.mxu0 %v4411
        %5119 = vmatprep.subr.bf16.mxu0 0
        %5120 = vmatpush1.bf16.msra.mxu0 %v4414
        %5121 = vmatprep.subr.bf16.mxu0 0
        %5122 = vmatpush1.bf16.msra.mxu0 %v4417
        %5123 = vmatprep.subr.bf16.mxu0 0
        %5124 = vmatpush1.bf16.msra.mxu0 %v4420
        %5125 = vmatprep.subr.bf16.mxu0 0
        %5126 = vmatpush1.bf16.msra.mxu0 %v4423
        %5127 = vmatprep.subr.bf16.mxu0 0
        %5128 = vmatpush1.bf16.msra.mxu0 %v4426
        %5129 = vmatprep.subr.bf16.mxu0 0
        %5130 = vmatpush1.bf16.msra.mxu0 %v4429
        %5131 = vmatprep.subr.bf16.mxu0 0
        %5132 = vmatpush1.bf16.msra.mxu0 %v4432
        %5133 = vmatprep.subr.bf16.mxu0 0
        %5134 = vmatpush1.bf16.msra.mxu0 %v4435
        %5135 = vmatprep.subr.bf16.mxu0 0
        %5136 = vmatpush1.bf16.msra.mxu0 %v4438
        %5137 = vmatprep.subr.bf16.mxu0 0
        %5138 = vmatpush1.bf16.msra.mxu0 %v4441
        %5139 = vmatprep.subr.bf16.mxu0 0
        %5140 = vmatpush1.bf16.msra.mxu0 %v4444
        %5141 = vmatprep.mubr.bf16.mxu0 %v3835
        %5142 = vmatmul.mubr.bf16.gmra.mrb[0].mxu0 %v3834
        %v5143 = vpop.f32.mrb[0].mxu0
        %v5144 = vadd.f32 %v4976, %v5143
        %v5145 = vpop.f32.mrb[0].mxu0
        %v5146 = vpop.f32.mrb[0].mxu0
        %v5147 = vadd.f32 %v4979, %v5146
        %v5148 = vpop.f32.mrb[0].mxu0
        %5149 = vmatprep.mubr.bf16.mxu0 %v3839
        %5150 = vmatmul.mubr.bf16.gmra.mrb[0].mxu0 %v3838
        %v5151 = vpop.f32.mrb[0].mxu0
        %v5152 = vadd.f32 %v4984, %v5151
        %v5153 = vpop.f32.mrb[0].mxu0
        %v5154 = vpop.f32.mrb[0].mxu0
        %v5155 = vadd.f32 %v4987, %v5154
        %v5156 = vpop.f32.mrb[0].mxu0
        %5157 = vmatprep.mubr.bf16.mxu0 %v3843
        %5158 = vmatmul.mubr.bf16.gmra.mrb[0].mxu0 %v3842
        %v5159 = vpop.f32.mrb[0].mxu0
        %v5160 = vadd.f32 %v4992, %v5159
        %v5161 = vpop.f32.mrb[0].mxu0
        %v5162 = vpop.f32.mrb[0].mxu0
        %v5163 = vadd.f32 %v4995, %v5162
        %v5164 = vpop.f32.mrb[0].mxu0
        %5165 = vmatprep.mubr.bf16.mxu0 %v3847
        %5166 = vmatmul.mubr.bf16.gmra.mrb[0].mxu0 %v3846
        %v5167 = vpop.f32.mrb[0].mxu0
        %v5168 = vadd.f32 %v5000, %v5167
        %v5169 = vpop.f32.mrb[0].mxu0
        %v5170 = vpop.f32.mrb[0].mxu0
        %v5171 = vadd.f32 %v5003, %v5170
        %v5172 = vpop.f32.mrb[0].mxu0
        %5173 = vmatprep.mubr.bf16.mxu0 %v3851
        %5174 = vmatmul.mubr.bf16.gmra.mrb[0].mxu0 %v3850
        %v5175 = vpop.f32.mrb[0].mxu0
        %v5176 = vadd.f32 %v5008, %v5175
        %v5177 = vpop.f32.mrb[0].mxu0
        %v5178 = vpop.f32.mrb[0].mxu0
        %v5179 = vadd.f32 %v5011, %v5178
        %v5180 = vpop.f32.mrb[0].mxu0
        %5181 = vmatprep.mubr.bf16.mxu0 %v3855
        %5182 = vmatmul.mubr.bf16.gmra.mrb[0].mxu0 %v3854
        %v5183 = vpop.f32.mrb[0].mxu0
        %v5184 = vadd.f32 %v5016, %v5183
        %v5185 = vpop.f32.mrb[0].mxu0
        %v5186 = vpop.f32.mrb[0].mxu0
        %v5187 = vadd.f32 %v5019, %v5186
        %v5188 = vpop.f32.mrb[0].mxu0
        %5189 = vmatprep.mubr.bf16.mxu0 %v3859
        %5190 = vmatmul.mubr.bf16.gmra.mrb[0].mxu0 %v3858
        %v5191 = vpop.f32.mrb[0].mxu0
        %v5192 = vadd.f32 %v5024, %v5191
        %v5193 = vpop.f32.mrb[0].mxu0
        %v5194 = vpop.f32.mrb[0].mxu0
        %v5195 = vadd.f32 %v5027, %v5194
        %v5196 = vpop.f32.mrb[0].mxu0
        %5197 = vmatprep.mubr.bf16.mxu0 %v3863
        %5198 = vmatmul.mubr.bf16.gmra.mrb[0].mxu0 %v3862
        %v5199 = vpop.f32.mrb[0].mxu0
        %v5200 = vadd.f32 %v5032, %v5199
        %v5201 = vpop.f32.mrb[0].mxu0
        %v5202 = vpop.f32.mrb[0].mxu0
        %v5203 = vadd.f32 %v5035, %v5202
        %v5204 = vpop.f32.mrb[0].mxu0
        %5205 = vmatprep.mubr.bf16.mxu0 %v3867
        %5206 = vmatmul.mubr.bf16.gmra.mrb[0].mxu0 %v3866
        %v5207 = vpop.f32.mrb[0].mxu0
        %v5208 = vadd.f32 %v5040, %v5207
        %v5209 = vpop.f32.mrb[0].mxu0
        %v5210 = vpop.f32.mrb[0].mxu0
        %v5211 = vadd.f32 %v5043, %v5210
        %v5212 = vpop.f32.mrb[0].mxu0
        %5213 = vmatprep.mubr.bf16.mxu0 %v3871
        %5214 = vmatmul.mubr.bf16.gmra.mrb[0].mxu0 %v3870
        %v5215 = vpop.f32.mrb[0].mxu0
        %v5216 = vadd.f32 %v5048, %v5215
        %v5217 = vpop.f32.mrb[0].mxu0
        %v5218 = vpop.f32.mrb[0].mxu0
        %v5219 = vadd.f32 %v5051, %v5218
        %v5220 = vpop.f32.mrb[0].mxu0
        %5221 = vmatprep.mubr.bf16.mxu0 %v3875
        %5222 = vmatmul.mubr.bf16.gmra.mrb[0].mxu0 %v3874
        %v5223 = vpop.f32.mrb[0].mxu0
        %v5224 = vadd.f32 %v5056, %v5223
        %v5225 = vpop.f32.mrb[0].mxu0
        %v5226 = vpop.f32.mrb[0].mxu0
        %v5227 = vadd.f32 %v5059, %v5226
        %v5228 = vpop.f32.mrb[0].mxu0
        %5229 = vmatprep.mubr.bf16.mxu0 %v3879
        %5230 = vmatmul.mubr.bf16.gmra.mrb[0].mxu0 %v3878
        %v5231 = vpop.f32.mrb[0].mxu0
        %v5232 = vadd.f32 %v5064, %v5231
        %v5233 = vpop.f32.mrb[0].mxu0
        %v5234 = vpop.f32.mrb[0].mxu0
        %v5235 = vadd.f32 %v5067, %v5234
        %v5236 = vpop.f32.mrb[0].mxu0
        %5237 = vmatprep.mubr.bf16.mxu0 %v3883
        %5238 = vmatmul.mubr.bf16.gmra.mrb[0].mxu0 %v3882
        %v5239 = vpop.f32.mrb[0].mxu0
        %v5240 = vadd.f32 %v5072, %v5239
        %v5241 = vpop.f32.mrb[0].mxu0
        %v5242 = vpop.f32.mrb[0].mxu0
        %v5243 = vadd.f32 %v5075, %v5242
        %v5244 = vpop.f32.mrb[0].mxu0
        %5245 = vmatprep.mubr.bf16.mxu0 %v3887
        %5246 = vmatmul.mubr.bf16.gmra.mrb[0].mxu0 %v3886
        %v5247 = vpop.f32.mrb[0].mxu0
        %v5248 = vadd.f32 %v5080, %v5247
        %v5249 = vpop.f32.mrb[0].mxu0
        %v5250 = vpop.f32.mrb[0].mxu0
        %v5251 = vadd.f32 %v5083, %v5250
        %v5252 = vpop.f32.mrb[0].mxu0
        %5253 = vmatprep.mubr.bf16.mxu0 %v3891
        %5254 = vmatmul.mubr.bf16.gmra.mrb[0].mxu0 %v3890
        %v5255 = vpop.f32.mrb[0].mxu0
        %v5256 = vadd.f32 %v5088, %v5255
        %v5257 = vpop.f32.mrb[0].mxu0
        %v5258 = vpop.f32.mrb[0].mxu0
        %v5259 = vadd.f32 %v5091, %v5258
        %v5260 = vpop.f32.mrb[0].mxu0
        %5261 = vmatprep.mubr.bf16.mxu0 %v3895
        %5262 = vmatmul.mubr.bf16.gmra.mrb[0].mxu0 %v3894
        %v5263 = vpop.f32.mrb[0].mxu0
        %v5264 = vadd.f32 %v5096, %v5263
        %v5265 = vpop.f32.mrb[0].mxu0
        %v5266 = vpop.f32.mrb[0].mxu0
        %v5267 = vadd.f32 %v5099, %v5266
        %v5268 = vpop.f32.mrb[0].mxu0
        %5269 = vmatprep.mubr.bf16.mxu0 %v3899
        %5270 = vmatmul.mubr.bf16.gmra.mrb[0].mxu0 %v3898
        %v5271 = vpop.f32.mrb[0].mxu0
        %v5272 = vadd.f32 %v5104, %v5271
        %v5273 = vpop.f32.mrb[0].mxu0
        %v5274 = vpop.f32.mrb[0].mxu0
        %v5275 = vpop.f32.mrb[0].mxu0
        %5276 = vdwg.mxu0
        %v5277 = vadd.f32 %v3331, %v4776
        %v5278 = vadd.f32 %v3333, %v4778
        %v5279 = vadd.f32 %v3699, %v5144
        %v5280 = vadd.f32 %v3335, %v4780
        %v5281 = vadd.f32 %v3337, %v4782
        %v5282 = vadd.f32 %v3702, %v5147
        %v5283 = vadd.f32 %v3341, %v4786
        %v5284 = vadd.f32 %v3343, %v4788
        %v5285 = vadd.f32 %v3707, %v5152
        %v5286 = vadd.f32 %v3345, %v4790
        %v5287 = vadd.f32 %v3347, %v4792
        %v5288 = vadd.f32 %v3710, %v5155
        %v5289 = vadd.f32 %v3351, %v4796
        %v5290 = vadd.f32 %v3353, %v4798
        %v5291 = vadd.f32 %v3715, %v5160
        %v5292 = vadd.f32 %v3355, %v4800
        %v5293 = vadd.f32 %v3357, %v4802
        %v5294 = vadd.f32 %v3718, %v5163
        %v5295 = vadd.f32 %v3361, %v4806
        %v5296 = vadd.f32 %v3363, %v4808
        %v5297 = vadd.f32 %v3723, %v5168
        %v5298 = vadd.f32 %v3365, %v4810
        %v5299 = vadd.f32 %v3367, %v4812
        %v5300 = vadd.f32 %v3726, %v5171
        %v5301 = vadd.f32 %v3371, %v4816
        %v5302 = vadd.f32 %v3373, %v4818
        %v5303 = vadd.f32 %v3731, %v5176
        %v5304 = vadd.f32 %v3375, %v4820
        %v5305 = vadd.f32 %v3377, %v4822
        %v5306 = vadd.f32 %v3734, %v5179
        %v5307 = vadd.f32 %v3381, %v4826
        %v5308 = vadd.f32 %v3383, %v4828
        %v5309 = vadd.f32 %v3739, %v5184
        %v5310 = vadd.f32 %v3385, %v4830
        %v5311 = vadd.f32 %v3387, %v4832
        %v5312 = vadd.f32 %v3742, %v5187
        %v5313 = vadd.f32 %v3391, %v4836
        %v5314 = vadd.f32 %v3393, %v4838
        %v5315 = vadd.f32 %v3747, %v5192
        %v5316 = vadd.f32 %v3395, %v4840
        %v5317 = vadd.f32 %v3397, %v4842
        %v5318 = vadd.f32 %v3750, %v5195
        %v5319 = vadd.f32 %v3401, %v4846
        %v5320 = vadd.f32 %v3403, %v4848
        %v5321 = vadd.f32 %v3755, %v5200
        %v5322 = vadd.f32 %v3405, %v4850
        %v5323 = vadd.f32 %v3407, %v4852
        %v5324 = vadd.f32 %v3758, %v5203
        %v5325 = vadd.f32 %v3411, %v4856
        %v5326 = vadd.f32 %v3413, %v4858
        %v5327 = vadd.f32 %v3763, %v5208
        %v5328 = vadd.f32 %v3415, %v4860
        %v5329 = vadd.f32 %v3417, %v4862
        %v5330 = vadd.f32 %v3766, %v5211
        %v5331 = vadd.f32 %v3421, %v4866
        %v5332 = vadd.f32 %v3423, %v4868
        %v5333 = vadd.f32 %v3771, %v5216
        %v5334 = vadd.f32 %v3425, %v4870
        %v5335 = vadd.f32 %v3427, %v4872
        %v5336 = vadd.f32 %v3774, %v5219
        %v5337 = vadd.f32 %v3431, %v4876
        %v5338 = vadd.f32 %v3433, %v4878
        %v5339 = vadd.f32 %v3779, %v5224
        %v5340 = vadd.f32 %v3435, %v4880
        %v5341 = vadd.f32 %v3437, %v4882
        %v5342 = vadd.f32 %v3782, %v5227
        %v5343 = vadd.f32 %v3441, %v4886
        %v5344 = vadd.f32 %v3443, %v4888
        %v5345 = vadd.f32 %v3787, %v5232
        %v5346 = vadd.f32 %v3445, %v4890
        %v5347 = vadd.f32 %v3447, %v4892
        %v5348 = vadd.f32 %v3790, %v5235
        %v5349 = vadd.f32 %v3451, %v4896
        %v5350 = vadd.f32 %v3453, %v4898
        %v5351 = vadd.f32 %v3795, %v5240
        %v5352 = vadd.f32 %v3455, %v4900
        %v5353 = vadd.f32 %v3457, %v4902
        %v5354 = vadd.f32 %v3798, %v5243
        %v5355 = vadd.f32 %v3461, %v4906
        %v5356 = vadd.f32 %v3463, %v4908
        %v5357 = vadd.f32 %v3803, %v5248
        %v5358 = vadd.f32 %v3465, %v4910
        %v5359 = vadd.f32 %v3467, %v4912
        %v5360 = vadd.f32 %v3806, %v5251
        %v5361 = vadd.f32 %v3471, %v4916
        %v5362 = vadd.f32 %v3473, %v4918
        %v5363 = vadd.f32 %v3811, %v5256
        %v5364 = vadd.f32 %v3475, %v4920
        %v5365 = vadd.f32 %v3477, %v4922
        %v5366 = vadd.f32 %v3814, %v5259
        %v5367 = vadd.f32 %v3481, %v4926
        %v5368 = vadd.f32 %v3483, %v4928
        %v5369 = vadd.f32 %v3819, %v5264
        %v5370 = vadd.f32 %v3485, %v4930
        %v5371 = vadd.f32 %v3487, %v4932
        %v5372 = vadd.f32 %v3822, %v5267
        %v5373 = vadd.f32 %v3492, %v4937
        %v5374 = vadd.f32 %v3827, %v5272
        %vm5408 = vcmask 1046528
        %v5409 = vrot.slane %v5278, 1
        %v5410 = vrot.slane %v5281, 1
        %v5411 = vsel %vm5408, %v5409, %v5410
        %v5412 = vrot.slane %v5284, 1
        %v5413 = vsel %vm5408, %v5410, %v5412
        %v5414 = vrot.slane %v5287, 1
        %v5415 = vsel %vm5408, %v5412, %v5414
        %v5416 = vrot.slane %v5290, 1
        %v5417 = vsel %vm5408, %v5414, %v5416
        %v5418 = vrot.slane %v5293, 1
        %v5419 = vsel %vm5408, %v5416, %v5418
        %v5420 = vrot.slane %v5296, 1
        %v5421 = vsel %vm5408, %v5418, %v5420
        %v5422 = vrot.slane %v5299, 1
        %v5423 = vsel %vm5408, %v5420, %v5422
        %v5424 = vrot.slane %v5302, 1
        %v5425 = vsel %vm5408, %v5422, %v5424
        %v5426 = vrot.slane %v5305, 1
        %v5427 = vsel %vm5408, %v5424, %v5426
        %v5428 = vrot.slane %v5308, 1
        %v5429 = vsel %vm5408, %v5426, %v5428
        %v5430 = vrot.slane %v5311, 1
        %v5431 = vsel %vm5408, %v5428, %v5430
        %v5432 = vrot.slane %v5314, 1
        %v5433 = vsel %vm5408, %v5430, %v5432
        %v5434 = vrot.slane %v5317, 1
        %v5435 = vsel %vm5408, %v5432, %v5434
        %v5436 = vrot.slane %v5320, 1
        %v5437 = vsel %vm5408, %v5434, %v5436
        %v5438 = vrot.slane %v5323, 1
        %v5439 = vsel %vm5408, %v5436, %v5438
        %v5440 = vrot.slane %v5326, 1
        %v5441 = vsel %vm5408, %v5438, %v5440
        %v5442 = vrot.slane %v5329, 1
        %v5443 = vsel %vm5408, %v5440, %v5442
        %v5444 = vrot.slane %v5332, 1
        %v5445 = vsel %vm5408, %v5442, %v5444
        %v5446 = vrot.slane %v5335, 1
        %v5447 = vsel %vm5408, %v5444, %v5446
        %v5448 = vrot.slane %v5338, 1
        %v5449 = vsel %vm5408, %v5446, %v5448
        %v5450 = vrot.slane %v5341, 1
        %v5451 = vsel %vm5408, %v5448, %v5450
        %v5452 = vrot.slane %v5344, 1
        %v5453 = vsel %vm5408, %v5450, %v5452
        %v5454 = vrot.slane %v5347, 1
        %v5455 = vsel %vm5408, %v5452, %v5454
        %v5456 = vrot.slane %v5350, 1
        %v5457 = vsel %vm5408, %v5454, %v5456
        %v5458 = vrot.slane %v5353, 1
        %v5459 = vsel %vm5408, %v5456, %v5458
        %v5460 = vrot.slane %v5356, 1
        %v5461 = vsel %vm5408, %v5458, %v5460
        %v5462 = vrot.slane %v5359, 1
        %v5463 = vsel %vm5408, %v5460, %v5462
        %v5464 = vrot.slane %v5362, 1
        %v5465 = vsel %vm5408, %v5462, %v5464
        %v5466 = vrot.slane %v5365, 1
        %v5467 = vsel %vm5408, %v5464, %v5466
        %v5468 = vrot.slane %v5368, 1
        %v5469 = vsel %vm5408, %v5466, %v5468
        %v5470 = vrot.slane %v5371, 1
        %v5471 = vsel %vm5408, %v5468, %v5470
        %v5472 = vrot.slane %v5373, 1
        %v5473 = vsel %vm5408, %v5470, %v5472
        %v5506 = vadd.f32 %v5277, %v5411
        %v5507 = vadd.f32 %v5280, %v5413
        %v5508 = vadd.f32 %v5283, %v5415
        %v5509 = vadd.f32 %v5286, %v5417
        %v5510 = vadd.f32 %v5289, %v5419
        %v5511 = vadd.f32 %v5292, %v5421
        %v5512 = vadd.f32 %v5295, %v5423
        %v5513 = vadd.f32 %v5298, %v5425
        %v5514 = vadd.f32 %v5301, %v5427
        %v5515 = vadd.f32 %v5304, %v5429
        %v5516 = vadd.f32 %v5307, %v5431
        %v5517 = vadd.f32 %v5310, %v5433
        %v5518 = vadd.f32 %v5313, %v5435
        %v5519 = vadd.f32 %v5316, %v5437
        %v5520 = vadd.f32 %v5319, %v5439
        %v5521 = vadd.f32 %v5322, %v5441
        %v5522 = vadd.f32 %v5325, %v5443
        %v5523 = vadd.f32 %v5328, %v5445
        %v5524 = vadd.f32 %v5331, %v5447
        %v5525 = vadd.f32 %v5334, %v5449
        %v5526 = vadd.f32 %v5337, %v5451
        %v5527 = vadd.f32 %v5340, %v5453
        %v5528 = vadd.f32 %v5343, %v5455
        %v5529 = vadd.f32 %v5346, %v5457
        %v5530 = vadd.f32 %v5349, %v5459
        %v5531 = vadd.f32 %v5352, %v5461
        %v5532 = vadd.f32 %v5355, %v5463
        %v5533 = vadd.f32 %v5358, %v5465
        %v5534 = vadd.f32 %v5361, %v5467
        %v5535 = vadd.f32 %v5364, %v5469
        %v5536 = vadd.f32 %v5367, %v5471
        %v5537 = vadd.f32 %v5370, %v5473
        %vm5571 = vcmask 1045504
        %v5572 = vrot.slane %v5279, 2
        %v5573 = vrot.slane %v5282, 2
        %v5574 = vsel %vm5571, %v5572, %v5573
        %v5575 = vrot.slane %v5285, 2
        %v5576 = vsel %vm5571, %v5573, %v5575
        %v5577 = vrot.slane %v5288, 2
        %v5578 = vsel %vm5571, %v5575, %v5577
        %v5579 = vrot.slane %v5291, 2
        %v5580 = vsel %vm5571, %v5577, %v5579
        %v5581 = vrot.slane %v5294, 2
        %v5582 = vsel %vm5571, %v5579, %v5581
        %v5583 = vrot.slane %v5297, 2
        %v5584 = vsel %vm5571, %v5581, %v5583
        %v5585 = vrot.slane %v5300, 2
        %v5586 = vsel %vm5571, %v5583, %v5585
        %v5587 = vrot.slane %v5303, 2
        %v5588 = vsel %vm5571, %v5585, %v5587
        %v5589 = vrot.slane %v5306, 2
        %v5590 = vsel %vm5571, %v5587, %v5589
        %v5591 = vrot.slane %v5309, 2
        %v5592 = vsel %vm5571, %v5589, %v5591
        %v5593 = vrot.slane %v5312, 2
        %v5594 = vsel %vm5571, %v5591, %v5593
        %v5595 = vrot.slane %v5315, 2
        %v5596 = vsel %vm5571, %v5593, %v5595
        %v5597 = vrot.slane %v5318, 2
        %v5598 = vsel %vm5571, %v5595, %v5597
        %v5599 = vrot.slane %v5321, 2
        %v5600 = vsel %vm5571, %v5597, %v5599
        %v5601 = vrot.slane %v5324, 2
        %v5602 = vsel %vm5571, %v5599, %v5601
        %v5603 = vrot.slane %v5327, 2
        %v5604 = vsel %vm5571, %v5601, %v5603
        %v5605 = vrot.slane %v5330, 2
        %v5606 = vsel %vm5571, %v5603, %v5605
        %v5607 = vrot.slane %v5333, 2
        %v5608 = vsel %vm5571, %v5605, %v5607
        %v5609 = vrot.slane %v5336, 2
        %v5610 = vsel %vm5571, %v5607, %v5609
        %v5611 = vrot.slane %v5339, 2
        %v5612 = vsel %vm5571, %v5609, %v5611
        %v5613 = vrot.slane %v5342, 2
        %v5614 = vsel %vm5571, %v5611, %v5613
        %v5615 = vrot.slane %v5345, 2
        %v5616 = vsel %vm5571, %v5613, %v5615
        %v5617 = vrot.slane %v5348, 2
        %v5618 = vsel %vm5571, %v5615, %v5617
        %v5619 = vrot.slane %v5351, 2
        %v5620 = vsel %vm5571, %v5617, %v5619
        %v5621 = vrot.slane %v5354, 2
        %v5622 = vsel %vm5571, %v5619, %v5621
        %v5623 = vrot.slane %v5357, 2
        %v5624 = vsel %vm5571, %v5621, %v5623
        %v5625 = vrot.slane %v5360, 2
        %v5626 = vsel %vm5571, %v5623, %v5625
        %v5627 = vrot.slane %v5363, 2
        %v5628 = vsel %vm5571, %v5625, %v5627
        %v5629 = vrot.slane %v5366, 2
        %v5630 = vsel %vm5571, %v5627, %v5629
        %v5631 = vrot.slane %v5369, 2
        %v5632 = vsel %vm5571, %v5629, %v5631
        %v5633 = vrot.slane %v5372, 2
        %v5634 = vsel %vm5571, %v5631, %v5633
        %v5635 = vrot.slane %v5374, 2
        %v5636 = vsel %vm5571, %v5633, %v5635
        %v5669 = vadd.f32 %v5506, %v5574
        %v5670 = vadd.f32 %v5507, %v5576
        %v5671 = vadd.f32 %v5508, %v5578
        %v5672 = vadd.f32 %v5509, %v5580
        %v5673 = vadd.f32 %v5510, %v5582
        %v5674 = vadd.f32 %v5511, %v5584
        %v5675 = vadd.f32 %v5512, %v5586
        %v5676 = vadd.f32 %v5513, %v5588
        %v5677 = vadd.f32 %v5514, %v5590
        %v5678 = vadd.f32 %v5515, %v5592
        %v5679 = vadd.f32 %v5516, %v5594
        %v5680 = vadd.f32 %v5517, %v5596
        %v5681 = vadd.f32 %v5518, %v5598
        %v5682 = vadd.f32 %v5519, %v5600
        %v5683 = vadd.f32 %v5520, %v5602
        %v5684 = vadd.f32 %v5521, %v5604
        %v5685 = vadd.f32 %v5522, %v5606
        %v5686 = vadd.f32 %v5523, %v5608
        %v5687 = vadd.f32 %v5524, %v5610
        %v5688 = vadd.f32 %v5525, %v5612
        %v5689 = vadd.f32 %v5526, %v5614
        %v5690 = vadd.f32 %v5527, %v5616
        %v5691 = vadd.f32 %v5528, %v5618
        %v5692 = vadd.f32 %v5529, %v5620
        %v5693 = vadd.f32 %v5530, %v5622
        %v5694 = vadd.f32 %v5531, %v5624
        %v5695 = vadd.f32 %v5532, %v5626
        %v5696 = vadd.f32 %v5533, %v5628
        %v5697 = vadd.f32 %v5534, %v5630
        %v5698 = vadd.f32 %v5535, %v5632
        %v5699 = vadd.f32 %v5536, %v5634
        %v5700 = vadd.f32 %v5537, %v5636
        %v5701 = vld [vmem:[#allocation9] sm:$0x1]
        %v5703 = vlaneseq
        %v5704 = vshrl.u32 %v5703, 7
        %v5705 = vsub.s32 0, %v5704
        %v5706 = vrot.slane %v5701, %v5705
        %v5708 = vmul.f32 %v5669, %v5706
        %v5709 = vmul.f32 %v5670, %v5706
        %v5710 = vmul.f32 %v5671, %v5706
        %v5711 = vmul.f32 %v5672, %v5706
        %v5712 = vmul.f32 %v5673, %v5706
        %v5713 = vmul.f32 %v5674, %v5706
        %v5714 = vmul.f32 %v5675, %v5706
        %v5715 = vmul.f32 %v5676, %v5706
        %v5716 = vmul.f32 %v5677, %v5706
        %v5717 = vmul.f32 %v5678, %v5706
        %v5718 = vmul.f32 %v5679, %v5706
        %v5719 = vmul.f32 %v5680, %v5706
        %v5720 = vmul.f32 %v5681, %v5706
        %v5721 = vmul.f32 %v5682, %v5706
        %v5722 = vmul.f32 %v5683, %v5706
        %v5723 = vmul.f32 %v5684, %v5706
        %v5724 = vmul.f32 %v5685, %v5706
        %v5725 = vmul.f32 %v5686, %v5706
        %v5726 = vmul.f32 %v5687, %v5706
        %v5727 = vmul.f32 %v5688, %v5706
        %v5728 = vmul.f32 %v5689, %v5706
        %v5729 = vmul.f32 %v5690, %v5706
        %v5730 = vmul.f32 %v5691, %v5706
        %v5731 = vmul.f32 %v5692, %v5706
        %v5732 = vmul.f32 %v5693, %v5706
        %v5733 = vmul.f32 %v5694, %v5706
        %v5734 = vmul.f32 %v5695, %v5706
        %v5735 = vmul.f32 %v5696, %v5706
        %v5736 = vmul.f32 %v5697, %v5706
        %v5737 = vmul.f32 %v5698, %v5706
        %v5738 = vmul.f32 %v5699, %v5706
        %v5739 = vmul.f32 %v5700, %v5706
        %v5740 = vld [vmem:[#allocation11] sm:$0x1]
        %v5742 = vlaneseq
        %v5743 = vshrl.u32 %v5742, 7
        %v5744 = vsub.s32 0, %v5743
        %v5745 = vrot.slane %v5740, %v5744
        %v5747 = vadd.f32 %v5708, %v5745
        %v5748 = vadd.f32 %v5709, %v5745
        %v5749 = vadd.f32 %v5710, %v5745
        %v5750 = vadd.f32 %v5711, %v5745
        %v5751 = vadd.f32 %v5712, %v5745
        %v5752 = vadd.f32 %v5713, %v5745
        %v5753 = vadd.f32 %v5714, %v5745
        %v5754 = vadd.f32 %v5715, %v5745
        %v5755 = vadd.f32 %v5716, %v5745
        %v5756 = vadd.f32 %v5717, %v5745
        %v5757 = vadd.f32 %v5718, %v5745
        %v5758 = vadd.f32 %v5719, %v5745
        %v5759 = vadd.f32 %v5720, %v5745
        %v5760 = vadd.f32 %v5721, %v5745
        %v5761 = vadd.f32 %v5722, %v5745
        %v5762 = vadd.f32 %v5723, %v5745
        %v5763 = vadd.f32 %v5724, %v5745
        %v5764 = vadd.f32 %v5725, %v5745
        %v5765 = vadd.f32 %v5726, %v5745
        %v5766 = vadd.f32 %v5727, %v5745
        %v5767 = vadd.f32 %v5728, %v5745
        %v5768 = vadd.f32 %v5729, %v5745
        %v5769 = vadd.f32 %v5730, %v5745
        %v5770 = vadd.f32 %v5731, %v5745
        %v5771 = vadd.f32 %v5732, %v5745
        %v5772 = vadd.f32 %v5733, %v5745
        %v5773 = vadd.f32 %v5734, %v5745
        %v5774 = vadd.f32 %v5735, %v5745
        %v5775 = vadd.f32 %v5736, %v5745
        %v5776 = vadd.f32 %v5737, %v5745
        %v5777 = vadd.f32 %v5738, %v5745
        %v5778 = vadd.f32 %v5739, %v5745
        %v5779 = vmax.f32 %v5747, 0.0
        %v5780 = vmax.f32 %v5748, 0.0
        %v5781 = vmax.f32 %v5749, 0.0
        %v5782 = vmax.f32 %v5750, 0.0
        %v5783 = vmax.f32 %v5751, 0.0
        %v5784 = vmax.f32 %v5752, 0.0
        %v5785 = vmax.f32 %v5753, 0.0
        %v5786 = vmax.f32 %v5754, 0.0
        %v5787 = vmax.f32 %v5755, 0.0
        %v5788 = vmax.f32 %v5756, 0.0
        %v5789 = vmax.f32 %v5757, 0.0
        %v5790 = vmax.f32 %v5758, 0.0
        %v5791 = vmax.f32 %v5759, 0.0
        %v5792 = vmax.f32 %v5760, 0.0
        %v5793 = vmax.f32 %v5761, 0.0
        %v5794 = vmax.f32 %v5762, 0.0
        %v5795 = vmax.f32 %v5763, 0.0
        %v5796 = vmax.f32 %v5764, 0.0
        %v5797 = vmax.f32 %v5765, 0.0
        %v5798 = vmax.f32 %v5766, 0.0
        %v5799 = vmax.f32 %v5767, 0.0
        %v5800 = vmax.f32 %v5768, 0.0
        %v5801 = vmax.f32 %v5769, 0.0
        %v5802 = vmax.f32 %v5770, 0.0
        %v5803 = vmax.f32 %v5771, 0.0
        %v5804 = vmax.f32 %v5772, 0.0
        %v5805 = vmax.f32 %v5773, 0.0
        %v5806 = vmax.f32 %v5774, 0.0
        %v5807 = vmax.f32 %v5775, 0.0
        %v5808 = vmax.f32 %v5776, 0.0
        %v5809 = vmax.f32 %v5777, 0.0
        %v5810 = vmax.f32 %v5778, 0.0
        %v5811 = vld [vmem:[#allocation12] sm:$0xf]
        %v5812 = vld [vmem:[#allocation12 + $0x4] sm:$0xf]
        %v5813 = vpack.c.bf16 %v5780, %v5779
        %v5814 = vpack.c.bf16 %v5782, %v5781
        %v5815 = vpack.c.bf16 %v5784, %v5783
        %v5816 = vpack.c.bf16 %v5786, %v5785
        %v5817 = vpack.c.bf16 %v5788, %v5787
        %v5818 = vpack.c.bf16 %v5790, %v5789
        %v5819 = vpack.c.bf16 %v5792, %v5791
        %v5820 = vpack.c.bf16 %v5794, %v5793
        %v5821 = vpack.c.bf16 %v5796, %v5795
        %v5822 = vpack.c.bf16 %v5798, %v5797
        %v5823 = vpack.c.bf16 %v5800, %v5799
        %v5824 = vpack.c.bf16 %v5802, %v5801
        %v5825 = vpack.c.bf16 %v5804, %v5803
        %v5826 = vpack.c.bf16 %v5806, %v5805
        %v5827 = vpack.c.bf16 %v5808, %v5807
        %v5828 = vpack.c.bf16 %v5810, %v5809
        %v5829 = vld [vmem:[%s6] sm:$0xff]
        %v5830 = vld [vmem:[%s6 + $0x8] sm:$0xff]
        %5832 = vset.pattern.permute.xlu0 0
        %5833 = vperm.xlu0 %5832, %v5829
        %v5834 = vpop.permute.xlu0 %5833
        %5837 = vset.pattern.permute.xlu0 0
        %5838 = vperm.xlu0 %5837, %v5830
        %v5839 = vpop.permute.xlu0 %5838
        %v5843 = vunpack.c.l.b16 %v5811
        %v5844 = vunpack.c.l.b16 %v5812
        %v5845 = vpack.c.b16 %v5844, %v5843
        %5847 = vmatprep.subr.bf16.mxu0 0
        %5848 = vmatpush1.bf16.xpose.msra.mxu0 %v5813
        %5849 = vmatprep.subr.bf16.mxu0 0
        %5850 = vmatpush1.bf16.xpose.msra.mxu0 %v5814
        %5851 = vmatprep.subr.bf16.mxu0 0
        %5852 = vmatpush1.bf16.xpose.msra.mxu0 %v5815
        %5853 = vmatprep.subr.bf16.mxu0 0
        %5854 = vmatpush1.bf16.xpose.msra.mxu0 %v5816
        %5855 = vmatprep.subr.bf16.mxu0 0
        %5856 = vmatpush1.bf16.xpose.msra.mxu0 %v5817
        %5857 = vmatprep.subr.bf16.mxu0 0
        %5858 = vmatpush1.bf16.xpose.msra.mxu0 %v5818
        %5859 = vmatprep.subr.bf16.mxu0 0
        %5860 = vmatpush1.bf16.xpose.msra.mxu0 %v5819
        %5861 = vmatprep.subr.bf16.mxu0 0
        %5862 = vmatpush1.bf16.xpose.msra.mxu0 %v5820
        %5863 = vmatprep.subr.bf16.mxu0 0
        %5864 = vmatpush1.bf16.xpose.msra.mxu0 %v5821
        %5865 = vmatprep.subr.bf16.mxu0 0
        %5866 = vmatpush1.bf16.xpose.msra.mxu0 %v5822
        %5867 = vmatprep.subr.bf16.mxu0 0
        %5868 = vmatpush1.bf16.xpose.msra.mxu0 %v5823
        %5869 = vmatprep.subr.bf16.mxu0 0
        %5870 = vmatpush1.bf16.xpose.msra.mxu0 %v5824
        %5871 = vmatprep.subr.bf16.mxu0 0
        %5872 = vmatpush1.bf16.xpose.msra.mxu0 %v5825
        %5873 = vmatprep.subr.bf16.mxu0 0
        %5874 = vmatpush1.bf16.xpose.msra.mxu0 %v5826
        %5875 = vmatprep.subr.bf16.mxu0 0
        %5876 = vmatpush1.bf16.xpose.msra.mxu0 %v5827
        %5877 = vmatprep.subr.bf16.mxu0 0
        %5878 = vmatpush1.bf16.xpose.msra.mxu0 %v5828
        %5879 = vmatprep.mubr.bf16.mxu0 0
        %5880 = vmatmul.mubr.bf16.gmra.mrb[0].mxu0 %v5845
        %v5881 = vpop.f32.mrb[0].mxu0
        %v5882 = vadd.f32 %v5834, %v5881
        %v5883 = vpop.f32.mrb[0].mxu0
        %v5884 = vadd.f32 %v5834, %v5883
        %v5885 = vpop.f32.mrb[0].mxu0
        %v5886 = vadd.f32 %v5839, %v5885
        %v5887 = vpop.f32.mrb[0].mxu0
        %v5888 = vadd.f32 %v5839, %v5887
        %5889 = vdwg.mxu0
        %5890 = vst [vmem:[%s427] sm:$0xff] %v5882
        %5891 = vst [vmem:[%s427 + $0x8] sm:$0xff] %v5884
        %5892 = vst [vmem:[%s427 + $0x10] sm:$0xff] %v5886
        %5893 = vst [vmem:[%s427 + $0x18] sm:$0xff] %v5888
        %s5894 = sand.u32 %s216, 1
        %s5895 = scalar_lea.sflag [#allocation5], %s5894
        %s5896 = sand.u32 %s216, 1
        %s5897 = smul.addr %s5896, 32
        %s5898 = scalar_lea.vmem [#allocation14], %s5897
        // Predicated region
        $region73: #{tpu_custom_call.1} parent=47 // pred_check
          %p5899 = pneg %p226
        $region74: #{tpu_custom_call.1} parent=47 // pred_check_branch
          %5901 = sbr.rel (%p5899) target = $region76
        $region75: #{tpu_custom_call.1} parent=47 // pred_region
          %s5902 = smul.u32 2, %s34
          %s5904 = ssub.s32 512, 512
          %5905 = vsyncadd %s5895, %s5904
          %s5906 = smul.addr %s33, 8
          %s5907 = sadd.s32 %s5902, %s5906
          %s5908 = smul.addr %s5907, 128
          %s5909 = scalar_lea.hbm %s7, %s5908
          %s5910 = sshll.u32 %s5898, 4
          %s5911 = int_to_ptr.vmem [resolvable:$true] %s5910
          %5916 = dma.vmem_to_hbm [thread:$0]  %s5911, 512, %s5909, %s5895, 256, 512, 16
        $region76: #{tpu_custom_call.1} parent=47 // pred_fallthru
          _
      $region48: #{tpu_custom_call.1} parent=5 // pred_fallthru
        _
      %p5917 = scmp.le.s32.totalorder 2, %s24
      // Predicated region
      $region77: #{tpu_custom_call.1} parent=5 // pred_check
        %p5918 = pneg %p5917
      $region78: #{tpu_custom_call.1} parent=5 // pred_check_branch
        %5920 = sbr.rel (%p5918) target = $region80
      $region79: #{tpu_custom_call.1} parent=5 // pred_region
        %s5921 = ssub.s32 %s24, 2
        // Predicated region
        $region81: #{tpu_custom_call.1} parent=79 // pred_check
          %p5922 = pneg %p232
        $region82: #{tpu_custom_call.1} parent=79 // pred_check_branch
          %5924 = sbr.rel (%p5922) target = $region84
        $region83: #{tpu_custom_call.1} parent=79 // pred_region
          %s5925 = sand.u32 %s217, 1
          %s5926 = scalar_lea.sflag [#allocation5], %s5925
          %s5927 = sand.u32 %s217, 1
          %s5928 = smul.addr %s5927, 32
          %s5929 = scalar_lea.vmem [#allocation14], %s5928
          %5930 = dma.done %s5926, 512
        $region84: #{tpu_custom_call.1} parent=79 // pred_fallthru
          _
      $region80: #{tpu_custom_call.1} parent=5 // pred_fallthru
        _
    $region6: #{tpu_custom_call.1} parent=1 // loop_footer
      %s28 = sadd.s32 1, %s24
    $region7: #{tpu_custom_call.1} parent=1 // loop_footer_branch
      %23 = sbr.rel target = $region3
    $region8: #{tpu_custom_call.1} parent=1 // loop_exit
      _
    %5931 = vsyncpa [#allocation4], 1
    %s5932 = scalar_lea.sflag [#allocation4], 1
    %5933 = vsyncpa %s5932, 1
    %5934 = vsyncpa [#allocation7], 1
    %s5935 = scalar_lea.sflag [#allocation7], 1
    %5936 = vsyncpa %s5935, 1
    %5937 = vsyncpa [#allocation10], 1
    %5938 = vsyncpa [#allocation13], 1
    %5939 = vsyncpa [#allocation5], 1
    %s5940 = scalar_lea.sflag [#allocation5], 1
    %5941 = vsyncpa %s5940, 1

</llo_original>
